<compile_context>
chip_gen: v7x
topology: tpu7x:2x2x1
jax: 0.10.0
libtpu: 0.0.40
codegen_flags: <defaults>
</compile_context>

<pallas_src>
import numpy as np
import jax
import jax.numpy as jnp
from jax import lax
from jax.experimental import pallas as pl
from jax.experimental.pallas import tpu as pltpu


_CHUNK = 1024          # batch elements per inner chunk: 8 sublanes x 128 lanes


def _cdiv(a, b):
    return -(-a // b)


# ----------------------------------------------------------------------------
# +/-1 eigenvalue tables of Z_j and Z_j Z_{j+1} over the 16 computational
# basis states (wire 0 = MSB).  Used only by the pure-JAX reference; the
# kernel realizes the same phases via the complement-pair identity.
# ----------------------------------------------------------------------------
_K = np.arange(16)
_BITS = (_K[None, :] >> (3 - np.arange(4))[:, None]) & 1                 # [4, 16]
_S_SINGLE = (1.0 - 2.0 * _BITS).astype(np.float32)                       # [4, 16]
_S_PAIR = np.stack([_S_SINGLE[i] * _S_SINGLE[i + 1] for i in range(3)]
                   ).astype(np.float32)                                  # [3, 16]


def _u_index(s1, s2, s3):
    """Index into the U butterfly list for sign combo (s1,s2,s3), s0 = +1."""
    return 4 * int(s1 < 0) + 2 * int(s2 < 0) + int(s3 < 0)


# ----------------------------------------------------------------------------
# Pallas kernel: fused shared-weight MLPs + quantum-fidelity readout.
# x_ref: [cps, 64, 128]  (feature f of chunk c = rows 8f:8f+8, dense vreg)
# o_ref: [cps, 8, 128]   (sublane/lane-dense P(|0000>) per batch element)
# Weights/biases: flattened f32 arrays in SMEM.
# ----------------------------------------------------------------------------
def nqe_kernel(x_ref, w1_ref, b1_ref, w2_ref, b2_ref, w3_ref, b3_ref, o_ref):
    n_chunks = x_ref.shape[0]

    # Hoist all 152 weight/bias scalars (SMEM) once per grid step.
    w1 = [w1_ref[i] for i in range(4 * 8)]
    b1 = [b1_ref[i] for i in range(8)]
    w2 = [w2_ref[i] for i in range(8 * 8)]
    b2 = [b2_ref[i] for i in range(8)]
    w3 = [w3_ref[i] for i in range(8 * 4)]
    b3 = [b3_ref[i] for i in range(4)]

    def dense2(ra, rb, w, b, n_in, n_out, relu):
        # Shared-weight linear layer applied to both streams at once: scalar
        # weights broadcast against (8,128) tiles -> pure VPU FMAs, no MXU.
        oa, ob = [], []
        for j in range(n_out):
            acc_a = ra[0] * w[j] + b[j]
            acc_b = rb[0] * w[j] + b[j]
            for i in range(1, n_in):
                wij = w[i * n_out + j]
                acc_a = acc_a + ra[i] * wij
                acc_b = acc_b + rb[i] * wij
            if relu:
                acc_a = jnp.maximum(acc_a, 0.0)
                acc_b = jnp.maximum(acc_b, 0.0)
            oa.append(acc_a)
            ob.append(acc_b)
        return oa, ob

    def chunk_body(c, carry):
        xc = x_ref[c]                                              # [64, 128]
        ra = [xc[8 * f:8 * f + 8, :] for f in range(4)]            # x1 feats
        rb = [xc[32 + 8 * f:32 + 8 * f + 8, :] for f in range(4)]  # x2 feats

        ha, hb = dense2(ra, rb, w1, b1, 4, 8, True)
        ha, hb = dense2(ha, hb, w2, b2, 8, 8, True)
        a, b = dense2(ha, hb, w3, b3, 8, 4, False)

        # 7 angle differences driving the diagonal phases.  The 2.0 / -0.5
        # factors fold into a global conjugation (|conj(z)|^2 == |z|^2).
        t = [a[i] - b[i] for i in range(4)]                        # single-Z
        u = [a[i] * a[i + 1] - b[i] * b[i + 1] for i in range(3)]  # ZZ pairs

        # U_k = t0 + s1 t1 + s2 t2 + s3 t3 over the 8 sign combos (s1,s2,s3);
        # built with an add/sub butterfly (14 adds).
        p01 = t[0] + t[1]
        m01 = t[0] - t[1]
        pp = p01 + t[2]
        pm = p01 - t[2]
        mp = m01 + t[2]
        mm = m01 - t[2]
        U = [pp + t[3], pp - t[3], pm + t[3], pm - t[3],
             mp + t[3], mp - t[3], mm + t[3], mm - t[3]]
        cu = [jnp.cos(v) for v in U]

        # W_m = u0 + q1 u1 + q2 u2 over (q1,q2) in {+,-}^2 (6 adds); every
        # V_k is +/- one of these, so 4 cos + 4 sin cover all ZZ phases.
        wp = u[0] + u[1]
        wm = u[0] - u[1]
        W = [wp + u[2], wp - u[2], wm + u[2], wm - u[2]]
        cw = [jnp.cos(v) for v in W]
        sw = [jnp.sin(v) for v in W]

        # sum over 16 basis states = 2 * sum over 8 complement-pair reps of
        # cos(U_k) exp(i V_k); for pattern m the two reps contributing are
        # (s1=+1, s2=q1, s3=q1*q2) with V=+W_m and (s1=-1, s2=q1, s3=-q1*q2)
        # with V=-W_m.
        re = None
        im = None
        for m, (q1, q2) in enumerate(((1, 1), (1, -1), (-1, 1), (-1, -1))):
            kp = _u_index(+1, q1, q1 * q2)
            km = _u_index(-1, q1, -q1 * q2)
            rm = cw[m] * (cu[kp] + cu[km])
            ip = sw[m] * (cu[kp] - cu[km])
            re = rm if re is None else re + rm
            im = ip if im is None else im + ip

        # P(|0000>) = |(2/16) * (re + i*im)|^2 = (re^2 + im^2) / 64
        o_ref[c] = (re * re + im * im) * (1.0 / 64.0)
        return carry

    lax.fori_loop(0, n_chunks, chunk_body, None)


# ----------------------------------------------------------------------------
# Host-side glue
# ----------------------------------------------------------------------------
def init_params(key):
    """Deterministic init matching linear_relu_stack1 (4->8->8->4).
    Weights are stored [in, out] so the math is x @ W; biases are 1-D."""
    ks = jax.random.split(key, 6)

    def lin(kw, kb, fan_in, fan_out):
        bound = 1.0 / np.sqrt(fan_in)
        w = jax.random.uniform(kw, (fan_in, fan_out), jnp.float32, -bound, bound)
        b = jax.random.uniform(kb, (fan_out,), jnp.float32, -bound, bound)
        return w, b

    w1, b1 = lin(ks[0], ks[1], 4, 8)
    w2, b2 = lin(ks[2], ks[3], 8, 8)
    w3, b3 = lin(ks[4], ks[5], 8, 4)
    return (w1, b1, w2, b2, w3, b3)


def nqe_forward(x1, x2, params, *, chunks_per_step=8):
    """x1, x2: [B, 4] float32.  Returns [B] float32 = P(|0000>).

    chunks_per_step * 1024 batch elements are processed per grid step
    (default 8192); VMEM use is ~2 * cps * 36 KiB, far under every
    generation's budget.  The grid is kept >= 2 whenever there are >= 2
    chunks of work so v7x megacore can shard the "parallel" axis.
    """
    B = x1.shape[0]
    w1, b1, w2, b2, w3, b3 = params

    c_needed = max(1, _cdiv(B, _CHUNK))
    cps = max(1, min(chunks_per_step, _cdiv(c_needed, 2)))
    grid_n = _cdiv(c_needed, cps)
    c_total = grid_n * cps
    bpad = c_total * _CHUNK

    # [B, 8] feature matrix (cols 0..3 = x1, 4..7 = x2), padded along batch.
    x = jnp.concatenate([x1, x2], axis=1).astype(jnp.float32)
    if bpad != B:
        x = jnp.pad(x, ((0, bpad - B), (0, 0)))     # padded rows are discarded
    # Sublane-dense slab: slab[c, 8f+s, l] = x[c*1024 + s*128 + l, f].
    slab = (x.reshape(c_total, 8, 128, 8)           # [c, s, l, f]
             .transpose(0, 3, 1, 2)                 # [c, f, s, l]
             .reshape(c_total, 64, 128))

    smem = pl.BlockSpec(memory_space=pltpu.MemorySpace.SMEM)
    out = pl.pallas_call(
        nqe_kernel,
        out_shape=jax.ShapeDtypeStruct((c_total, 8, 128), jnp.float32),
        grid=(grid_n,),
        in_specs=[
            pl.BlockSpec((cps, 64, 128), lambda i: (i, 0, 0)),  # input slab
            smem, smem, smem, smem, smem, smem,                 # weights/biases
        ],
        out_specs=pl.BlockSpec((cps, 8, 128), lambda i: (i, 0, 0)),
        compiler_params=pltpu.CompilerParams(
            dimension_semantics=("parallel",),       # megacore on v7x
        ),
    )(slab,
      w1.reshape(-1), b1.reshape(-1),
      w2.reshape(-1), b2.reshape(-1),
      w3.reshape(-1), b3.reshape(-1))
    # out[c, s, l] is batch element c*1024 + s*128 + l -> flat row-major.
    return out.reshape(-1)[:B]


# ----------------------------------------------------------------------------
# Pure-JAX reference (same math, brute-force 16-state sum) for a sanity check.
# ----------------------------------------------------------------------------
def nqe_reference(x1, x2, params):
    w1, b1, w2, b2, w3, b3 = params
    s_single = jnp.asarray(_S_SINGLE)
    s_pair = jnp.asarray(_S_PAIR)
    hi = jax.lax.Precision.HIGHEST

    def mlp(x):
        h = jnp.maximum(jnp.dot(x, w1, precision=hi) + b1, 0.0)
        h = jnp.maximum(jnp.dot(h, w2, precision=hi) + b2, 0.0)
        return jnp.dot(h, w3, precision=hi) + b3

    a, b = mlp(x1), mlp(x2)
    d_single = 2.0 * (a - b)
    d_pair = 2.0 * (a[:, 0:3] * a[:, 1:4] - b[:, 0:3] * b[:, 1:4])
    phi = -0.5 * (jnp.dot(d_single, s_single, precision=hi)
                  + jnp.dot(d_pair, s_pair, precision=hi))
    amp = jnp.mean(jnp.exp(1j * phi.astype(jnp.complex64)), axis=1)
    return jnp.abs(amp) ** 2


if __name__ == "__main__":
    key = jax.random.PRNGKey(0)
    k_x1, k_x2, k_p, k_y1, k_y2 = jax.random.split(key, 5)
    params = init_params(k_p)

    # Small shapes consistent with the module: batch=8, 4 features per branch.
    B = 8
    x1 = jax.random.normal(k_x1, (B, 4), jnp.float32)
    x2 = jax.random.normal(k_x2, (B, 4), jnp.float32)
    out = jax.block_until_ready(nqe_forward(x1, x2, params))
    assert out.shape == (B,)
    np.testing.assert_allclose(np.asarray(out),
                               np.asarray(nqe_reference(x1, x2, params)),
                               rtol=1e-4, atol=1e-5)

    # Second check: exercises padding, multi-chunk inner loop, and grid > 1.
    B2 = 2500
    y1 = jax.random.normal(k_y1, (B2, 4), jnp.float32)
    y2 = jax.random.normal(k_y2, (B2, 4), jnp.float32)
    out2 = jax.block_until_ready(nqe_forward(y1, y2, params))
    assert out2.shape == (B2,)
    np.testing.assert_allclose(np.asarray(out2),
                               np.asarray(nqe_reference(y1, y2, params)),
                               rtol=1e-4, atol=1e-5)

    print("KERNEL_OK")
</pallas_src>

<mosaic_0001>
module attributes {stable_mosaic.version = 11 : i64} {
  func.func @nqe_kernel(%arg0: i32, %arg1: memref<1x64x128xf32, #tpu.memory_space<vmem>>, %arg2: memref<32xf32, #tpu.memory_space<smem>>, %arg3: memref<8xf32, #tpu.memory_space<smem>>, %arg4: memref<64xf32, #tpu.memory_space<smem>>, %arg5: memref<8xf32, #tpu.memory_space<smem>>, %arg6: memref<32xf32, #tpu.memory_space<smem>>, %arg7: memref<4xf32, #tpu.memory_space<smem>>, %arg8: memref<1x8x128xf32, #tpu.memory_space<vmem>>) attributes {dimension_semantics = [#tpu.dimension_semantics<parallel>], iteration_bounds = array<i64: 1>, scalar_prefetch = 0 : i64, scratch_operands = 0 : i64, tpu.core_type = #tpu.core_type<tc>, window_params = [{transform_indices = @transform_0, window_bounds = array<i64: 1, 64, 128>}, {transform_indices = @transform_1, window_bounds = array<i64: 32>}, {transform_indices = @transform_2, window_bounds = array<i64: 8>}, {transform_indices = @transform_3, window_bounds = array<i64: 64>}, {transform_indices = @transform_4, window_bounds = array<i64: 8>}, {transform_indices = @transform_5, window_bounds = array<i64: 32>}, {transform_indices = @transform_6, window_bounds = array<i64: 4>}, {transform_indices = @transform_7, window_bounds = array<i64: 1, 8, 128>}]} {
    %c0 = arith.constant 0 : index
    %0 = memref.load %arg2[%c0] : memref<32xf32, #tpu.memory_space<smem>>
    %c1 = arith.constant 1 : index
    %1 = memref.load %arg2[%c1] : memref<32xf32, #tpu.memory_space<smem>>
    %c2 = arith.constant 2 : index
    %2 = memref.load %arg2[%c2] : memref<32xf32, #tpu.memory_space<smem>>
    %c3 = arith.constant 3 : index
    %3 = memref.load %arg2[%c3] : memref<32xf32, #tpu.memory_space<smem>>
    %c4 = arith.constant 4 : index
    %4 = memref.load %arg2[%c4] : memref<32xf32, #tpu.memory_space<smem>>
    %c5 = arith.constant 5 : index
    %5 = memref.load %arg2[%c5] : memref<32xf32, #tpu.memory_space<smem>>
    %c6 = arith.constant 6 : index
    %6 = memref.load %arg2[%c6] : memref<32xf32, #tpu.memory_space<smem>>
    %c7 = arith.constant 7 : index
    %7 = memref.load %arg2[%c7] : memref<32xf32, #tpu.memory_space<smem>>
    %c8 = arith.constant 8 : index
    %8 = memref.load %arg2[%c8] : memref<32xf32, #tpu.memory_space<smem>>
    %c9 = arith.constant 9 : index
    %9 = memref.load %arg2[%c9] : memref<32xf32, #tpu.memory_space<smem>>
    %c10 = arith.constant 10 : index
    %10 = memref.load %arg2[%c10] : memref<32xf32, #tpu.memory_space<smem>>
    %c11 = arith.constant 11 : index
    %11 = memref.load %arg2[%c11] : memref<32xf32, #tpu.memory_space<smem>>
    %c12 = arith.constant 12 : index
    %12 = memref.load %arg2[%c12] : memref<32xf32, #tpu.memory_space<smem>>
    %c13 = arith.constant 13 : index
    %13 = memref.load %arg2[%c13] : memref<32xf32, #tpu.memory_space<smem>>
    %c14 = arith.constant 14 : index
    %14 = memref.load %arg2[%c14] : memref<32xf32, #tpu.memory_space<smem>>
    %c15 = arith.constant 15 : index
    %15 = memref.load %arg2[%c15] : memref<32xf32, #tpu.memory_space<smem>>
    %c16 = arith.constant 16 : index
    %16 = memref.load %arg2[%c16] : memref<32xf32, #tpu.memory_space<smem>>
    %c17 = arith.constant 17 : index
    %17 = memref.load %arg2[%c17] : memref<32xf32, #tpu.memory_space<smem>>
    %c18 = arith.constant 18 : index
    %18 = memref.load %arg2[%c18] : memref<32xf32, #tpu.memory_space<smem>>
    %c19 = arith.constant 19 : index
    %19 = memref.load %arg2[%c19] : memref<32xf32, #tpu.memory_space<smem>>
    %c20 = arith.constant 20 : index
    %20 = memref.load %arg2[%c20] : memref<32xf32, #tpu.memory_space<smem>>
    %c21 = arith.constant 21 : index
    %21 = memref.load %arg2[%c21] : memref<32xf32, #tpu.memory_space<smem>>
    %c22 = arith.constant 22 : index
    %22 = memref.load %arg2[%c22] : memref<32xf32, #tpu.memory_space<smem>>
    %c23 = arith.constant 23 : index
    %23 = memref.load %arg2[%c23] : memref<32xf32, #tpu.memory_space<smem>>
    %c24 = arith.constant 24 : index
    %24 = memref.load %arg2[%c24] : memref<32xf32, #tpu.memory_space<smem>>
    %c25 = arith.constant 25 : index
    %25 = memref.load %arg2[%c25] : memref<32xf32, #tpu.memory_space<smem>>
    %c26 = arith.constant 26 : index
    %26 = memref.load %arg2[%c26] : memref<32xf32, #tpu.memory_space<smem>>
    %c27 = arith.constant 27 : index
    %27 = memref.load %arg2[%c27] : memref<32xf32, #tpu.memory_space<smem>>
    %c28 = arith.constant 28 : index
    %28 = memref.load %arg2[%c28] : memref<32xf32, #tpu.memory_space<smem>>
    %c29 = arith.constant 29 : index
    %29 = memref.load %arg2[%c29] : memref<32xf32, #tpu.memory_space<smem>>
    %c30 = arith.constant 30 : index
    %30 = memref.load %arg2[%c30] : memref<32xf32, #tpu.memory_space<smem>>
    %c31 = arith.constant 31 : index
    %31 = memref.load %arg2[%c31] : memref<32xf32, #tpu.memory_space<smem>>
    %c0_0 = arith.constant 0 : index
    %32 = memref.load %arg3[%c0_0] : memref<8xf32, #tpu.memory_space<smem>>
    %c1_1 = arith.constant 1 : index
    %33 = memref.load %arg3[%c1_1] : memref<8xf32, #tpu.memory_space<smem>>
    %c2_2 = arith.constant 2 : index
    %34 = memref.load %arg3[%c2_2] : memref<8xf32, #tpu.memory_space<smem>>
    %c3_3 = arith.constant 3 : index
    %35 = memref.load %arg3[%c3_3] : memref<8xf32, #tpu.memory_space<smem>>
    %c4_4 = arith.constant 4 : index
    %36 = memref.load %arg3[%c4_4] : memref<8xf32, #tpu.memory_space<smem>>
    %c5_5 = arith.constant 5 : index
    %37 = memref.load %arg3[%c5_5] : memref<8xf32, #tpu.memory_space<smem>>
    %c6_6 = arith.constant 6 : index
    %38 = memref.load %arg3[%c6_6] : memref<8xf32, #tpu.memory_space<smem>>
    %c7_7 = arith.constant 7 : index
    %39 = memref.load %arg3[%c7_7] : memref<8xf32, #tpu.memory_space<smem>>
    %c0_8 = arith.constant 0 : index
    %40 = memref.load %arg4[%c0_8] : memref<64xf32, #tpu.memory_space<smem>>
    %c1_9 = arith.constant 1 : index
    %41 = memref.load %arg4[%c1_9] : memref<64xf32, #tpu.memory_space<smem>>
    %c2_10 = arith.constant 2 : index
    %42 = memref.load %arg4[%c2_10] : memref<64xf32, #tpu.memory_space<smem>>
    %c3_11 = arith.constant 3 : index
    %43 = memref.load %arg4[%c3_11] : memref<64xf32, #tpu.memory_space<smem>>
    %c4_12 = arith.constant 4 : index
    %44 = memref.load %arg4[%c4_12] : memref<64xf32, #tpu.memory_space<smem>>
    %c5_13 = arith.constant 5 : index
    %45 = memref.load %arg4[%c5_13] : memref<64xf32, #tpu.memory_space<smem>>
    %c6_14 = arith.constant 6 : index
    %46 = memref.load %arg4[%c6_14] : memref<64xf32, #tpu.memory_space<smem>>
    %c7_15 = arith.constant 7 : index
    %47 = memref.load %arg4[%c7_15] : memref<64xf32, #tpu.memory_space<smem>>
    %c8_16 = arith.constant 8 : index
    %48 = memref.load %arg4[%c8_16] : memref<64xf32, #tpu.memory_space<smem>>
    %c9_17 = arith.constant 9 : index
    %49 = memref.load %arg4[%c9_17] : memref<64xf32, #tpu.memory_space<smem>>
    %c10_18 = arith.constant 10 : index
    %50 = memref.load %arg4[%c10_18] : memref<64xf32, #tpu.memory_space<smem>>
    %c11_19 = arith.constant 11 : index
    %51 = memref.load %arg4[%c11_19] : memref<64xf32, #tpu.memory_space<smem>>
    %c12_20 = arith.constant 12 : index
    %52 = memref.load %arg4[%c12_20] : memref<64xf32, #tpu.memory_space<smem>>
    %c13_21 = arith.constant 13 : index
    %53 = memref.load %arg4[%c13_21] : memref<64xf32, #tpu.memory_space<smem>>
    %c14_22 = arith.constant 14 : index
    %54 = memref.load %arg4[%c14_22] : memref<64xf32, #tpu.memory_space<smem>>
    %c15_23 = arith.constant 15 : index
    %55 = memref.load %arg4[%c15_23] : memref<64xf32, #tpu.memory_space<smem>>
    %c16_24 = arith.constant 16 : index
    %56 = memref.load %arg4[%c16_24] : memref<64xf32, #tpu.memory_space<smem>>
    %c17_25 = arith.constant 17 : index
    %57 = memref.load %arg4[%c17_25] : memref<64xf32, #tpu.memory_space<smem>>
    %c18_26 = arith.constant 18 : index
    %58 = memref.load %arg4[%c18_26] : memref<64xf32, #tpu.memory_space<smem>>
    %c19_27 = arith.constant 19 : index
    %59 = memref.load %arg4[%c19_27] : memref<64xf32, #tpu.memory_space<smem>>
    %c20_28 = arith.constant 20 : index
    %60 = memref.load %arg4[%c20_28] : memref<64xf32, #tpu.memory_space<smem>>
    %c21_29 = arith.constant 21 : index
    %61 = memref.load %arg4[%c21_29] : memref<64xf32, #tpu.memory_space<smem>>
    %c22_30 = arith.constant 22 : index
    %62 = memref.load %arg4[%c22_30] : memref<64xf32, #tpu.memory_space<smem>>
    %c23_31 = arith.constant 23 : index
    %63 = memref.load %arg4[%c23_31] : memref<64xf32, #tpu.memory_space<smem>>
    %c24_32 = arith.constant 24 : index
    %64 = memref.load %arg4[%c24_32] : memref<64xf32, #tpu.memory_space<smem>>
    %c25_33 = arith.constant 25 : index
    %65 = memref.load %arg4[%c25_33] : memref<64xf32, #tpu.memory_space<smem>>
    %c26_34 = arith.constant 26 : index
    %66 = memref.load %arg4[%c26_34] : memref<64xf32, #tpu.memory_space<smem>>
    %c27_35 = arith.constant 27 : index
    %67 = memref.load %arg4[%c27_35] : memref<64xf32, #tpu.memory_space<smem>>
    %c28_36 = arith.constant 28 : index
    %68 = memref.load %arg4[%c28_36] : memref<64xf32, #tpu.memory_space<smem>>
    %c29_37 = arith.constant 29 : index
    %69 = memref.load %arg4[%c29_37] : memref<64xf32, #tpu.memory_space<smem>>
    %c30_38 = arith.constant 30 : index
    %70 = memref.load %arg4[%c30_38] : memref<64xf32, #tpu.memory_space<smem>>
    %c31_39 = arith.constant 31 : index
    %71 = memref.load %arg4[%c31_39] : memref<64xf32, #tpu.memory_space<smem>>
    %c32 = arith.constant 32 : index
    %72 = memref.load %arg4[%c32] : memref<64xf32, #tpu.memory_space<smem>>
    %c33 = arith.constant 33 : index
    %73 = memref.load %arg4[%c33] : memref<64xf32, #tpu.memory_space<smem>>
    %c34 = arith.constant 34 : index
    %74 = memref.load %arg4[%c34] : memref<64xf32, #tpu.memory_space<smem>>
    %c35 = arith.constant 35 : index
    %75 = memref.load %arg4[%c35] : memref<64xf32, #tpu.memory_space<smem>>
    %c36 = arith.constant 36 : index
    %76 = memref.load %arg4[%c36] : memref<64xf32, #tpu.memory_space<smem>>
    %c37 = arith.constant 37 : index
    %77 = memref.load %arg4[%c37] : memref<64xf32, #tpu.memory_space<smem>>
    %c38 = arith.constant 38 : index
    %78 = memref.load %arg4[%c38] : memref<64xf32, #tpu.memory_space<smem>>
    %c39 = arith.constant 39 : index
    %79 = memref.load %arg4[%c39] : memref<64xf32, #tpu.memory_space<smem>>
    %c40 = arith.constant 40 : index
    %80 = memref.load %arg4[%c40] : memref<64xf32, #tpu.memory_space<smem>>
    %c41 = arith.constant 41 : index
    %81 = memref.load %arg4[%c41] : memref<64xf32, #tpu.memory_space<smem>>
    %c42 = arith.constant 42 : index
    %82 = memref.load %arg4[%c42] : memref<64xf32, #tpu.memory_space<smem>>
    %c43 = arith.constant 43 : index
    %83 = memref.load %arg4[%c43] : memref<64xf32, #tpu.memory_space<smem>>
    %c44 = arith.constant 44 : index
    %84 = memref.load %arg4[%c44] : memref<64xf32, #tpu.memory_space<smem>>
    %c45 = arith.constant 45 : index
    %85 = memref.load %arg4[%c45] : memref<64xf32, #tpu.memory_space<smem>>
    %c46 = arith.constant 46 : index
    %86 = memref.load %arg4[%c46] : memref<64xf32, #tpu.memory_space<smem>>
    %c47 = arith.constant 47 : index
    %87 = memref.load %arg4[%c47] : memref<64xf32, #tpu.memory_space<smem>>
    %c48 = arith.constant 48 : index
    %88 = memref.load %arg4[%c48] : memref<64xf32, #tpu.memory_space<smem>>
    %c49 = arith.constant 49 : index
    %89 = memref.load %arg4[%c49] : memref<64xf32, #tpu.memory_space<smem>>
    %c50 = arith.constant 50 : index
    %90 = memref.load %arg4[%c50] : memref<64xf32, #tpu.memory_space<smem>>
    %c51 = arith.constant 51 : index
    %91 = memref.load %arg4[%c51] : memref<64xf32, #tpu.memory_space<smem>>
    %c52 = arith.constant 52 : index
    %92 = memref.load %arg4[%c52] : memref<64xf32, #tpu.memory_space<smem>>
    %c53 = arith.constant 53 : index
    %93 = memref.load %arg4[%c53] : memref<64xf32, #tpu.memory_space<smem>>
    %c54 = arith.constant 54 : index
    %94 = memref.load %arg4[%c54] : memref<64xf32, #tpu.memory_space<smem>>
    %c55 = arith.constant 55 : index
    %95 = memref.load %arg4[%c55] : memref<64xf32, #tpu.memory_space<smem>>
    %c56 = arith.constant 56 : index
    %96 = memref.load %arg4[%c56] : memref<64xf32, #tpu.memory_space<smem>>
    %c57 = arith.constant 57 : index
    %97 = memref.load %arg4[%c57] : memref<64xf32, #tpu.memory_space<smem>>
    %c58 = arith.constant 58 : index
    %98 = memref.load %arg4[%c58] : memref<64xf32, #tpu.memory_space<smem>>
    %c59 = arith.constant 59 : index
    %99 = memref.load %arg4[%c59] : memref<64xf32, #tpu.memory_space<smem>>
    %c60 = arith.constant 60 : index
    %100 = memref.load %arg4[%c60] : memref<64xf32, #tpu.memory_space<smem>>
    %c61 = arith.constant 61 : index
    %101 = memref.load %arg4[%c61] : memref<64xf32, #tpu.memory_space<smem>>
    %c62 = arith.constant 62 : index
    %102 = memref.load %arg4[%c62] : memref<64xf32, #tpu.memory_space<smem>>
    %c63 = arith.constant 63 : index
    %103 = memref.load %arg4[%c63] : memref<64xf32, #tpu.memory_space<smem>>
    %c0_40 = arith.constant 0 : index
    %104 = memref.load %arg5[%c0_40] : memref<8xf32, #tpu.memory_space<smem>>
    %c1_41 = arith.constant 1 : index
    %105 = memref.load %arg5[%c1_41] : memref<8xf32, #tpu.memory_space<smem>>
    %c2_42 = arith.constant 2 : index
    %106 = memref.load %arg5[%c2_42] : memref<8xf32, #tpu.memory_space<smem>>
    %c3_43 = arith.constant 3 : index
    %107 = memref.load %arg5[%c3_43] : memref<8xf32, #tpu.memory_space<smem>>
    %c4_44 = arith.constant 4 : index
    %108 = memref.load %arg5[%c4_44] : memref<8xf32, #tpu.memory_space<smem>>
    %c5_45 = arith.constant 5 : index
    %109 = memref.load %arg5[%c5_45] : memref<8xf32, #tpu.memory_space<smem>>
    %c6_46 = arith.constant 6 : index
    %110 = memref.load %arg5[%c6_46] : memref<8xf32, #tpu.memory_space<smem>>
    %c7_47 = arith.constant 7 : index
    %111 = memref.load %arg5[%c7_47] : memref<8xf32, #tpu.memory_space<smem>>
    %c0_48 = arith.constant 0 : index
    %112 = memref.load %arg6[%c0_48] : memref<32xf32, #tpu.memory_space<smem>>
    %c1_49 = arith.constant 1 : index
    %113 = memref.load %arg6[%c1_49] : memref<32xf32, #tpu.memory_space<smem>>
    %c2_50 = arith.constant 2 : index
    %114 = memref.load %arg6[%c2_50] : memref<32xf32, #tpu.memory_space<smem>>
    %c3_51 = arith.constant 3 : index
    %115 = memref.load %arg6[%c3_51] : memref<32xf32, #tpu.memory_space<smem>>
    %c4_52 = arith.constant 4 : index
    %116 = memref.load %arg6[%c4_52] : memref<32xf32, #tpu.memory_space<smem>>
    %c5_53 = arith.constant 5 : index
    %117 = memref.load %arg6[%c5_53] : memref<32xf32, #tpu.memory_space<smem>>
    %c6_54 = arith.constant 6 : index
    %118 = memref.load %arg6[%c6_54] : memref<32xf32, #tpu.memory_space<smem>>
    %c7_55 = arith.constant 7 : index
    %119 = memref.load %arg6[%c7_55] : memref<32xf32, #tpu.memory_space<smem>>
    %c8_56 = arith.constant 8 : index
    %120 = memref.load %arg6[%c8_56] : memref<32xf32, #tpu.memory_space<smem>>
    %c9_57 = arith.constant 9 : index
    %121 = memref.load %arg6[%c9_57] : memref<32xf32, #tpu.memory_space<smem>>
    %c10_58 = arith.constant 10 : index
    %122 = memref.load %arg6[%c10_58] : memref<32xf32, #tpu.memory_space<smem>>
    %c11_59 = arith.constant 11 : index
    %123 = memref.load %arg6[%c11_59] : memref<32xf32, #tpu.memory_space<smem>>
    %c12_60 = arith.constant 12 : index
    %124 = memref.load %arg6[%c12_60] : memref<32xf32, #tpu.memory_space<smem>>
    %c13_61 = arith.constant 13 : index
    %125 = memref.load %arg6[%c13_61] : memref<32xf32, #tpu.memory_space<smem>>
    %c14_62 = arith.constant 14 : index
    %126 = memref.load %arg6[%c14_62] : memref<32xf32, #tpu.memory_space<smem>>
    %c15_63 = arith.constant 15 : index
    %127 = memref.load %arg6[%c15_63] : memref<32xf32, #tpu.memory_space<smem>>
    %c16_64 = arith.constant 16 : index
    %128 = memref.load %arg6[%c16_64] : memref<32xf32, #tpu.memory_space<smem>>
    %c17_65 = arith.constant 17 : index
    %129 = memref.load %arg6[%c17_65] : memref<32xf32, #tpu.memory_space<smem>>
    %c18_66 = arith.constant 18 : index
    %130 = memref.load %arg6[%c18_66] : memref<32xf32, #tpu.memory_space<smem>>
    %c19_67 = arith.constant 19 : index
    %131 = memref.load %arg6[%c19_67] : memref<32xf32, #tpu.memory_space<smem>>
    %c20_68 = arith.constant 20 : index
    %132 = memref.load %arg6[%c20_68] : memref<32xf32, #tpu.memory_space<smem>>
    %c21_69 = arith.constant 21 : index
    %133 = memref.load %arg6[%c21_69] : memref<32xf32, #tpu.memory_space<smem>>
    %c22_70 = arith.constant 22 : index
    %134 = memref.load %arg6[%c22_70] : memref<32xf32, #tpu.memory_space<smem>>
    %c23_71 = arith.constant 23 : index
    %135 = memref.load %arg6[%c23_71] : memref<32xf32, #tpu.memory_space<smem>>
    %c24_72 = arith.constant 24 : index
    %136 = memref.load %arg6[%c24_72] : memref<32xf32, #tpu.memory_space<smem>>
    %c25_73 = arith.constant 25 : index
    %137 = memref.load %arg6[%c25_73] : memref<32xf32, #tpu.memory_space<smem>>
    %c26_74 = arith.constant 26 : index
    %138 = memref.load %arg6[%c26_74] : memref<32xf32, #tpu.memory_space<smem>>
    %c27_75 = arith.constant 27 : index
    %139 = memref.load %arg6[%c27_75] : memref<32xf32, #tpu.memory_space<smem>>
    %c28_76 = arith.constant 28 : index
    %140 = memref.load %arg6[%c28_76] : memref<32xf32, #tpu.memory_space<smem>>
    %c29_77 = arith.constant 29 : index
    %141 = memref.load %arg6[%c29_77] : memref<32xf32, #tpu.memory_space<smem>>
    %c30_78 = arith.constant 30 : index
    %142 = memref.load %arg6[%c30_78] : memref<32xf32, #tpu.memory_space<smem>>
    %c31_79 = arith.constant 31 : index
    %143 = memref.load %arg6[%c31_79] : memref<32xf32, #tpu.memory_space<smem>>
    %c0_80 = arith.constant 0 : index
    %144 = memref.load %arg7[%c0_80] : memref<4xf32, #tpu.memory_space<smem>>
    %c1_81 = arith.constant 1 : index
    %145 = memref.load %arg7[%c1_81] : memref<4xf32, #tpu.memory_space<smem>>
    %c2_82 = arith.constant 2 : index
    %146 = memref.load %arg7[%c2_82] : memref<4xf32, #tpu.memory_space<smem>>
    %c3_83 = arith.constant 3 : index
    %147 = memref.load %arg7[%c3_83] : memref<4xf32, #tpu.memory_space<smem>>
    %c0_i32 = arith.constant 0 : i32
    %148 = arith.index_cast %c0_i32 : i32 to index
    %c0_84 = arith.constant 0 : index
    %c0_85 = arith.constant 0 : index
    %149 = vector.load %arg1[%148, %c0_84, %c0_85] : memref<1x64x128xf32, #tpu.memory_space<vmem>>, vector<1x64x128xf32>
    %150 = vector.shape_cast %149 : vector<1x64x128xf32> to vector<64x128xf32>
    %151 = vector.extract_strided_slice %150 {offsets = [0, 0], sizes = [8, 128], strides = [1, 1]} : vector<64x128xf32> to vector<8x128xf32>
    %152 = vector.extract_strided_slice %150 {offsets = [8, 0], sizes = [8, 128], strides = [1, 1]} : vector<64x128xf32> to vector<8x128xf32>
    %153 = vector.extract_strided_slice %150 {offsets = [16, 0], sizes = [8, 128], strides = [1, 1]} : vector<64x128xf32> to vector<8x128xf32>
    %154 = vector.extract_strided_slice %150 {offsets = [24, 0], sizes = [8, 128], strides = [1, 1]} : vector<64x128xf32> to vector<8x128xf32>
    %155 = vector.extract_strided_slice %150 {offsets = [32, 0], sizes = [8, 128], strides = [1, 1]} : vector<64x128xf32> to vector<8x128xf32>
    %156 = vector.extract_strided_slice %150 {offsets = [40, 0], sizes = [8, 128], strides = [1, 1]} : vector<64x128xf32> to vector<8x128xf32>
    %157 = vector.extract_strided_slice %150 {offsets = [48, 0], sizes = [8, 128], strides = [1, 1]} : vector<64x128xf32> to vector<8x128xf32>
    %158 = vector.extract_strided_slice %150 {offsets = [56, 0], sizes = [8, 128], strides = [1, 1]} : vector<64x128xf32> to vector<8x128xf32>
    %159 = vector.broadcast %0 : f32 to vector<8x128xf32>
    %160 = arith.mulf %151, %159 : vector<8x128xf32>
    %161 = vector.broadcast %32 : f32 to vector<8x128xf32>
    %162 = arith.addf %160, %161 : vector<8x128xf32>
    %163 = vector.broadcast %0 : f32 to vector<8x128xf32>
    %164 = arith.mulf %155, %163 : vector<8x128xf32>
    %165 = vector.broadcast %32 : f32 to vector<8x128xf32>
    %166 = arith.addf %164, %165 : vector<8x128xf32>
    %167 = vector.broadcast %8 : f32 to vector<8x128xf32>
    %168 = arith.mulf %152, %167 : vector<8x128xf32>
    %169 = arith.addf %162, %168 : vector<8x128xf32>
    %170 = vector.broadcast %8 : f32 to vector<8x128xf32>
    %171 = arith.mulf %156, %170 : vector<8x128xf32>
    %172 = arith.addf %166, %171 : vector<8x128xf32>
    %173 = vector.broadcast %16 : f32 to vector<8x128xf32>
    %174 = arith.mulf %153, %173 : vector<8x128xf32>
    %175 = arith.addf %169, %174 : vector<8x128xf32>
    %176 = vector.broadcast %16 : f32 to vector<8x128xf32>
    %177 = arith.mulf %157, %176 : vector<8x128xf32>
    %178 = arith.addf %172, %177 : vector<8x128xf32>
    %179 = vector.broadcast %24 : f32 to vector<8x128xf32>
    %180 = arith.mulf %154, %179 : vector<8x128xf32>
    %181 = arith.addf %175, %180 : vector<8x128xf32>
    %182 = vector.broadcast %24 : f32 to vector<8x128xf32>
    %183 = arith.mulf %158, %182 : vector<8x128xf32>
    %184 = arith.addf %178, %183 : vector<8x128xf32>
    %cst = arith.constant 0.000000e+00 : f32
    %185 = vector.broadcast %cst : f32 to vector<8x128xf32>
    %186 = arith.maximumf %181, %185 : vector<8x128xf32>
    %cst_86 = arith.constant 0.000000e+00 : f32
    %187 = vector.broadcast %cst_86 : f32 to vector<8x128xf32>
    %188 = arith.maximumf %184, %187 : vector<8x128xf32>
    %189 = vector.broadcast %1 : f32 to vector<8x128xf32>
    %190 = arith.mulf %151, %189 : vector<8x128xf32>
    %191 = vector.broadcast %33 : f32 to vector<8x128xf32>
    %192 = arith.addf %190, %191 : vector<8x128xf32>
    %193 = vector.broadcast %1 : f32 to vector<8x128xf32>
    %194 = arith.mulf %155, %193 : vector<8x128xf32>
    %195 = vector.broadcast %33 : f32 to vector<8x128xf32>
    %196 = arith.addf %194, %195 : vector<8x128xf32>
    %197 = vector.broadcast %9 : f32 to vector<8x128xf32>
    %198 = arith.mulf %152, %197 : vector<8x128xf32>
    %199 = arith.addf %192, %198 : vector<8x128xf32>
    %200 = vector.broadcast %9 : f32 to vector<8x128xf32>
    %201 = arith.mulf %156, %200 : vector<8x128xf32>
    %202 = arith.addf %196, %201 : vector<8x128xf32>
    %203 = vector.broadcast %17 : f32 to vector<8x128xf32>
    %204 = arith.mulf %153, %203 : vector<8x128xf32>
    %205 = arith.addf %199, %204 : vector<8x128xf32>
    %206 = vector.broadcast %17 : f32 to vector<8x128xf32>
    %207 = arith.mulf %157, %206 : vector<8x128xf32>
    %208 = arith.addf %202, %207 : vector<8x128xf32>
    %209 = vector.broadcast %25 : f32 to vector<8x128xf32>
    %210 = arith.mulf %154, %209 : vector<8x128xf32>
    %211 = arith.addf %205, %210 : vector<8x128xf32>
    %212 = vector.broadcast %25 : f32 to vector<8x128xf32>
    %213 = arith.mulf %158, %212 : vector<8x128xf32>
    %214 = arith.addf %208, %213 : vector<8x128xf32>
    %cst_87 = arith.constant 0.000000e+00 : f32
    %215 = vector.broadcast %cst_87 : f32 to vector<8x128xf32>
    %216 = arith.maximumf %211, %215 : vector<8x128xf32>
    %cst_88 = arith.constant 0.000000e+00 : f32
    %217 = vector.broadcast %cst_88 : f32 to vector<8x128xf32>
    %218 = arith.maximumf %214, %217 : vector<8x128xf32>
    %219 = vector.broadcast %2 : f32 to vector<8x128xf32>
    %220 = arith.mulf %151, %219 : vector<8x128xf32>
    %221 = vector.broadcast %34 : f32 to vector<8x128xf32>
    %222 = arith.addf %220, %221 : vector<8x128xf32>
    %223 = vector.broadcast %2 : f32 to vector<8x128xf32>
    %224 = arith.mulf %155, %223 : vector<8x128xf32>
    %225 = vector.broadcast %34 : f32 to vector<8x128xf32>
    %226 = arith.addf %224, %225 : vector<8x128xf32>
    %227 = vector.broadcast %10 : f32 to vector<8x128xf32>
    %228 = arith.mulf %152, %227 : vector<8x128xf32>
    %229 = arith.addf %222, %228 : vector<8x128xf32>
    %230 = vector.broadcast %10 : f32 to vector<8x128xf32>
    %231 = arith.mulf %156, %230 : vector<8x128xf32>
    %232 = arith.addf %226, %231 : vector<8x128xf32>
    %233 = vector.broadcast %18 : f32 to vector<8x128xf32>
    %234 = arith.mulf %153, %233 : vector<8x128xf32>
    %235 = arith.addf %229, %234 : vector<8x128xf32>
    %236 = vector.broadcast %18 : f32 to vector<8x128xf32>
    %237 = arith.mulf %157, %236 : vector<8x128xf32>
    %238 = arith.addf %232, %237 : vector<8x128xf32>
    %239 = vector.broadcast %26 : f32 to vector<8x128xf32>
    %240 = arith.mulf %154, %239 : vector<8x128xf32>
    %241 = arith.addf %235, %240 : vector<8x128xf32>
    %242 = vector.broadcast %26 : f32 to vector<8x128xf32>
    %243 = arith.mulf %158, %242 : vector<8x128xf32>
    %244 = arith.addf %238, %243 : vector<8x128xf32>
    %cst_89 = arith.constant 0.000000e+00 : f32
    %245 = vector.broadcast %cst_89 : f32 to vector<8x128xf32>
    %246 = arith.maximumf %241, %245 : vector<8x128xf32>
    %cst_90 = arith.constant 0.000000e+00 : f32
    %247 = vector.broadcast %cst_90 : f32 to vector<8x128xf32>
    %248 = arith.maximumf %244, %247 : vector<8x128xf32>
    %249 = vector.broadcast %3 : f32 to vector<8x128xf32>
    %250 = arith.mulf %151, %249 : vector<8x128xf32>
    %251 = vector.broadcast %35 : f32 to vector<8x128xf32>
    %252 = arith.addf %250, %251 : vector<8x128xf32>
    %253 = vector.broadcast %3 : f32 to vector<8x128xf32>
    %254 = arith.mulf %155, %253 : vector<8x128xf32>
    %255 = vector.broadcast %35 : f32 to vector<8x128xf32>
    %256 = arith.addf %254, %255 : vector<8x128xf32>
    %257 = vector.broadcast %11 : f32 to vector<8x128xf32>
    %258 = arith.mulf %152, %257 : vector<8x128xf32>
    %259 = arith.addf %252, %258 : vector<8x128xf32>
    %260 = vector.broadcast %11 : f32 to vector<8x128xf32>
    %261 = arith.mulf %156, %260 : vector<8x128xf32>
    %262 = arith.addf %256, %261 : vector<8x128xf32>
    %263 = vector.broadcast %19 : f32 to vector<8x128xf32>
    %264 = arith.mulf %153, %263 : vector<8x128xf32>
    %265 = arith.addf %259, %264 : vector<8x128xf32>
    %266 = vector.broadcast %19 : f32 to vector<8x128xf32>
    %267 = arith.mulf %157, %266 : vector<8x128xf32>
    %268 = arith.addf %262, %267 : vector<8x128xf32>
    %269 = vector.broadcast %27 : f32 to vector<8x128xf32>
    %270 = arith.mulf %154, %269 : vector<8x128xf32>
    %271 = arith.addf %265, %270 : vector<8x128xf32>
    %272 = vector.broadcast %27 : f32 to vector<8x128xf32>
    %273 = arith.mulf %158, %272 : vector<8x128xf32>
    %274 = arith.addf %268, %273 : vector<8x128xf32>
    %cst_91 = arith.constant 0.000000e+00 : f32
    %275 = vector.broadcast %cst_91 : f32 to vector<8x128xf32>
    %276 = arith.maximumf %271, %275 : vector<8x128xf32>
    %cst_92 = arith.constant 0.000000e+00 : f32
    %277 = vector.broadcast %cst_92 : f32 to vector<8x128xf32>
    %278 = arith.maximumf %274, %277 : vector<8x128xf32>
    %279 = vector.broadcast %4 : f32 to vector<8x128xf32>
    %280 = arith.mulf %151, %279 : vector<8x128xf32>
    %281 = vector.broadcast %36 : f32 to vector<8x128xf32>
    %282 = arith.addf %280, %281 : vector<8x128xf32>
    %283 = vector.broadcast %4 : f32 to vector<8x128xf32>
    %284 = arith.mulf %155, %283 : vector<8x128xf32>
    %285 = vector.broadcast %36 : f32 to vector<8x128xf32>
    %286 = arith.addf %284, %285 : vector<8x128xf32>
    %287 = vector.broadcast %12 : f32 to vector<8x128xf32>
    %288 = arith.mulf %152, %287 : vector<8x128xf32>
    %289 = arith.addf %282, %288 : vector<8x128xf32>
    %290 = vector.broadcast %12 : f32 to vector<8x128xf32>
    %291 = arith.mulf %156, %290 : vector<8x128xf32>
    %292 = arith.addf %286, %291 : vector<8x128xf32>
    %293 = vector.broadcast %20 : f32 to vector<8x128xf32>
    %294 = arith.mulf %153, %293 : vector<8x128xf32>
    %295 = arith.addf %289, %294 : vector<8x128xf32>
    %296 = vector.broadcast %20 : f32 to vector<8x128xf32>
    %297 = arith.mulf %157, %296 : vector<8x128xf32>
    %298 = arith.addf %292, %297 : vector<8x128xf32>
    %299 = vector.broadcast %28 : f32 to vector<8x128xf32>
    %300 = arith.mulf %154, %299 : vector<8x128xf32>
    %301 = arith.addf %295, %300 : vector<8x128xf32>
    %302 = vector.broadcast %28 : f32 to vector<8x128xf32>
    %303 = arith.mulf %158, %302 : vector<8x128xf32>
    %304 = arith.addf %298, %303 : vector<8x128xf32>
    %cst_93 = arith.constant 0.000000e+00 : f32
    %305 = vector.broadcast %cst_93 : f32 to vector<8x128xf32>
    %306 = arith.maximumf %301, %305 : vector<8x128xf32>
    %cst_94 = arith.constant 0.000000e+00 : f32
    %307 = vector.broadcast %cst_94 : f32 to vector<8x128xf32>
    %308 = arith.maximumf %304, %307 : vector<8x128xf32>
    %309 = vector.broadcast %5 : f32 to vector<8x128xf32>
    %310 = arith.mulf %151, %309 : vector<8x128xf32>
    %311 = vector.broadcast %37 : f32 to vector<8x128xf32>
    %312 = arith.addf %310, %311 : vector<8x128xf32>
    %313 = vector.broadcast %5 : f32 to vector<8x128xf32>
    %314 = arith.mulf %155, %313 : vector<8x128xf32>
    %315 = vector.broadcast %37 : f32 to vector<8x128xf32>
    %316 = arith.addf %314, %315 : vector<8x128xf32>
    %317 = vector.broadcast %13 : f32 to vector<8x128xf32>
    %318 = arith.mulf %152, %317 : vector<8x128xf32>
    %319 = arith.addf %312, %318 : vector<8x128xf32>
    %320 = vector.broadcast %13 : f32 to vector<8x128xf32>
    %321 = arith.mulf %156, %320 : vector<8x128xf32>
    %322 = arith.addf %316, %321 : vector<8x128xf32>
    %323 = vector.broadcast %21 : f32 to vector<8x128xf32>
    %324 = arith.mulf %153, %323 : vector<8x128xf32>
    %325 = arith.addf %319, %324 : vector<8x128xf32>
    %326 = vector.broadcast %21 : f32 to vector<8x128xf32>
    %327 = arith.mulf %157, %326 : vector<8x128xf32>
    %328 = arith.addf %322, %327 : vector<8x128xf32>
    %329 = vector.broadcast %29 : f32 to vector<8x128xf32>
    %330 = arith.mulf %154, %329 : vector<8x128xf32>
    %331 = arith.addf %325, %330 : vector<8x128xf32>
    %332 = vector.broadcast %29 : f32 to vector<8x128xf32>
    %333 = arith.mulf %158, %332 : vector<8x128xf32>
    %334 = arith.addf %328, %333 : vector<8x128xf32>
    %cst_95 = arith.constant 0.000000e+00 : f32
    %335 = vector.broadcast %cst_95 : f32 to vector<8x128xf32>
    %336 = arith.maximumf %331, %335 : vector<8x128xf32>
    %cst_96 = arith.constant 0.000000e+00 : f32
    %337 = vector.broadcast %cst_96 : f32 to vector<8x128xf32>
    %338 = arith.maximumf %334, %337 : vector<8x128xf32>
    %339 = vector.broadcast %6 : f32 to vector<8x128xf32>
    %340 = arith.mulf %151, %339 : vector<8x128xf32>
    %341 = vector.broadcast %38 : f32 to vector<8x128xf32>
    %342 = arith.addf %340, %341 : vector<8x128xf32>
    %343 = vector.broadcast %6 : f32 to vector<8x128xf32>
    %344 = arith.mulf %155, %343 : vector<8x128xf32>
    %345 = vector.broadcast %38 : f32 to vector<8x128xf32>
    %346 = arith.addf %344, %345 : vector<8x128xf32>
    %347 = vector.broadcast %14 : f32 to vector<8x128xf32>
    %348 = arith.mulf %152, %347 : vector<8x128xf32>
    %349 = arith.addf %342, %348 : vector<8x128xf32>
    %350 = vector.broadcast %14 : f32 to vector<8x128xf32>
    %351 = arith.mulf %156, %350 : vector<8x128xf32>
    %352 = arith.addf %346, %351 : vector<8x128xf32>
    %353 = vector.broadcast %22 : f32 to vector<8x128xf32>
    %354 = arith.mulf %153, %353 : vector<8x128xf32>
    %355 = arith.addf %349, %354 : vector<8x128xf32>
    %356 = vector.broadcast %22 : f32 to vector<8x128xf32>
    %357 = arith.mulf %157, %356 : vector<8x128xf32>
    %358 = arith.addf %352, %357 : vector<8x128xf32>
    %359 = vector.broadcast %30 : f32 to vector<8x128xf32>
    %360 = arith.mulf %154, %359 : vector<8x128xf32>
    %361 = arith.addf %355, %360 : vector<8x128xf32>
    %362 = vector.broadcast %30 : f32 to vector<8x128xf32>
    %363 = arith.mulf %158, %362 : vector<8x128xf32>
    %364 = arith.addf %358, %363 : vector<8x128xf32>
    %cst_97 = arith.constant 0.000000e+00 : f32
    %365 = vector.broadcast %cst_97 : f32 to vector<8x128xf32>
    %366 = arith.maximumf %361, %365 : vector<8x128xf32>
    %cst_98 = arith.constant 0.000000e+00 : f32
    %367 = vector.broadcast %cst_98 : f32 to vector<8x128xf32>
    %368 = arith.maximumf %364, %367 : vector<8x128xf32>
    %369 = vector.broadcast %7 : f32 to vector<8x128xf32>
    %370 = arith.mulf %151, %369 : vector<8x128xf32>
    %371 = vector.broadcast %39 : f32 to vector<8x128xf32>
    %372 = arith.addf %370, %371 : vector<8x128xf32>
    %373 = vector.broadcast %7 : f32 to vector<8x128xf32>
    %374 = arith.mulf %155, %373 : vector<8x128xf32>
    %375 = vector.broadcast %39 : f32 to vector<8x128xf32>
    %376 = arith.addf %374, %375 : vector<8x128xf32>
    %377 = vector.broadcast %15 : f32 to vector<8x128xf32>
    %378 = arith.mulf %152, %377 : vector<8x128xf32>
    %379 = arith.addf %372, %378 : vector<8x128xf32>
    %380 = vector.broadcast %15 : f32 to vector<8x128xf32>
    %381 = arith.mulf %156, %380 : vector<8x128xf32>
    %382 = arith.addf %376, %381 : vector<8x128xf32>
    %383 = vector.broadcast %23 : f32 to vector<8x128xf32>
    %384 = arith.mulf %153, %383 : vector<8x128xf32>
    %385 = arith.addf %379, %384 : vector<8x128xf32>
    %386 = vector.broadcast %23 : f32 to vector<8x128xf32>
    %387 = arith.mulf %157, %386 : vector<8x128xf32>
    %388 = arith.addf %382, %387 : vector<8x128xf32>
    %389 = vector.broadcast %31 : f32 to vector<8x128xf32>
    %390 = arith.mulf %154, %389 : vector<8x128xf32>
    %391 = arith.addf %385, %390 : vector<8x128xf32>
    %392 = vector.broadcast %31 : f32 to vector<8x128xf32>
    %393 = arith.mulf %158, %392 : vector<8x128xf32>
    %394 = arith.addf %388, %393 : vector<8x128xf32>
    %cst_99 = arith.constant 0.000000e+00 : f32
    %395 = vector.broadcast %cst_99 : f32 to vector<8x128xf32>
    %396 = arith.maximumf %391, %395 : vector<8x128xf32>
    %cst_100 = arith.constant 0.000000e+00 : f32
    %397 = vector.broadcast %cst_100 : f32 to vector<8x128xf32>
    %398 = arith.maximumf %394, %397 : vector<8x128xf32>
    %399 = vector.broadcast %40 : f32 to vector<8x128xf32>
    %400 = arith.mulf %186, %399 : vector<8x128xf32>
    %401 = vector.broadcast %104 : f32 to vector<8x128xf32>
    %402 = arith.addf %400, %401 : vector<8x128xf32>
    %403 = vector.broadcast %40 : f32 to vector<8x128xf32>
    %404 = arith.mulf %188, %403 : vector<8x128xf32>
    %405 = vector.broadcast %104 : f32 to vector<8x128xf32>
    %406 = arith.addf %404, %405 : vector<8x128xf32>
    %407 = vector.broadcast %48 : f32 to vector<8x128xf32>
    %408 = arith.mulf %216, %407 : vector<8x128xf32>
    %409 = arith.addf %402, %408 : vector<8x128xf32>
    %410 = vector.broadcast %48 : f32 to vector<8x128xf32>
    %411 = arith.mulf %218, %410 : vector<8x128xf32>
    %412 = arith.addf %406, %411 : vector<8x128xf32>
    %413 = vector.broadcast %56 : f32 to vector<8x128xf32>
    %414 = arith.mulf %246, %413 : vector<8x128xf32>
    %415 = arith.addf %409, %414 : vector<8x128xf32>
    %416 = vector.broadcast %56 : f32 to vector<8x128xf32>
    %417 = arith.mulf %248, %416 : vector<8x128xf32>
    %418 = arith.addf %412, %417 : vector<8x128xf32>
    %419 = vector.broadcast %64 : f32 to vector<8x128xf32>
    %420 = arith.mulf %276, %419 : vector<8x128xf32>
    %421 = arith.addf %415, %420 : vector<8x128xf32>
    %422 = vector.broadcast %64 : f32 to vector<8x128xf32>
    %423 = arith.mulf %278, %422 : vector<8x128xf32>
    %424 = arith.addf %418, %423 : vector<8x128xf32>
    %425 = vector.broadcast %72 : f32 to vector<8x128xf32>
    %426 = arith.mulf %306, %425 : vector<8x128xf32>
    %427 = arith.addf %421, %426 : vector<8x128xf32>
    %428 = vector.broadcast %72 : f32 to vector<8x128xf32>
    %429 = arith.mulf %308, %428 : vector<8x128xf32>
    %430 = arith.addf %424, %429 : vector<8x128xf32>
    %431 = vector.broadcast %80 : f32 to vector<8x128xf32>
    %432 = arith.mulf %336, %431 : vector<8x128xf32>
    %433 = arith.addf %427, %432 : vector<8x128xf32>
    %434 = vector.broadcast %80 : f32 to vector<8x128xf32>
    %435 = arith.mulf %338, %434 : vector<8x128xf32>
    %436 = arith.addf %430, %435 : vector<8x128xf32>
    %437 = vector.broadcast %88 : f32 to vector<8x128xf32>
    %438 = arith.mulf %366, %437 : vector<8x128xf32>
    %439 = arith.addf %433, %438 : vector<8x128xf32>
    %440 = vector.broadcast %88 : f32 to vector<8x128xf32>
    %441 = arith.mulf %368, %440 : vector<8x128xf32>
    %442 = arith.addf %436, %441 : vector<8x128xf32>
    %443 = vector.broadcast %96 : f32 to vector<8x128xf32>
    %444 = arith.mulf %396, %443 : vector<8x128xf32>
    %445 = arith.addf %439, %444 : vector<8x128xf32>
    %446 = vector.broadcast %96 : f32 to vector<8x128xf32>
    %447 = arith.mulf %398, %446 : vector<8x128xf32>
    %448 = arith.addf %442, %447 : vector<8x128xf32>
    %cst_101 = arith.constant 0.000000e+00 : f32
    %449 = vector.broadcast %cst_101 : f32 to vector<8x128xf32>
    %450 = arith.maximumf %445, %449 : vector<8x128xf32>
    %cst_102 = arith.constant 0.000000e+00 : f32
    %451 = vector.broadcast %cst_102 : f32 to vector<8x128xf32>
    %452 = arith.maximumf %448, %451 : vector<8x128xf32>
    %453 = vector.broadcast %41 : f32 to vector<8x128xf32>
    %454 = arith.mulf %186, %453 : vector<8x128xf32>
    %455 = vector.broadcast %105 : f32 to vector<8x128xf32>
    %456 = arith.addf %454, %455 : vector<8x128xf32>
    %457 = vector.broadcast %41 : f32 to vector<8x128xf32>
    %458 = arith.mulf %188, %457 : vector<8x128xf32>
    %459 = vector.broadcast %105 : f32 to vector<8x128xf32>
    %460 = arith.addf %458, %459 : vector<8x128xf32>
    %461 = vector.broadcast %49 : f32 to vector<8x128xf32>
    %462 = arith.mulf %216, %461 : vector<8x128xf32>
    %463 = arith.addf %456, %462 : vector<8x128xf32>
    %464 = vector.broadcast %49 : f32 to vector<8x128xf32>
    %465 = arith.mulf %218, %464 : vector<8x128xf32>
    %466 = arith.addf %460, %465 : vector<8x128xf32>
    %467 = vector.broadcast %57 : f32 to vector<8x128xf32>
    %468 = arith.mulf %246, %467 : vector<8x128xf32>
    %469 = arith.addf %463, %468 : vector<8x128xf32>
    %470 = vector.broadcast %57 : f32 to vector<8x128xf32>
    %471 = arith.mulf %248, %470 : vector<8x128xf32>
    %472 = arith.addf %466, %471 : vector<8x128xf32>
    %473 = vector.broadcast %65 : f32 to vector<8x128xf32>
    %474 = arith.mulf %276, %473 : vector<8x128xf32>
    %475 = arith.addf %469, %474 : vector<8x128xf32>
    %476 = vector.broadcast %65 : f32 to vector<8x128xf32>
    %477 = arith.mulf %278, %476 : vector<8x128xf32>
    %478 = arith.addf %472, %477 : vector<8x128xf32>
    %479 = vector.broadcast %73 : f32 to vector<8x128xf32>
    %480 = arith.mulf %306, %479 : vector<8x128xf32>
    %481 = arith.addf %475, %480 : vector<8x128xf32>
    %482 = vector.broadcast %73 : f32 to vector<8x128xf32>
    %483 = arith.mulf %308, %482 : vector<8x128xf32>
    %484 = arith.addf %478, %483 : vector<8x128xf32>
    %485 = vector.broadcast %81 : f32 to vector<8x128xf32>
    %486 = arith.mulf %336, %485 : vector<8x128xf32>
    %487 = arith.addf %481, %486 : vector<8x128xf32>
    %488 = vector.broadcast %81 : f32 to vector<8x128xf32>
    %489 = arith.mulf %338, %488 : vector<8x128xf32>
    %490 = arith.addf %484, %489 : vector<8x128xf32>
    %491 = vector.broadcast %89 : f32 to vector<8x128xf32>
    %492 = arith.mulf %366, %491 : vector<8x128xf32>
    %493 = arith.addf %487, %492 : vector<8x128xf32>
    %494 = vector.broadcast %89 : f32 to vector<8x128xf32>
    %495 = arith.mulf %368, %494 : vector<8x128xf32>
    %496 = arith.addf %490, %495 : vector<8x128xf32>
    %497 = vector.broadcast %97 : f32 to vector<8x128xf32>
    %498 = arith.mulf %396, %497 : vector<8x128xf32>
    %499 = arith.addf %493, %498 : vector<8x128xf32>
    %500 = vector.broadcast %97 : f32 to vector<8x128xf32>
    %501 = arith.mulf %398, %500 : vector<8x128xf32>
    %502 = arith.addf %496, %501 : vector<8x128xf32>
    %cst_103 = arith.constant 0.000000e+00 : f32
    %503 = vector.broadcast %cst_103 : f32 to vector<8x128xf32>
    %504 = arith.maximumf %499, %503 : vector<8x128xf32>
    %cst_104 = arith.constant 0.000000e+00 : f32
    %505 = vector.broadcast %cst_104 : f32 to vector<8x128xf32>
    %506 = arith.maximumf %502, %505 : vector<8x128xf32>
    %507 = vector.broadcast %42 : f32 to vector<8x128xf32>
    %508 = arith.mulf %186, %507 : vector<8x128xf32>
    %509 = vector.broadcast %106 : f32 to vector<8x128xf32>
    %510 = arith.addf %508, %509 : vector<8x128xf32>
    %511 = vector.broadcast %42 : f32 to vector<8x128xf32>
    %512 = arith.mulf %188, %511 : vector<8x128xf32>
    %513 = vector.broadcast %106 : f32 to vector<8x128xf32>
    %514 = arith.addf %512, %513 : vector<8x128xf32>
    %515 = vector.broadcast %50 : f32 to vector<8x128xf32>
    %516 = arith.mulf %216, %515 : vector<8x128xf32>
    %517 = arith.addf %510, %516 : vector<8x128xf32>
    %518 = vector.broadcast %50 : f32 to vector<8x128xf32>
    %519 = arith.mulf %218, %518 : vector<8x128xf32>
    %520 = arith.addf %514, %519 : vector<8x128xf32>
    %521 = vector.broadcast %58 : f32 to vector<8x128xf32>
    %522 = arith.mulf %246, %521 : vector<8x128xf32>
    %523 = arith.addf %517, %522 : vector<8x128xf32>
    %524 = vector.broadcast %58 : f32 to vector<8x128xf32>
    %525 = arith.mulf %248, %524 : vector<8x128xf32>
    %526 = arith.addf %520, %525 : vector<8x128xf32>
    %527 = vector.broadcast %66 : f32 to vector<8x128xf32>
    %528 = arith.mulf %276, %527 : vector<8x128xf32>
    %529 = arith.addf %523, %528 : vector<8x128xf32>
    %530 = vector.broadcast %66 : f32 to vector<8x128xf32>
    %531 = arith.mulf %278, %530 : vector<8x128xf32>
    %532 = arith.addf %526, %531 : vector<8x128xf32>
    %533 = vector.broadcast %74 : f32 to vector<8x128xf32>
    %534 = arith.mulf %306, %533 : vector<8x128xf32>
    %535 = arith.addf %529, %534 : vector<8x128xf32>
    %536 = vector.broadcast %74 : f32 to vector<8x128xf32>
    %537 = arith.mulf %308, %536 : vector<8x128xf32>
    %538 = arith.addf %532, %537 : vector<8x128xf32>
    %539 = vector.broadcast %82 : f32 to vector<8x128xf32>
    %540 = arith.mulf %336, %539 : vector<8x128xf32>
    %541 = arith.addf %535, %540 : vector<8x128xf32>
    %542 = vector.broadcast %82 : f32 to vector<8x128xf32>
    %543 = arith.mulf %338, %542 : vector<8x128xf32>
    %544 = arith.addf %538, %543 : vector<8x128xf32>
    %545 = vector.broadcast %90 : f32 to vector<8x128xf32>
    %546 = arith.mulf %366, %545 : vector<8x128xf32>
    %547 = arith.addf %541, %546 : vector<8x128xf32>
    %548 = vector.broadcast %90 : f32 to vector<8x128xf32>
    %549 = arith.mulf %368, %548 : vector<8x128xf32>
    %550 = arith.addf %544, %549 : vector<8x128xf32>
    %551 = vector.broadcast %98 : f32 to vector<8x128xf32>
    %552 = arith.mulf %396, %551 : vector<8x128xf32>
    %553 = arith.addf %547, %552 : vector<8x128xf32>
    %554 = vector.broadcast %98 : f32 to vector<8x128xf32>
    %555 = arith.mulf %398, %554 : vector<8x128xf32>
    %556 = arith.addf %550, %555 : vector<8x128xf32>
    %cst_105 = arith.constant 0.000000e+00 : f32
    %557 = vector.broadcast %cst_105 : f32 to vector<8x128xf32>
    %558 = arith.maximumf %553, %557 : vector<8x128xf32>
    %cst_106 = arith.constant 0.000000e+00 : f32
    %559 = vector.broadcast %cst_106 : f32 to vector<8x128xf32>
    %560 = arith.maximumf %556, %559 : vector<8x128xf32>
    %561 = vector.broadcast %43 : f32 to vector<8x128xf32>
    %562 = arith.mulf %186, %561 : vector<8x128xf32>
    %563 = vector.broadcast %107 : f32 to vector<8x128xf32>
    %564 = arith.addf %562, %563 : vector<8x128xf32>
    %565 = vector.broadcast %43 : f32 to vector<8x128xf32>
    %566 = arith.mulf %188, %565 : vector<8x128xf32>
    %567 = vector.broadcast %107 : f32 to vector<8x128xf32>
    %568 = arith.addf %566, %567 : vector<8x128xf32>
    %569 = vector.broadcast %51 : f32 to vector<8x128xf32>
    %570 = arith.mulf %216, %569 : vector<8x128xf32>
    %571 = arith.addf %564, %570 : vector<8x128xf32>
    %572 = vector.broadcast %51 : f32 to vector<8x128xf32>
    %573 = arith.mulf %218, %572 : vector<8x128xf32>
    %574 = arith.addf %568, %573 : vector<8x128xf32>
    %575 = vector.broadcast %59 : f32 to vector<8x128xf32>
    %576 = arith.mulf %246, %575 : vector<8x128xf32>
    %577 = arith.addf %571, %576 : vector<8x128xf32>
    %578 = vector.broadcast %59 : f32 to vector<8x128xf32>
    %579 = arith.mulf %248, %578 : vector<8x128xf32>
    %580 = arith.addf %574, %579 : vector<8x128xf32>
    %581 = vector.broadcast %67 : f32 to vector<8x128xf32>
    %582 = arith.mulf %276, %581 : vector<8x128xf32>
    %583 = arith.addf %577, %582 : vector<8x128xf32>
    %584 = vector.broadcast %67 : f32 to vector<8x128xf32>
    %585 = arith.mulf %278, %584 : vector<8x128xf32>
    %586 = arith.addf %580, %585 : vector<8x128xf32>
    %587 = vector.broadcast %75 : f32 to vector<8x128xf32>
    %588 = arith.mulf %306, %587 : vector<8x128xf32>
    %589 = arith.addf %583, %588 : vector<8x128xf32>
    %590 = vector.broadcast %75 : f32 to vector<8x128xf32>
    %591 = arith.mulf %308, %590 : vector<8x128xf32>
    %592 = arith.addf %586, %591 : vector<8x128xf32>
    %593 = vector.broadcast %83 : f32 to vector<8x128xf32>
    %594 = arith.mulf %336, %593 : vector<8x128xf32>
    %595 = arith.addf %589, %594 : vector<8x128xf32>
    %596 = vector.broadcast %83 : f32 to vector<8x128xf32>
    %597 = arith.mulf %338, %596 : vector<8x128xf32>
    %598 = arith.addf %592, %597 : vector<8x128xf32>
    %599 = vector.broadcast %91 : f32 to vector<8x128xf32>
    %600 = arith.mulf %366, %599 : vector<8x128xf32>
    %601 = arith.addf %595, %600 : vector<8x128xf32>
    %602 = vector.broadcast %91 : f32 to vector<8x128xf32>
    %603 = arith.mulf %368, %602 : vector<8x128xf32>
    %604 = arith.addf %598, %603 : vector<8x128xf32>
    %605 = vector.broadcast %99 : f32 to vector<8x128xf32>
    %606 = arith.mulf %396, %605 : vector<8x128xf32>
    %607 = arith.addf %601, %606 : vector<8x128xf32>
    %608 = vector.broadcast %99 : f32 to vector<8x128xf32>
    %609 = arith.mulf %398, %608 : vector<8x128xf32>
    %610 = arith.addf %604, %609 : vector<8x128xf32>
    %cst_107 = arith.constant 0.000000e+00 : f32
    %611 = vector.broadcast %cst_107 : f32 to vector<8x128xf32>
    %612 = arith.maximumf %607, %611 : vector<8x128xf32>
    %cst_108 = arith.constant 0.000000e+00 : f32
    %613 = vector.broadcast %cst_108 : f32 to vector<8x128xf32>
    %614 = arith.maximumf %610, %613 : vector<8x128xf32>
    %615 = vector.broadcast %44 : f32 to vector<8x128xf32>
    %616 = arith.mulf %186, %615 : vector<8x128xf32>
    %617 = vector.broadcast %108 : f32 to vector<8x128xf32>
    %618 = arith.addf %616, %617 : vector<8x128xf32>
    %619 = vector.broadcast %44 : f32 to vector<8x128xf32>
    %620 = arith.mulf %188, %619 : vector<8x128xf32>
    %621 = vector.broadcast %108 : f32 to vector<8x128xf32>
    %622 = arith.addf %620, %621 : vector<8x128xf32>
    %623 = vector.broadcast %52 : f32 to vector<8x128xf32>
    %624 = arith.mulf %216, %623 : vector<8x128xf32>
    %625 = arith.addf %618, %624 : vector<8x128xf32>
    %626 = vector.broadcast %52 : f32 to vector<8x128xf32>
    %627 = arith.mulf %218, %626 : vector<8x128xf32>
    %628 = arith.addf %622, %627 : vector<8x128xf32>
    %629 = vector.broadcast %60 : f32 to vector<8x128xf32>
    %630 = arith.mulf %246, %629 : vector<8x128xf32>
    %631 = arith.addf %625, %630 : vector<8x128xf32>
    %632 = vector.broadcast %60 : f32 to vector<8x128xf32>
    %633 = arith.mulf %248, %632 : vector<8x128xf32>
    %634 = arith.addf %628, %633 : vector<8x128xf32>
    %635 = vector.broadcast %68 : f32 to vector<8x128xf32>
    %636 = arith.mulf %276, %635 : vector<8x128xf32>
    %637 = arith.addf %631, %636 : vector<8x128xf32>
    %638 = vector.broadcast %68 : f32 to vector<8x128xf32>
    %639 = arith.mulf %278, %638 : vector<8x128xf32>
    %640 = arith.addf %634, %639 : vector<8x128xf32>
    %641 = vector.broadcast %76 : f32 to vector<8x128xf32>
    %642 = arith.mulf %306, %641 : vector<8x128xf32>
    %643 = arith.addf %637, %642 : vector<8x128xf32>
    %644 = vector.broadcast %76 : f32 to vector<8x128xf32>
    %645 = arith.mulf %308, %644 : vector<8x128xf32>
    %646 = arith.addf %640, %645 : vector<8x128xf32>
    %647 = vector.broadcast %84 : f32 to vector<8x128xf32>
    %648 = arith.mulf %336, %647 : vector<8x128xf32>
    %649 = arith.addf %643, %648 : vector<8x128xf32>
    %650 = vector.broadcast %84 : f32 to vector<8x128xf32>
    %651 = arith.mulf %338, %650 : vector<8x128xf32>
    %652 = arith.addf %646, %651 : vector<8x128xf32>
    %653 = vector.broadcast %92 : f32 to vector<8x128xf32>
    %654 = arith.mulf %366, %653 : vector<8x128xf32>
    %655 = arith.addf %649, %654 : vector<8x128xf32>
    %656 = vector.broadcast %92 : f32 to vector<8x128xf32>
    %657 = arith.mulf %368, %656 : vector<8x128xf32>
    %658 = arith.addf %652, %657 : vector<8x128xf32>
    %659 = vector.broadcast %100 : f32 to vector<8x128xf32>
    %660 = arith.mulf %396, %659 : vector<8x128xf32>
    %661 = arith.addf %655, %660 : vector<8x128xf32>
    %662 = vector.broadcast %100 : f32 to vector<8x128xf32>
    %663 = arith.mulf %398, %662 : vector<8x128xf32>
    %664 = arith.addf %658, %663 : vector<8x128xf32>
    %cst_109 = arith.constant 0.000000e+00 : f32
    %665 = vector.broadcast %cst_109 : f32 to vector<8x128xf32>
    %666 = arith.maximumf %661, %665 : vector<8x128xf32>
    %cst_110 = arith.constant 0.000000e+00 : f32
    %667 = vector.broadcast %cst_110 : f32 to vector<8x128xf32>
    %668 = arith.maximumf %664, %667 : vector<8x128xf32>
    %669 = vector.broadcast %45 : f32 to vector<8x128xf32>
    %670 = arith.mulf %186, %669 : vector<8x128xf32>
    %671 = vector.broadcast %109 : f32 to vector<8x128xf32>
    %672 = arith.addf %670, %671 : vector<8x128xf32>
    %673 = vector.broadcast %45 : f32 to vector<8x128xf32>
    %674 = arith.mulf %188, %673 : vector<8x128xf32>
    %675 = vector.broadcast %109 : f32 to vector<8x128xf32>
    %676 = arith.addf %674, %675 : vector<8x128xf32>
    %677 = vector.broadcast %53 : f32 to vector<8x128xf32>
    %678 = arith.mulf %216, %677 : vector<8x128xf32>
    %679 = arith.addf %672, %678 : vector<8x128xf32>
    %680 = vector.broadcast %53 : f32 to vector<8x128xf32>
    %681 = arith.mulf %218, %680 : vector<8x128xf32>
    %682 = arith.addf %676, %681 : vector<8x128xf32>
    %683 = vector.broadcast %61 : f32 to vector<8x128xf32>
    %684 = arith.mulf %246, %683 : vector<8x128xf32>
    %685 = arith.addf %679, %684 : vector<8x128xf32>
    %686 = vector.broadcast %61 : f32 to vector<8x128xf32>
    %687 = arith.mulf %248, %686 : vector<8x128xf32>
    %688 = arith.addf %682, %687 : vector<8x128xf32>
    %689 = vector.broadcast %69 : f32 to vector<8x128xf32>
    %690 = arith.mulf %276, %689 : vector<8x128xf32>
    %691 = arith.addf %685, %690 : vector<8x128xf32>
    %692 = vector.broadcast %69 : f32 to vector<8x128xf32>
    %693 = arith.mulf %278, %692 : vector<8x128xf32>
    %694 = arith.addf %688, %693 : vector<8x128xf32>
    %695 = vector.broadcast %77 : f32 to vector<8x128xf32>
    %696 = arith.mulf %306, %695 : vector<8x128xf32>
    %697 = arith.addf %691, %696 : vector<8x128xf32>
    %698 = vector.broadcast %77 : f32 to vector<8x128xf32>
    %699 = arith.mulf %308, %698 : vector<8x128xf32>
    %700 = arith.addf %694, %699 : vector<8x128xf32>
    %701 = vector.broadcast %85 : f32 to vector<8x128xf32>
    %702 = arith.mulf %336, %701 : vector<8x128xf32>
    %703 = arith.addf %697, %702 : vector<8x128xf32>
    %704 = vector.broadcast %85 : f32 to vector<8x128xf32>
    %705 = arith.mulf %338, %704 : vector<8x128xf32>
    %706 = arith.addf %700, %705 : vector<8x128xf32>
    %707 = vector.broadcast %93 : f32 to vector<8x128xf32>
    %708 = arith.mulf %366, %707 : vector<8x128xf32>
    %709 = arith.addf %703, %708 : vector<8x128xf32>
    %710 = vector.broadcast %93 : f32 to vector<8x128xf32>
    %711 = arith.mulf %368, %710 : vector<8x128xf32>
    %712 = arith.addf %706, %711 : vector<8x128xf32>
    %713 = vector.broadcast %101 : f32 to vector<8x128xf32>
    %714 = arith.mulf %396, %713 : vector<8x128xf32>
    %715 = arith.addf %709, %714 : vector<8x128xf32>
    %716 = vector.broadcast %101 : f32 to vector<8x128xf32>
    %717 = arith.mulf %398, %716 : vector<8x128xf32>
    %718 = arith.addf %712, %717 : vector<8x128xf32>
    %cst_111 = arith.constant 0.000000e+00 : f32
    %719 = vector.broadcast %cst_111 : f32 to vector<8x128xf32>
    %720 = arith.maximumf %715, %719 : vector<8x128xf32>
    %cst_112 = arith.constant 0.000000e+00 : f32
    %721 = vector.broadcast %cst_112 : f32 to vector<8x128xf32>
    %722 = arith.maximumf %718, %721 : vector<8x128xf32>
    %723 = vector.broadcast %46 : f32 to vector<8x128xf32>
    %724 = arith.mulf %186, %723 : vector<8x128xf32>
    %725 = vector.broadcast %110 : f32 to vector<8x128xf32>
    %726 = arith.addf %724, %725 : vector<8x128xf32>
    %727 = vector.broadcast %46 : f32 to vector<8x128xf32>
    %728 = arith.mulf %188, %727 : vector<8x128xf32>
    %729 = vector.broadcast %110 : f32 to vector<8x128xf32>
    %730 = arith.addf %728, %729 : vector<8x128xf32>
    %731 = vector.broadcast %54 : f32 to vector<8x128xf32>
    %732 = arith.mulf %216, %731 : vector<8x128xf32>
    %733 = arith.addf %726, %732 : vector<8x128xf32>
    %734 = vector.broadcast %54 : f32 to vector<8x128xf32>
    %735 = arith.mulf %218, %734 : vector<8x128xf32>
    %736 = arith.addf %730, %735 : vector<8x128xf32>
    %737 = vector.broadcast %62 : f32 to vector<8x128xf32>
    %738 = arith.mulf %246, %737 : vector<8x128xf32>
    %739 = arith.addf %733, %738 : vector<8x128xf32>
    %740 = vector.broadcast %62 : f32 to vector<8x128xf32>
    %741 = arith.mulf %248, %740 : vector<8x128xf32>
    %742 = arith.addf %736, %741 : vector<8x128xf32>
    %743 = vector.broadcast %70 : f32 to vector<8x128xf32>
    %744 = arith.mulf %276, %743 : vector<8x128xf32>
    %745 = arith.addf %739, %744 : vector<8x128xf32>
    %746 = vector.broadcast %70 : f32 to vector<8x128xf32>
    %747 = arith.mulf %278, %746 : vector<8x128xf32>
    %748 = arith.addf %742, %747 : vector<8x128xf32>
    %749 = vector.broadcast %78 : f32 to vector<8x128xf32>
    %750 = arith.mulf %306, %749 : vector<8x128xf32>
    %751 = arith.addf %745, %750 : vector<8x128xf32>
    %752 = vector.broadcast %78 : f32 to vector<8x128xf32>
    %753 = arith.mulf %308, %752 : vector<8x128xf32>
    %754 = arith.addf %748, %753 : vector<8x128xf32>
    %755 = vector.broadcast %86 : f32 to vector<8x128xf32>
    %756 = arith.mulf %336, %755 : vector<8x128xf32>
    %757 = arith.addf %751, %756 : vector<8x128xf32>
    %758 = vector.broadcast %86 : f32 to vector<8x128xf32>
    %759 = arith.mulf %338, %758 : vector<8x128xf32>
    %760 = arith.addf %754, %759 : vector<8x128xf32>
    %761 = vector.broadcast %94 : f32 to vector<8x128xf32>
    %762 = arith.mulf %366, %761 : vector<8x128xf32>
    %763 = arith.addf %757, %762 : vector<8x128xf32>
    %764 = vector.broadcast %94 : f32 to vector<8x128xf32>
    %765 = arith.mulf %368, %764 : vector<8x128xf32>
    %766 = arith.addf %760, %765 : vector<8x128xf32>
    %767 = vector.broadcast %102 : f32 to vector<8x128xf32>
    %768 = arith.mulf %396, %767 : vector<8x128xf32>
    %769 = arith.addf %763, %768 : vector<8x128xf32>
    %770 = vector.broadcast %102 : f32 to vector<8x128xf32>
    %771 = arith.mulf %398, %770 : vector<8x128xf32>
    %772 = arith.addf %766, %771 : vector<8x128xf32>
    %cst_113 = arith.constant 0.000000e+00 : f32
    %773 = vector.broadcast %cst_113 : f32 to vector<8x128xf32>
    %774 = arith.maximumf %769, %773 : vector<8x128xf32>
    %cst_114 = arith.constant 0.000000e+00 : f32
    %775 = vector.broadcast %cst_114 : f32 to vector<8x128xf32>
    %776 = arith.maximumf %772, %775 : vector<8x128xf32>
    %777 = vector.broadcast %47 : f32 to vector<8x128xf32>
    %778 = arith.mulf %186, %777 : vector<8x128xf32>
    %779 = vector.broadcast %111 : f32 to vector<8x128xf32>
    %780 = arith.addf %778, %779 : vector<8x128xf32>
    %781 = vector.broadcast %47 : f32 to vector<8x128xf32>
    %782 = arith.mulf %188, %781 : vector<8x128xf32>
    %783 = vector.broadcast %111 : f32 to vector<8x128xf32>
    %784 = arith.addf %782, %783 : vector<8x128xf32>
    %785 = vector.broadcast %55 : f32 to vector<8x128xf32>
    %786 = arith.mulf %216, %785 : vector<8x128xf32>
    %787 = arith.addf %780, %786 : vector<8x128xf32>
    %788 = vector.broadcast %55 : f32 to vector<8x128xf32>
    %789 = arith.mulf %218, %788 : vector<8x128xf32>
    %790 = arith.addf %784, %789 : vector<8x128xf32>
    %791 = vector.broadcast %63 : f32 to vector<8x128xf32>
    %792 = arith.mulf %246, %791 : vector<8x128xf32>
    %793 = arith.addf %787, %792 : vector<8x128xf32>
    %794 = vector.broadcast %63 : f32 to vector<8x128xf32>
    %795 = arith.mulf %248, %794 : vector<8x128xf32>
    %796 = arith.addf %790, %795 : vector<8x128xf32>
    %797 = vector.broadcast %71 : f32 to vector<8x128xf32>
    %798 = arith.mulf %276, %797 : vector<8x128xf32>
    %799 = arith.addf %793, %798 : vector<8x128xf32>
    %800 = vector.broadcast %71 : f32 to vector<8x128xf32>
    %801 = arith.mulf %278, %800 : vector<8x128xf32>
    %802 = arith.addf %796, %801 : vector<8x128xf32>
    %803 = vector.broadcast %79 : f32 to vector<8x128xf32>
    %804 = arith.mulf %306, %803 : vector<8x128xf32>
    %805 = arith.addf %799, %804 : vector<8x128xf32>
    %806 = vector.broadcast %79 : f32 to vector<8x128xf32>
    %807 = arith.mulf %308, %806 : vector<8x128xf32>
    %808 = arith.addf %802, %807 : vector<8x128xf32>
    %809 = vector.broadcast %87 : f32 to vector<8x128xf32>
    %810 = arith.mulf %336, %809 : vector<8x128xf32>
    %811 = arith.addf %805, %810 : vector<8x128xf32>
    %812 = vector.broadcast %87 : f32 to vector<8x128xf32>
    %813 = arith.mulf %338, %812 : vector<8x128xf32>
    %814 = arith.addf %808, %813 : vector<8x128xf32>
    %815 = vector.broadcast %95 : f32 to vector<8x128xf32>
    %816 = arith.mulf %366, %815 : vector<8x128xf32>
    %817 = arith.addf %811, %816 : vector<8x128xf32>
    %818 = vector.broadcast %95 : f32 to vector<8x128xf32>
    %819 = arith.mulf %368, %818 : vector<8x128xf32>
    %820 = arith.addf %814, %819 : vector<8x128xf32>
    %821 = vector.broadcast %103 : f32 to vector<8x128xf32>
    %822 = arith.mulf %396, %821 : vector<8x128xf32>
    %823 = arith.addf %817, %822 : vector<8x128xf32>
    %824 = vector.broadcast %103 : f32 to vector<8x128xf32>
    %825 = arith.mulf %398, %824 : vector<8x128xf32>
    %826 = arith.addf %820, %825 : vector<8x128xf32>
    %cst_115 = arith.constant 0.000000e+00 : f32
    %827 = vector.broadcast %cst_115 : f32 to vector<8x128xf32>
    %828 = arith.maximumf %823, %827 : vector<8x128xf32>
    %cst_116 = arith.constant 0.000000e+00 : f32
    %829 = vector.broadcast %cst_116 : f32 to vector<8x128xf32>
    %830 = arith.maximumf %826, %829 : vector<8x128xf32>
    %831 = vector.broadcast %112 : f32 to vector<8x128xf32>
    %832 = arith.mulf %450, %831 : vector<8x128xf32>
    %833 = vector.broadcast %144 : f32 to vector<8x128xf32>
    %834 = arith.addf %832, %833 : vector<8x128xf32>
    %835 = vector.broadcast %112 : f32 to vector<8x128xf32>
    %836 = arith.mulf %452, %835 : vector<8x128xf32>
    %837 = vector.broadcast %144 : f32 to vector<8x128xf32>
    %838 = arith.addf %836, %837 : vector<8x128xf32>
    %839 = vector.broadcast %116 : f32 to vector<8x128xf32>
    %840 = arith.mulf %504, %839 : vector<8x128xf32>
    %841 = arith.addf %834, %840 : vector<8x128xf32>
    %842 = vector.broadcast %116 : f32 to vector<8x128xf32>
    %843 = arith.mulf %506, %842 : vector<8x128xf32>
    %844 = arith.addf %838, %843 : vector<8x128xf32>
    %845 = vector.broadcast %120 : f32 to vector<8x128xf32>
    %846 = arith.mulf %558, %845 : vector<8x128xf32>
    %847 = arith.addf %841, %846 : vector<8x128xf32>
    %848 = vector.broadcast %120 : f32 to vector<8x128xf32>
    %849 = arith.mulf %560, %848 : vector<8x128xf32>
    %850 = arith.addf %844, %849 : vector<8x128xf32>
    %851 = vector.broadcast %124 : f32 to vector<8x128xf32>
    %852 = arith.mulf %612, %851 : vector<8x128xf32>
    %853 = arith.addf %847, %852 : vector<8x128xf32>
    %854 = vector.broadcast %124 : f32 to vector<8x128xf32>
    %855 = arith.mulf %614, %854 : vector<8x128xf32>
    %856 = arith.addf %850, %855 : vector<8x128xf32>
    %857 = vector.broadcast %128 : f32 to vector<8x128xf32>
    %858 = arith.mulf %666, %857 : vector<8x128xf32>
    %859 = arith.addf %853, %858 : vector<8x128xf32>
    %860 = vector.broadcast %128 : f32 to vector<8x128xf32>
    %861 = arith.mulf %668, %860 : vector<8x128xf32>
    %862 = arith.addf %856, %861 : vector<8x128xf32>
    %863 = vector.broadcast %132 : f32 to vector<8x128xf32>
    %864 = arith.mulf %720, %863 : vector<8x128xf32>
    %865 = arith.addf %859, %864 : vector<8x128xf32>
    %866 = vector.broadcast %132 : f32 to vector<8x128xf32>
    %867 = arith.mulf %722, %866 : vector<8x128xf32>
    %868 = arith.addf %862, %867 : vector<8x128xf32>
    %869 = vector.broadcast %136 : f32 to vector<8x128xf32>
    %870 = arith.mulf %774, %869 : vector<8x128xf32>
    %871 = arith.addf %865, %870 : vector<8x128xf32>
    %872 = vector.broadcast %136 : f32 to vector<8x128xf32>
    %873 = arith.mulf %776, %872 : vector<8x128xf32>
    %874 = arith.addf %868, %873 : vector<8x128xf32>
    %875 = vector.broadcast %140 : f32 to vector<8x128xf32>
    %876 = arith.mulf %828, %875 : vector<8x128xf32>
    %877 = arith.addf %871, %876 : vector<8x128xf32>
    %878 = vector.broadcast %140 : f32 to vector<8x128xf32>
    %879 = arith.mulf %830, %878 : vector<8x128xf32>
    %880 = arith.addf %874, %879 : vector<8x128xf32>
    %881 = vector.broadcast %113 : f32 to vector<8x128xf32>
    %882 = arith.mulf %450, %881 : vector<8x128xf32>
    %883 = vector.broadcast %145 : f32 to vector<8x128xf32>
    %884 = arith.addf %882, %883 : vector<8x128xf32>
    %885 = vector.broadcast %113 : f32 to vector<8x128xf32>
    %886 = arith.mulf %452, %885 : vector<8x128xf32>
    %887 = vector.broadcast %145 : f32 to vector<8x128xf32>
    %888 = arith.addf %886, %887 : vector<8x128xf32>
    %889 = vector.broadcast %117 : f32 to vector<8x128xf32>
    %890 = arith.mulf %504, %889 : vector<8x128xf32>
    %891 = arith.addf %884, %890 : vector<8x128xf32>
    %892 = vector.broadcast %117 : f32 to vector<8x128xf32>
    %893 = arith.mulf %506, %892 : vector<8x128xf32>
    %894 = arith.addf %888, %893 : vector<8x128xf32>
    %895 = vector.broadcast %121 : f32 to vector<8x128xf32>
    %896 = arith.mulf %558, %895 : vector<8x128xf32>
    %897 = arith.addf %891, %896 : vector<8x128xf32>
    %898 = vector.broadcast %121 : f32 to vector<8x128xf32>
    %899 = arith.mulf %560, %898 : vector<8x128xf32>
    %900 = arith.addf %894, %899 : vector<8x128xf32>
    %901 = vector.broadcast %125 : f32 to vector<8x128xf32>
    %902 = arith.mulf %612, %901 : vector<8x128xf32>
    %903 = arith.addf %897, %902 : vector<8x128xf32>
    %904 = vector.broadcast %125 : f32 to vector<8x128xf32>
    %905 = arith.mulf %614, %904 : vector<8x128xf32>
    %906 = arith.addf %900, %905 : vector<8x128xf32>
    %907 = vector.broadcast %129 : f32 to vector<8x128xf32>
    %908 = arith.mulf %666, %907 : vector<8x128xf32>
    %909 = arith.addf %903, %908 : vector<8x128xf32>
    %910 = vector.broadcast %129 : f32 to vector<8x128xf32>
    %911 = arith.mulf %668, %910 : vector<8x128xf32>
    %912 = arith.addf %906, %911 : vector<8x128xf32>
    %913 = vector.broadcast %133 : f32 to vector<8x128xf32>
    %914 = arith.mulf %720, %913 : vector<8x128xf32>
    %915 = arith.addf %909, %914 : vector<8x128xf32>
    %916 = vector.broadcast %133 : f32 to vector<8x128xf32>
    %917 = arith.mulf %722, %916 : vector<8x128xf32>
    %918 = arith.addf %912, %917 : vector<8x128xf32>
    %919 = vector.broadcast %137 : f32 to vector<8x128xf32>
    %920 = arith.mulf %774, %919 : vector<8x128xf32>
    %921 = arith.addf %915, %920 : vector<8x128xf32>
    %922 = vector.broadcast %137 : f32 to vector<8x128xf32>
    %923 = arith.mulf %776, %922 : vector<8x128xf32>
    %924 = arith.addf %918, %923 : vector<8x128xf32>
    %925 = vector.broadcast %141 : f32 to vector<8x128xf32>
    %926 = arith.mulf %828, %925 : vector<8x128xf32>
    %927 = arith.addf %921, %926 : vector<8x128xf32>
    %928 = vector.broadcast %141 : f32 to vector<8x128xf32>
    %929 = arith.mulf %830, %928 : vector<8x128xf32>
    %930 = arith.addf %924, %929 : vector<8x128xf32>
    %931 = vector.broadcast %114 : f32 to vector<8x128xf32>
    %932 = arith.mulf %450, %931 : vector<8x128xf32>
    %933 = vector.broadcast %146 : f32 to vector<8x128xf32>
    %934 = arith.addf %932, %933 : vector<8x128xf32>
    %935 = vector.broadcast %114 : f32 to vector<8x128xf32>
    %936 = arith.mulf %452, %935 : vector<8x128xf32>
    %937 = vector.broadcast %146 : f32 to vector<8x128xf32>
    %938 = arith.addf %936, %937 : vector<8x128xf32>
    %939 = vector.broadcast %118 : f32 to vector<8x128xf32>
    %940 = arith.mulf %504, %939 : vector<8x128xf32>
    %941 = arith.addf %934, %940 : vector<8x128xf32>
    %942 = vector.broadcast %118 : f32 to vector<8x128xf32>
    %943 = arith.mulf %506, %942 : vector<8x128xf32>
    %944 = arith.addf %938, %943 : vector<8x128xf32>
    %945 = vector.broadcast %122 : f32 to vector<8x128xf32>
    %946 = arith.mulf %558, %945 : vector<8x128xf32>
    %947 = arith.addf %941, %946 : vector<8x128xf32>
    %948 = vector.broadcast %122 : f32 to vector<8x128xf32>
    %949 = arith.mulf %560, %948 : vector<8x128xf32>
    %950 = arith.addf %944, %949 : vector<8x128xf32>
    %951 = vector.broadcast %126 : f32 to vector<8x128xf32>
    %952 = arith.mulf %612, %951 : vector<8x128xf32>
    %953 = arith.addf %947, %952 : vector<8x128xf32>
    %954 = vector.broadcast %126 : f32 to vector<8x128xf32>
    %955 = arith.mulf %614, %954 : vector<8x128xf32>
    %956 = arith.addf %950, %955 : vector<8x128xf32>
    %957 = vector.broadcast %130 : f32 to vector<8x128xf32>
    %958 = arith.mulf %666, %957 : vector<8x128xf32>
    %959 = arith.addf %953, %958 : vector<8x128xf32>
    %960 = vector.broadcast %130 : f32 to vector<8x128xf32>
    %961 = arith.mulf %668, %960 : vector<8x128xf32>
    %962 = arith.addf %956, %961 : vector<8x128xf32>
    %963 = vector.broadcast %134 : f32 to vector<8x128xf32>
    %964 = arith.mulf %720, %963 : vector<8x128xf32>
    %965 = arith.addf %959, %964 : vector<8x128xf32>
    %966 = vector.broadcast %134 : f32 to vector<8x128xf32>
    %967 = arith.mulf %722, %966 : vector<8x128xf32>
    %968 = arith.addf %962, %967 : vector<8x128xf32>
    %969 = vector.broadcast %138 : f32 to vector<8x128xf32>
    %970 = arith.mulf %774, %969 : vector<8x128xf32>
    %971 = arith.addf %965, %970 : vector<8x128xf32>
    %972 = vector.broadcast %138 : f32 to vector<8x128xf32>
    %973 = arith.mulf %776, %972 : vector<8x128xf32>
    %974 = arith.addf %968, %973 : vector<8x128xf32>
    %975 = vector.broadcast %142 : f32 to vector<8x128xf32>
    %976 = arith.mulf %828, %975 : vector<8x128xf32>
    %977 = arith.addf %971, %976 : vector<8x128xf32>
    %978 = vector.broadcast %142 : f32 to vector<8x128xf32>
    %979 = arith.mulf %830, %978 : vector<8x128xf32>
    %980 = arith.addf %974, %979 : vector<8x128xf32>
    %981 = vector.broadcast %115 : f32 to vector<8x128xf32>
    %982 = arith.mulf %450, %981 : vector<8x128xf32>
    %983 = vector.broadcast %147 : f32 to vector<8x128xf32>
    %984 = arith.addf %982, %983 : vector<8x128xf32>
    %985 = vector.broadcast %115 : f32 to vector<8x128xf32>
    %986 = arith.mulf %452, %985 : vector<8x128xf32>
    %987 = vector.broadcast %147 : f32 to vector<8x128xf32>
    %988 = arith.addf %986, %987 : vector<8x128xf32>
    %989 = vector.broadcast %119 : f32 to vector<8x128xf32>
    %990 = arith.mulf %504, %989 : vector<8x128xf32>
    %991 = arith.addf %984, %990 : vector<8x128xf32>
    %992 = vector.broadcast %119 : f32 to vector<8x128xf32>
    %993 = arith.mulf %506, %992 : vector<8x128xf32>
    %994 = arith.addf %988, %993 : vector<8x128xf32>
    %995 = vector.broadcast %123 : f32 to vector<8x128xf32>
    %996 = arith.mulf %558, %995 : vector<8x128xf32>
    %997 = arith.addf %991, %996 : vector<8x128xf32>
    %998 = vector.broadcast %123 : f32 to vector<8x128xf32>
    %999 = arith.mulf %560, %998 : vector<8x128xf32>
    %1000 = arith.addf %994, %999 : vector<8x128xf32>
    %1001 = vector.broadcast %127 : f32 to vector<8x128xf32>
    %1002 = arith.mulf %612, %1001 : vector<8x128xf32>
    %1003 = arith.addf %997, %1002 : vector<8x128xf32>
    %1004 = vector.broadcast %127 : f32 to vector<8x128xf32>
    %1005 = arith.mulf %614, %1004 : vector<8x128xf32>
    %1006 = arith.addf %1000, %1005 : vector<8x128xf32>
    %1007 = vector.broadcast %131 : f32 to vector<8x128xf32>
    %1008 = arith.mulf %666, %1007 : vector<8x128xf32>
    %1009 = arith.addf %1003, %1008 : vector<8x128xf32>
    %1010 = vector.broadcast %131 : f32 to vector<8x128xf32>
    %1011 = arith.mulf %668, %1010 : vector<8x128xf32>
    %1012 = arith.addf %1006, %1011 : vector<8x128xf32>
    %1013 = vector.broadcast %135 : f32 to vector<8x128xf32>
    %1014 = arith.mulf %720, %1013 : vector<8x128xf32>
    %1015 = arith.addf %1009, %1014 : vector<8x128xf32>
    %1016 = vector.broadcast %135 : f32 to vector<8x128xf32>
    %1017 = arith.mulf %722, %1016 : vector<8x128xf32>
    %1018 = arith.addf %1012, %1017 : vector<8x128xf32>
    %1019 = vector.broadcast %139 : f32 to vector<8x128xf32>
    %1020 = arith.mulf %774, %1019 : vector<8x128xf32>
    %1021 = arith.addf %1015, %1020 : vector<8x128xf32>
    %1022 = vector.broadcast %139 : f32 to vector<8x128xf32>
    %1023 = arith.mulf %776, %1022 : vector<8x128xf32>
    %1024 = arith.addf %1018, %1023 : vector<8x128xf32>
    %1025 = vector.broadcast %143 : f32 to vector<8x128xf32>
    %1026 = arith.mulf %828, %1025 : vector<8x128xf32>
    %1027 = arith.addf %1021, %1026 : vector<8x128xf32>
    %1028 = vector.broadcast %143 : f32 to vector<8x128xf32>
    %1029 = arith.mulf %830, %1028 : vector<8x128xf32>
    %1030 = arith.addf %1024, %1029 : vector<8x128xf32>
    %1031 = arith.subf %877, %880 : vector<8x128xf32>
    %1032 = arith.subf %927, %930 : vector<8x128xf32>
    %1033 = arith.subf %977, %980 : vector<8x128xf32>
    %1034 = arith.subf %1027, %1030 : vector<8x128xf32>
    %1035 = arith.mulf %877, %927 : vector<8x128xf32>
    %1036 = arith.mulf %880, %930 : vector<8x128xf32>
    %1037 = arith.subf %1035, %1036 : vector<8x128xf32>
    %1038 = arith.mulf %927, %977 : vector<8x128xf32>
    %1039 = arith.mulf %930, %980 : vector<8x128xf32>
    %1040 = arith.subf %1038, %1039 : vector<8x128xf32>
    %1041 = arith.mulf %977, %1027 : vector<8x128xf32>
    %1042 = arith.mulf %980, %1030 : vector<8x128xf32>
    %1043 = arith.subf %1041, %1042 : vector<8x128xf32>
    %1044 = arith.addf %1031, %1032 : vector<8x128xf32>
    %1045 = arith.subf %1031, %1032 : vector<8x128xf32>
    %1046 = arith.addf %1044, %1033 : vector<8x128xf32>
    %1047 = arith.subf %1044, %1033 : vector<8x128xf32>
    %1048 = arith.addf %1045, %1033 : vector<8x128xf32>
    %1049 = arith.subf %1045, %1033 : vector<8x128xf32>
    %1050 = arith.addf %1046, %1034 : vector<8x128xf32>
    %1051 = arith.subf %1046, %1034 : vector<8x128xf32>
    %1052 = arith.addf %1047, %1034 : vector<8x128xf32>
    %1053 = arith.subf %1047, %1034 : vector<8x128xf32>
    %1054 = arith.addf %1048, %1034 : vector<8x128xf32>
    %1055 = arith.subf %1048, %1034 : vector<8x128xf32>
    %1056 = arith.addf %1049, %1034 : vector<8x128xf32>
    %1057 = arith.subf %1049, %1034 : vector<8x128xf32>
    %1058 = math.cos %1050 : vector<8x128xf32>
    %1059 = math.cos %1051 : vector<8x128xf32>
    %1060 = math.cos %1052 : vector<8x128xf32>
    %1061 = math.cos %1053 : vector<8x128xf32>
    %1062 = math.cos %1054 : vector<8x128xf32>
    %1063 = math.cos %1055 : vector<8x128xf32>
    %1064 = math.cos %1056 : vector<8x128xf32>
    %1065 = math.cos %1057 : vector<8x128xf32>
    %1066 = arith.addf %1037, %1040 : vector<8x128xf32>
    %1067 = arith.subf %1037, %1040 : vector<8x128xf32>
    %1068 = arith.addf %1066, %1043 : vector<8x128xf32>
    %1069 = arith.subf %1066, %1043 : vector<8x128xf32>
    %1070 = arith.addf %1067, %1043 : vector<8x128xf32>
    %1071 = arith.subf %1067, %1043 : vector<8x128xf32>
    %1072 = math.cos %1068 : vector<8x128xf32>
    %1073 = math.cos %1069 : vector<8x128xf32>
    %1074 = math.cos %1070 : vector<8x128xf32>
    %1075 = math.cos %1071 : vector<8x128xf32>
    %1076 = math.sin %1068 : vector<8x128xf32>
    %1077 = math.sin %1069 : vector<8x128xf32>
    %1078 = math.sin %1070 : vector<8x128xf32>
    %1079 = math.sin %1071 : vector<8x128xf32>
    %1080 = arith.addf %1058, %1063 : vector<8x128xf32>
    %1081 = arith.mulf %1072, %1080 : vector<8x128xf32>
    %1082 = arith.subf %1058, %1063 : vector<8x128xf32>
    %1083 = arith.mulf %1076, %1082 : vector<8x128xf32>
    %1084 = arith.addf %1059, %1062 : vector<8x128xf32>
    %1085 = arith.mulf %1073, %1084 : vector<8x128xf32>
    %1086 = arith.subf %1059, %1062 : vector<8x128xf32>
    %1087 = arith.mulf %1077, %1086 : vector<8x128xf32>
    %1088 = arith.addf %1081, %1085 : vector<8x128xf32>
    %1089 = arith.addf %1083, %1087 : vector<8x128xf32>
    %1090 = arith.addf %1061, %1064 : vector<8x128xf32>
    %1091 = arith.mulf %1074, %1090 : vector<8x128xf32>
    %1092 = arith.subf %1061, %1064 : vector<8x128xf32>
    %1093 = arith.mulf %1078, %1092 : vector<8x128xf32>
    %1094 = arith.addf %1088, %1091 : vector<8x128xf32>
    %1095 = arith.addf %1089, %1093 : vector<8x128xf32>
    %1096 = arith.addf %1060, %1065 : vector<8x128xf32>
    %1097 = arith.mulf %1075, %1096 : vector<8x128xf32>
    %1098 = arith.subf %1060, %1065 : vector<8x128xf32>
    %1099 = arith.mulf %1079, %1098 : vector<8x128xf32>
    %1100 = arith.addf %1094, %1097 : vector<8x128xf32>
    %1101 = arith.addf %1095, %1099 : vector<8x128xf32>
    %1102 = arith.mulf %1100, %1100 : vector<8x128xf32>
    %1103 = arith.mulf %1101, %1101 : vector<8x128xf32>
    %1104 = arith.addf %1102, %1103 : vector<8x128xf32>
    %cst_117 = arith.constant 1.562500e-02 : f32
    %1105 = vector.broadcast %cst_117 : f32 to vector<8x128xf32>
    %1106 = arith.mulf %1104, %1105 : vector<8x128xf32>
    %1107 = arith.index_cast %c0_i32 : i32 to index
    %c0_118 = arith.constant 0 : index
    %c0_119 = arith.constant 0 : index
    %1108 = vector.load %arg8[%1107, %c0_118, %c0_119] : memref<1x8x128xf32, #tpu.memory_space<vmem>>, vector<1x8x128xf32>
    %1109 = vector.shape_cast %1108 : vector<1x8x128xf32> to vector<8x128xf32>
    %1110 = vector.shape_cast %1106 : vector<8x128xf32> to vector<1x8x128xf32>
    tpu.vector_store %arg8[%1107, %c0_118, %c0_119], %1110 {strides = array<i32>} : memref<1x8x128xf32, #tpu.memory_space<vmem>>, vector<1x8x128xf32>,
    %c1_i32 = arith.constant 1 : i32
    return
  }
  func.func @transform_0(%arg0: i32) -> (i32, i32, i32) {
    %c0_i32 = arith.constant 0 : i32
    %c0_i32_0 = arith.constant 0 : i32
    %c0_i32_1 = arith.constant 0 : i32
    return %arg0, %c0_i32, %c0_i32_0 : i32, i32, i32
  }
  func.func @transform_1(%arg0: i32) -> i32 {
    %c0_i32 = arith.constant 0 : i32
    %c0_i32_0 = arith.constant 0 : i32
    return %c0_i32 : i32
  }
  func.func @transform_2(%arg0: i32) -> i32 {
    %c0_i32 = arith.constant 0 : i32
    %c0_i32_0 = arith.constant 0 : i32
    return %c0_i32 : i32
  }
  func.func @transform_3(%arg0: i32) -> i32 {
    %c0_i32 = arith.constant 0 : i32
    %c0_i32_0 = arith.constant 0 : i32
    return %c0_i32 : i32
  }
  func.func @transform_4(%arg0: i32) -> i32 {
    %c0_i32 = arith.constant 0 : i32
    %c0_i32_0 = arith.constant 0 : i32
    return %c0_i32 : i32
  }
  func.func @transform_5(%arg0: i32) -> i32 {
    %c0_i32 = arith.constant 0 : i32
    %c0_i32_0 = arith.constant 0 : i32
    return %c0_i32 : i32
  }
  func.func @transform_6(%arg0: i32) -> i32 {
    %c0_i32 = arith.constant 0 : i32
    %c0_i32_0 = arith.constant 0 : i32
    return %c0_i32 : i32
  }
  func.func @transform_7(%arg0: i32) -> (i32, i32, i32) {
    %c0_i32 = arith.constant 0 : i32
    %c0_i32_0 = arith.constant 0 : i32
    %c0_i32_1 = arith.constant 0 : i32
    return %arg0, %c0_i32, %c0_i32_0 : i32, i32, i32
  }
}

</mosaic_0001>

<llo_original>
// kernel: tpu_custom_call.1
$region0: #{tpu_custom_call.1}
  #allocation0 [shape = 'u32[]', space=smem, size = 0x4, offset = 0x4, fixed_abs, tag = 'smem constant byte address 0x4 - core index']
  #allocation1 [shape = 'u32[144,128]{1,0:T(1,128)}', space=vmem, size = 0x12000, scoped, tag = 'internal scratch']
  %s0 = inlined_call_operand.hbm [shape: f32[1,64,128], index: 0, kind: input, shape index: {}]
  %s1 = inlined_call_operand.vmem [shape: f32[32], index: 1, kind: input, shape index: {}]
  %s2 = inlined_call_operand.vmem [shape: f32[8], index: 2, kind: input, shape index: {}]
  %s3 = inlined_call_operand.vmem [shape: f32[64], index: 3, kind: input, shape index: {}]
  %s4 = inlined_call_operand.vmem [shape: f32[8], index: 4, kind: input, shape index: {}]
  %s5 = inlined_call_operand.vmem [shape: f32[32], index: 5, kind: input, shape index: {}]
  %s6 = inlined_call_operand.vmem [shape: f32[4], index: 6, kind: input, shape index: {}]
  %s7 = inlined_call_operand.hbm [shape: f32[1,8,128], index: 7, kind: output, shape index: {}]
  %s8 = sld [smem:[#allocation0]]
  $region66: #{tpu_custom_call.1} parent=0
    _
  %s10 = ssub.s32 1, %s8
  %s11 = scalar_select 0, %s10, %s8
  $region1: #{tpu_custom_call.1} parent=0
    #allocation2 [shape = 'u8[32768]{0}', space=vmem, size = 0x8000, scoped, tag = 'input window, operand 0, single buffered']
    #allocation3 [shape = 's32[1]{0}', space=sflag, size = 0x4, scoped, tag = 'scoped memory for tpu_custom_call.1']
    #allocation4 [shape = 's32[1]{0}', space=sflag, size = 0x4, scoped, tag = 'scoped memory for tpu_custom_call.1']
    #allocation5 [shape = 's32[1]{0}', space=sflag, size = 0x4, scoped, tag = 'scoped memory for tpu_custom_call.1']
    #allocation6 [shape = 'u8[512]{0}', space=smem, size = 0x200, scoped, tag = 'input window, operand 1, single buffered']
    #allocation7 [shape = 'u8[512]{0}', space=smem, size = 0x200, scoped, tag = 'input window, operand 2, single buffered']
    #allocation8 [shape = 's32[1]{0}', space=sflag, size = 0x4, scoped, tag = 'scoped memory for tpu_custom_call.1']
    #allocation9 [shape = 'u8[512]{0}', space=smem, size = 0x200, scoped, tag = 'input window, operand 3, single buffered']
    #allocation10 [shape = 'u8[512]{0}', space=smem, size = 0x200, scoped, tag = 'input window, operand 4, single buffered']
    #allocation11 [shape = 's32[1]{0}', space=sflag, size = 0x4, scoped, tag = 'scoped memory for tpu_custom_call.1']
    #allocation12 [shape = 'u8[512]{0}', space=smem, size = 0x200, scoped, tag = 'input window, operand 5, single buffered']
    #allocation13 [shape = 'u8[512]{0}', space=smem, size = 0x200, scoped, tag = 'input window, operand 6, single buffered']
    #allocation14 [shape = 's32[1]{0}', space=sflag, size = 0x4, scoped, tag = 'scoped memory for tpu_custom_call.1']
    #allocation15 [shape = 'u8[4096]{0}', space=vmem, size = 0x1000, scoped, tag = 'output window, operand 0, single buffered']
    %12 = vsyncpa [#allocation3], 0
    %13 = vsyncpa [#allocation5], 0
    %14 = vsyncpa [#allocation8], 0
    %15 = vsyncpa [#allocation11], 0
    %16 = vsyncpa [#allocation14], 0
    %17 = vsyncpa [#allocation4], 0
    // Predicated region
    $region2: #{tpu_custom_call.1} parent=1 // pred_check
      _
    $region3: #{tpu_custom_call.1} parent=1 // pred_check_branch
      %19 = sbr.rel (0) target = $region5
    $region4: #{tpu_custom_call.1} parent=1 // pred_region
      %s21 = ssub.s32 1024, 1024
      %22 = vsyncadd [#allocation3], %s21
      %s23 = sshll.u32 [#allocation2], 4
      %s24 = int_to_ptr.vmem [resolvable:$true] %s23
      %29 = dma.hbm_to_vmem [thread:$0]  %s0, 1024, %s24, [#allocation3], 128, 128, 8
    $region5: #{tpu_custom_call.1} parent=1 // pred_fallthru
      _
    // Predicated region
    $region6: #{tpu_custom_call.1} parent=1 // pred_check
      _
    $region7: #{tpu_custom_call.1} parent=1 // pred_check_branch
      %31 = sbr.rel (0) target = $region9
    $region8: #{tpu_custom_call.1} parent=1 // pred_region
      %s33 = ssub.s32 16, 16
      %34 = vsyncadd [#allocation5], %s33
      %s36 = sshll.u32 %s1, 4
      %s37 = int_to_ptr.vmem [resolvable:$true] %s36
      %39 = dma.vmem_to_smem %s37, 16, [#allocation6], [#allocation5]
    $region9: #{tpu_custom_call.1} parent=1 // pred_fallthru
      _
    // Predicated region
    $region10: #{tpu_custom_call.1} parent=1 // pred_check
      _
    $region11: #{tpu_custom_call.1} parent=1 // pred_check_branch
      %41 = sbr.rel (0) target = $region13
    $region12: #{tpu_custom_call.1} parent=1 // pred_region
      %s43 = ssub.s32 16, 16
      %44 = vsyncadd [#allocation8], %s43
      %s46 = sshll.u32 %s2, 4
      %s47 = int_to_ptr.vmem [resolvable:$true] %s46
      %49 = dma.vmem_to_smem %s47, 16, [#allocation7], [#allocation8]
    $region13: #{tpu_custom_call.1} parent=1 // pred_fallthru
      _
    // Predicated region
    $region14: #{tpu_custom_call.1} parent=1 // pred_check
      _
    $region15: #{tpu_custom_call.1} parent=1 // pred_check_branch
      %51 = sbr.rel (0) target = $region17
    $region16: #{tpu_custom_call.1} parent=1 // pred_region
      %s53 = ssub.s32 16, 16
      %54 = vsyncadd [#allocation8], %s53
      %s56 = sshll.u32 %s3, 4
      %s57 = int_to_ptr.vmem [resolvable:$true] %s56
      %59 = dma.vmem_to_smem %s57, 16, [#allocation9], [#allocation8]
    $region17: #{tpu_custom_call.1} parent=1 // pred_fallthru
      _
    // Predicated region
    $region18: #{tpu_custom_call.1} parent=1 // pred_check
      _
    $region19: #{tpu_custom_call.1} parent=1 // pred_check_branch
      %61 = sbr.rel (0) target = $region21
    $region20: #{tpu_custom_call.1} parent=1 // pred_region
      %s63 = ssub.s32 16, 16
      %64 = vsyncadd [#allocation11], %s63
      %s66 = sshll.u32 %s4, 4
      %s67 = int_to_ptr.vmem [resolvable:$true] %s66
      %69 = dma.vmem_to_smem %s67, 16, [#allocation10], [#allocation11]
    $region21: #{tpu_custom_call.1} parent=1 // pred_fallthru
      _
    // Predicated region
    $region22: #{tpu_custom_call.1} parent=1 // pred_check
      _
    $region23: #{tpu_custom_call.1} parent=1 // pred_check_branch
      %71 = sbr.rel (0) target = $region25
    $region24: #{tpu_custom_call.1} parent=1 // pred_region
      %s73 = ssub.s32 16, 16
      %74 = vsyncadd [#allocation11], %s73
      %s76 = sshll.u32 %s5, 4
      %s77 = int_to_ptr.vmem [resolvable:$true] %s76
      %79 = dma.vmem_to_smem %s77, 16, [#allocation12], [#allocation11]
    $region25: #{tpu_custom_call.1} parent=1 // pred_fallthru
      _
    // Predicated region
    $region26: #{tpu_custom_call.1} parent=1 // pred_check
      _
    $region27: #{tpu_custom_call.1} parent=1 // pred_check_branch
      %81 = sbr.rel (0) target = $region29
    $region28: #{tpu_custom_call.1} parent=1 // pred_region
      %s83 = ssub.s32 16, 16
      %84 = vsyncadd [#allocation14], %s83
      %s86 = sshll.u32 %s6, 4
      %s87 = int_to_ptr.vmem [resolvable:$true] %s86
      %89 = dma.vmem_to_smem %s87, 16, [#allocation13], [#allocation14]
    $region29: #{tpu_custom_call.1} parent=1 // pred_fallthru
      _
    // Predicated region
    $region30: #{tpu_custom_call.1} parent=1 // pred_check
      _
    $region31: #{tpu_custom_call.1} parent=1 // pred_check_branch
      %91 = sbr.rel (0) target = $region33
    $region32: #{tpu_custom_call.1} parent=1 // pred_region
      %92 = dma.done [#allocation3], 1024
    $region33: #{tpu_custom_call.1} parent=1 // pred_fallthru
      _
    // Predicated region
    $region34: #{tpu_custom_call.1} parent=1 // pred_check
      _
    $region35: #{tpu_custom_call.1} parent=1 // pred_check_branch
      %94 = sbr.rel (0) target = $region37
    $region36: #{tpu_custom_call.1} parent=1 // pred_region
      %95 = dma.done [#allocation5], 16
    $region37: #{tpu_custom_call.1} parent=1 // pred_fallthru
      _
    // Predicated region
    $region38: #{tpu_custom_call.1} parent=1 // pred_check
      _
    $region39: #{tpu_custom_call.1} parent=1 // pred_check_branch
      %97 = sbr.rel (0) target = $region41
    $region40: #{tpu_custom_call.1} parent=1 // pred_region
      %98 = dma.done [#allocation8], 16
    $region41: #{tpu_custom_call.1} parent=1 // pred_fallthru
      _
    // Predicated region
    $region42: #{tpu_custom_call.1} parent=1 // pred_check
      _
    $region43: #{tpu_custom_call.1} parent=1 // pred_check_branch
      %100 = sbr.rel (0) target = $region45
    $region44: #{tpu_custom_call.1} parent=1 // pred_region
      %101 = dma.done [#allocation8], 16
    $region45: #{tpu_custom_call.1} parent=1 // pred_fallthru
      _
    // Predicated region
    $region46: #{tpu_custom_call.1} parent=1 // pred_check
      _
    $region47: #{tpu_custom_call.1} parent=1 // pred_check_branch
      %103 = sbr.rel (0) target = $region49
    $region48: #{tpu_custom_call.1} parent=1 // pred_region
      %104 = dma.done [#allocation11], 16
    $region49: #{tpu_custom_call.1} parent=1 // pred_fallthru
      _
    // Predicated region
    $region50: #{tpu_custom_call.1} parent=1 // pred_check
      _
    $region51: #{tpu_custom_call.1} parent=1 // pred_check_branch
      %106 = sbr.rel (0) target = $region53
    $region52: #{tpu_custom_call.1} parent=1 // pred_region
      %107 = dma.done [#allocation11], 16
    $region53: #{tpu_custom_call.1} parent=1 // pred_fallthru
      _
    // Predicated region
    $region54: #{tpu_custom_call.1} parent=1 // pred_check
      _
    $region55: #{tpu_custom_call.1} parent=1 // pred_check_branch
      %109 = sbr.rel (0) target = $region57
    $region56: #{tpu_custom_call.1} parent=1 // pred_region
      %110 = dma.done [#allocation14], 16
    $region57: #{tpu_custom_call.1} parent=1 // pred_fallthru
      _
    %111 = sfence
    %s112 = sld [smem:[#allocation6]]
    %s113 = sld [smem:[#allocation6 + $0x1]]
    %s114 = sld [smem:[#allocation6 + $0x2]]
    %s115 = sld [smem:[#allocation6 + $0x3]]
    %s116 = sld [smem:[#allocation6 + $0x4]]
    %s117 = sld [smem:[#allocation6 + $0x5]]
    %s118 = sld [smem:[#allocation6 + $0x6]]
    %s119 = sld [smem:[#allocation6 + $0x7]]
    %s120 = sld [smem:[#allocation6 + $0x8]]
    %s121 = sld [smem:[#allocation6 + $0x9]]
    %s122 = sld [smem:[#allocation6 + $0xa]]
    %s123 = sld [smem:[#allocation6 + $0xb]]
    %s124 = sld [smem:[#allocation6 + $0xc]]
    %s125 = sld [smem:[#allocation6 + $0xd]]
    %s126 = sld [smem:[#allocation6 + $0xe]]
    %s127 = sld [smem:[#allocation6 + $0xf]]
    %s128 = sld [smem:[#allocation6 + $0x10]]
    %s129 = sld [smem:[#allocation6 + $0x11]]
    %s130 = sld [smem:[#allocation6 + $0x12]]
    %s131 = sld [smem:[#allocation6 + $0x13]]
    %s132 = sld [smem:[#allocation6 + $0x14]]
    %s133 = sld [smem:[#allocation6 + $0x15]]
    %s134 = sld [smem:[#allocation6 + $0x16]]
    %s135 = sld [smem:[#allocation6 + $0x17]]
    %s136 = sld [smem:[#allocation6 + $0x18]]
    %s137 = sld [smem:[#allocation6 + $0x19]]
    %s138 = sld [smem:[#allocation6 + $0x1a]]
    %s139 = sld [smem:[#allocation6 + $0x1b]]
    %s140 = sld [smem:[#allocation6 + $0x1c]]
    %s141 = sld [smem:[#allocation6 + $0x1d]]
    %s142 = sld [smem:[#allocation6 + $0x1e]]
    %s143 = sld [smem:[#allocation6 + $0x1f]]
    %s144 = sld [smem:[#allocation7]]
    %s145 = sld [smem:[#allocation7 + $0x1]]
    %s146 = sld [smem:[#allocation7 + $0x2]]
    %s147 = sld [smem:[#allocation7 + $0x3]]
    %s148 = sld [smem:[#allocation7 + $0x4]]
    %s149 = sld [smem:[#allocation7 + $0x5]]
    %s150 = sld [smem:[#allocation7 + $0x6]]
    %s151 = sld [smem:[#allocation7 + $0x7]]
    %s152 = sld [smem:[#allocation9]]
    %s153 = sld [smem:[#allocation9 + $0x1]]
    %s154 = sld [smem:[#allocation9 + $0x2]]
    %s155 = sld [smem:[#allocation9 + $0x3]]
    %s156 = sld [smem:[#allocation9 + $0x4]]
    %s157 = sld [smem:[#allocation9 + $0x5]]
    %s158 = sld [smem:[#allocation9 + $0x6]]
    %s159 = sld [smem:[#allocation9 + $0x7]]
    %s160 = sld [smem:[#allocation9 + $0x8]]
    %s161 = sld [smem:[#allocation9 + $0x9]]
    %s162 = sld [smem:[#allocation9 + $0xa]]
    %s163 = sld [smem:[#allocation9 + $0xb]]
    %s164 = sld [smem:[#allocation9 + $0xc]]
    %s165 = sld [smem:[#allocation9 + $0xd]]
    %s166 = sld [smem:[#allocation9 + $0xe]]
    %s167 = sld [smem:[#allocation9 + $0xf]]
    %s168 = sld [smem:[#allocation9 + $0x10]]
    %s169 = sld [smem:[#allocation9 + $0x11]]
    %s170 = sld [smem:[#allocation9 + $0x12]]
    %s171 = sld [smem:[#allocation9 + $0x13]]
    %s172 = sld [smem:[#allocation9 + $0x14]]
    %s173 = sld [smem:[#allocation9 + $0x15]]
    %s174 = sld [smem:[#allocation9 + $0x16]]
    %s175 = sld [smem:[#allocation9 + $0x17]]
    %s176 = sld [smem:[#allocation9 + $0x18]]
    %s177 = sld [smem:[#allocation9 + $0x19]]
    %s178 = sld [smem:[#allocation9 + $0x1a]]
    %s179 = sld [smem:[#allocation9 + $0x1b]]
    %s180 = sld [smem:[#allocation9 + $0x1c]]
    %s181 = sld [smem:[#allocation9 + $0x1d]]
    %s182 = sld [smem:[#allocation9 + $0x1e]]
    %s183 = sld [smem:[#allocation9 + $0x1f]]
    %s184 = sld [smem:[#allocation9 + $0x20]]
    %s185 = sld [smem:[#allocation9 + $0x21]]
    %s186 = sld [smem:[#allocation9 + $0x22]]
    %s187 = sld [smem:[#allocation9 + $0x23]]
    %s188 = sld [smem:[#allocation9 + $0x24]]
    %s189 = sld [smem:[#allocation9 + $0x25]]
    %s190 = sld [smem:[#allocation9 + $0x26]]
    %s191 = sld [smem:[#allocation9 + $0x27]]
    %s192 = sld [smem:[#allocation9 + $0x28]]
    %s193 = sld [smem:[#allocation9 + $0x29]]
    %s194 = sld [smem:[#allocation9 + $0x2a]]
    %s195 = sld [smem:[#allocation9 + $0x2b]]
    %s196 = sld [smem:[#allocation9 + $0x2c]]
    %s197 = sld [smem:[#allocation9 + $0x2d]]
    %s198 = sld [smem:[#allocation9 + $0x2e]]
    %s199 = sld [smem:[#allocation9 + $0x2f]]
    %s200 = sld [smem:[#allocation9 + $0x30]]
    %s201 = sld [smem:[#allocation9 + $0x31]]
    %s202 = sld [smem:[#allocation9 + $0x32]]
    %s203 = sld [smem:[#allocation9 + $0x33]]
    %s204 = sld [smem:[#allocation9 + $0x34]]
    %s205 = sld [smem:[#allocation9 + $0x35]]
    %s206 = sld [smem:[#allocation9 + $0x36]]
    %s207 = sld [smem:[#allocation9 + $0x37]]
    %s208 = sld [smem:[#allocation9 + $0x38]]
    %s209 = sld [smem:[#allocation9 + $0x39]]
    %s210 = sld [smem:[#allocation9 + $0x3a]]
    %s211 = sld [smem:[#allocation9 + $0x3b]]
    %s212 = sld [smem:[#allocation9 + $0x3c]]
    %s213 = sld [smem:[#allocation9 + $0x3d]]
    %s214 = sld [smem:[#allocation9 + $0x3e]]
    %s215 = sld [smem:[#allocation9 + $0x3f]]
    %s216 = sld [smem:[#allocation10]]
    %s217 = sld [smem:[#allocation10 + $0x1]]
    %s218 = sld [smem:[#allocation10 + $0x2]]
    %s219 = sld [smem:[#allocation10 + $0x3]]
    %s220 = sld [smem:[#allocation10 + $0x4]]
    %s221 = sld [smem:[#allocation10 + $0x5]]
    %s222 = sld [smem:[#allocation10 + $0x6]]
    %s223 = sld [smem:[#allocation10 + $0x7]]
    %s224 = sld [smem:[#allocation12]]
    %s225 = sld [smem:[#allocation12 + $0x1]]
    %s226 = sld [smem:[#allocation12 + $0x2]]
    %s227 = sld [smem:[#allocation12 + $0x3]]
    %s228 = sld [smem:[#allocation12 + $0x4]]
    %s229 = sld [smem:[#allocation12 + $0x5]]
    %s230 = sld [smem:[#allocation12 + $0x6]]
    %s231 = sld [smem:[#allocation12 + $0x7]]
    %s232 = sld [smem:[#allocation12 + $0x8]]
    %s233 = sld [smem:[#allocation12 + $0x9]]
    %s234 = sld [smem:[#allocation12 + $0xa]]
    %s235 = sld [smem:[#allocation12 + $0xb]]
    %s236 = sld [smem:[#allocation12 + $0xc]]
    %s237 = sld [smem:[#allocation12 + $0xd]]
    %s238 = sld [smem:[#allocation12 + $0xe]]
    %s239 = sld [smem:[#allocation12 + $0xf]]
    %s240 = sld [smem:[#allocation12 + $0x10]]
    %s241 = sld [smem:[#allocation12 + $0x11]]
    %s242 = sld [smem:[#allocation12 + $0x12]]
    %s243 = sld [smem:[#allocation12 + $0x13]]
    %s244 = sld [smem:[#allocation12 + $0x14]]
    %s245 = sld [smem:[#allocation12 + $0x15]]
    %s246 = sld [smem:[#allocation12 + $0x16]]
    %s247 = sld [smem:[#allocation12 + $0x17]]
    %s248 = sld [smem:[#allocation12 + $0x18]]
    %s249 = sld [smem:[#allocation12 + $0x19]]
    %s250 = sld [smem:[#allocation12 + $0x1a]]
    %s251 = sld [smem:[#allocation12 + $0x1b]]
    %s252 = sld [smem:[#allocation12 + $0x1c]]
    %s253 = sld [smem:[#allocation12 + $0x1d]]
    %s254 = sld [smem:[#allocation12 + $0x1e]]
    %s255 = sld [smem:[#allocation12 + $0x1f]]
    %s256 = sld [smem:[#allocation13]]
    %s257 = sld [smem:[#allocation13 + $0x1]]
    %s258 = sld [smem:[#allocation13 + $0x2]]
    %s259 = sld [smem:[#allocation13 + $0x3]]
    %v260 = vld [vmem:[#allocation2] sm:$0xff]
    %v261 = vld [vmem:[#allocation2 + $0x8] sm:$0xff]
    %v262 = vld [vmem:[#allocation2 + $0x10] sm:$0xff]
    %v263 = vld [vmem:[#allocation2 + $0x18] sm:$0xff]
    %v264 = vld [vmem:[#allocation2 + $0x20] sm:$0xff]
    %v265 = vld [vmem:[#allocation2 + $0x28] sm:$0xff]
    %v266 = vld [vmem:[#allocation2 + $0x30] sm:$0xff]
    %v267 = vld [vmem:[#allocation2 + $0x38] sm:$0xff]
    %v268 = vstv %s112
    %v269 = vmul.f32 %v260, %v268
    %v270 = vstv %s144
    %v271 = vadd.f32 %v269, %v270
    %v272 = vmul.f32 %v264, %v268
    %v273 = vadd.f32 %v272, %v270
    %v274 = vstv %s120
    %v275 = vmul.f32 %v261, %v274
    %v276 = vadd.f32 %v271, %v275
    %v277 = vmul.f32 %v265, %v274
    %v278 = vadd.f32 %v273, %v277
    %v279 = vstv %s128
    %v280 = vmul.f32 %v262, %v279
    %v281 = vadd.f32 %v276, %v280
    %v282 = vmul.f32 %v266, %v279
    %v283 = vadd.f32 %v278, %v282
    %v284 = vstv %s136
    %v285 = vmul.f32 %v263, %v284
    %v286 = vadd.f32 %v281, %v285
    %v287 = vmul.f32 %v267, %v284
    %v288 = vadd.f32 %v283, %v287
    %v289 = vmax.f32 %v286, 0.0
    %v290 = vmax.f32 %v288, 0.0
    %v291 = vstv %s113
    %v292 = vmul.f32 %v260, %v291
    %v293 = vstv %s145
    %v294 = vadd.f32 %v292, %v293
    %v295 = vmul.f32 %v264, %v291
    %v296 = vadd.f32 %v295, %v293
    %v297 = vstv %s121
    %v298 = vmul.f32 %v261, %v297
    %v299 = vadd.f32 %v294, %v298
    %v300 = vmul.f32 %v265, %v297
    %v301 = vadd.f32 %v296, %v300
    %v302 = vstv %s129
    %v303 = vmul.f32 %v262, %v302
    %v304 = vadd.f32 %v299, %v303
    %v305 = vmul.f32 %v266, %v302
    %v306 = vadd.f32 %v301, %v305
    %v307 = vstv %s137
    %v308 = vmul.f32 %v263, %v307
    %v309 = vadd.f32 %v304, %v308
    %v310 = vmul.f32 %v267, %v307
    %v311 = vadd.f32 %v306, %v310
    %v312 = vmax.f32 %v309, 0.0
    %v313 = vmax.f32 %v311, 0.0
    %v314 = vstv %s114
    %v315 = vmul.f32 %v260, %v314
    %v316 = vstv %s146
    %v317 = vadd.f32 %v315, %v316
    %v318 = vmul.f32 %v264, %v314
    %v319 = vadd.f32 %v318, %v316
    %v320 = vstv %s122
    %v321 = vmul.f32 %v261, %v320
    %v322 = vadd.f32 %v317, %v321
    %v323 = vmul.f32 %v265, %v320
    %v324 = vadd.f32 %v319, %v323
    %v325 = vstv %s130
    %v326 = vmul.f32 %v262, %v325
    %v327 = vadd.f32 %v322, %v326
    %v328 = vmul.f32 %v266, %v325
    %v329 = vadd.f32 %v324, %v328
    %v330 = vstv %s138
    %v331 = vmul.f32 %v263, %v330
    %v332 = vadd.f32 %v327, %v331
    %v333 = vmul.f32 %v267, %v330
    %v334 = vadd.f32 %v329, %v333
    %v335 = vmax.f32 %v332, 0.0
    %v336 = vmax.f32 %v334, 0.0
    %v337 = vstv %s115
    %v338 = vmul.f32 %v260, %v337
    %v339 = vstv %s147
    %v340 = vadd.f32 %v338, %v339
    %v341 = vmul.f32 %v264, %v337
    %v342 = vadd.f32 %v341, %v339
    %v343 = vstv %s123
    %v344 = vmul.f32 %v261, %v343
    %v345 = vadd.f32 %v340, %v344
    %v346 = vmul.f32 %v265, %v343
    %v347 = vadd.f32 %v342, %v346
    %v348 = vstv %s131
    %v349 = vmul.f32 %v262, %v348
    %v350 = vadd.f32 %v345, %v349
    %v351 = vmul.f32 %v266, %v348
    %v352 = vadd.f32 %v347, %v351
    %v353 = vstv %s139
    %v354 = vmul.f32 %v263, %v353
    %v355 = vadd.f32 %v350, %v354
    %v356 = vmul.f32 %v267, %v353
    %v357 = vadd.f32 %v352, %v356
    %v358 = vmax.f32 %v355, 0.0
    %v359 = vmax.f32 %v357, 0.0
    %v360 = vstv %s116
    %v361 = vmul.f32 %v260, %v360
    %v362 = vstv %s148
    %v363 = vadd.f32 %v361, %v362
    %v364 = vmul.f32 %v264, %v360
    %v365 = vadd.f32 %v364, %v362
    %v366 = vstv %s124
    %v367 = vmul.f32 %v261, %v366
    %v368 = vadd.f32 %v363, %v367
    %v369 = vmul.f32 %v265, %v366
    %v370 = vadd.f32 %v365, %v369
    %v371 = vstv %s132
    %v372 = vmul.f32 %v262, %v371
    %v373 = vadd.f32 %v368, %v372
    %v374 = vmul.f32 %v266, %v371
    %v375 = vadd.f32 %v370, %v374
    %v376 = vstv %s140
    %v377 = vmul.f32 %v263, %v376
    %v378 = vadd.f32 %v373, %v377
    %v379 = vmul.f32 %v267, %v376
    %v380 = vadd.f32 %v375, %v379
    %v381 = vmax.f32 %v378, 0.0
    %v382 = vmax.f32 %v380, 0.0
    %v383 = vstv %s117
    %v384 = vmul.f32 %v260, %v383
    %v385 = vstv %s149
    %v386 = vadd.f32 %v384, %v385
    %v387 = vmul.f32 %v264, %v383
    %v388 = vadd.f32 %v387, %v385
    %v389 = vstv %s125
    %v390 = vmul.f32 %v261, %v389
    %v391 = vadd.f32 %v386, %v390
    %v392 = vmul.f32 %v265, %v389
    %v393 = vadd.f32 %v388, %v392
    %v394 = vstv %s133
    %v395 = vmul.f32 %v262, %v394
    %v396 = vadd.f32 %v391, %v395
    %v397 = vmul.f32 %v266, %v394
    %v398 = vadd.f32 %v393, %v397
    %v399 = vstv %s141
    %v400 = vmul.f32 %v263, %v399
    %v401 = vadd.f32 %v396, %v400
    %v402 = vmul.f32 %v267, %v399
    %v403 = vadd.f32 %v398, %v402
    %v404 = vmax.f32 %v401, 0.0
    %v405 = vmax.f32 %v403, 0.0
    %v406 = vstv %s118
    %v407 = vmul.f32 %v260, %v406
    %v408 = vstv %s150
    %v409 = vadd.f32 %v407, %v408
    %v410 = vmul.f32 %v264, %v406
    %v411 = vadd.f32 %v410, %v408
    %v412 = vstv %s126
    %v413 = vmul.f32 %v261, %v412
    %v414 = vadd.f32 %v409, %v413
    %v415 = vmul.f32 %v265, %v412
    %v416 = vadd.f32 %v411, %v415
    %v417 = vstv %s134
    %v418 = vmul.f32 %v262, %v417
    %v419 = vadd.f32 %v414, %v418
    %v420 = vmul.f32 %v266, %v417
    %v421 = vadd.f32 %v416, %v420
    %v422 = vstv %s142
    %v423 = vmul.f32 %v263, %v422
    %v424 = vadd.f32 %v419, %v423
    %v425 = vmul.f32 %v267, %v422
    %v426 = vadd.f32 %v421, %v425
    %v427 = vmax.f32 %v424, 0.0
    %v428 = vmax.f32 %v426, 0.0
    %v429 = vstv %s119
    %v430 = vmul.f32 %v260, %v429
    %v431 = vstv %s151
    %v432 = vadd.f32 %v430, %v431
    %v433 = vmul.f32 %v264, %v429
    %v434 = vadd.f32 %v433, %v431
    %v435 = vstv %s127
    %v436 = vmul.f32 %v261, %v435
    %v437 = vadd.f32 %v432, %v436
    %v438 = vmul.f32 %v265, %v435
    %v439 = vadd.f32 %v434, %v438
    %v440 = vstv %s135
    %v441 = vmul.f32 %v262, %v440
    %v442 = vadd.f32 %v437, %v441
    %v443 = vmul.f32 %v266, %v440
    %v444 = vadd.f32 %v439, %v443
    %v445 = vstv %s143
    %v446 = vmul.f32 %v263, %v445
    %v447 = vadd.f32 %v442, %v446
    %v448 = vmul.f32 %v267, %v445
    %v449 = vadd.f32 %v444, %v448
    %v450 = vmax.f32 %v447, 0.0
    %v451 = vmax.f32 %v449, 0.0
    %v452 = vstv %s152
    %v453 = vmul.f32 %v289, %v452
    %v454 = vstv %s216
    %v455 = vadd.f32 %v453, %v454
    %v456 = vmul.f32 %v290, %v452
    %v457 = vadd.f32 %v456, %v454
    %v458 = vstv %s160
    %v459 = vmul.f32 %v312, %v458
    %v460 = vadd.f32 %v455, %v459
    %v461 = vmul.f32 %v313, %v458
    %v462 = vadd.f32 %v457, %v461
    %v463 = vstv %s168
    %v464 = vmul.f32 %v335, %v463
    %v465 = vadd.f32 %v460, %v464
    %v466 = vmul.f32 %v336, %v463
    %v467 = vadd.f32 %v462, %v466
    %v468 = vstv %s176
    %v469 = vmul.f32 %v358, %v468
    %v470 = vadd.f32 %v465, %v469
    %v471 = vmul.f32 %v359, %v468
    %v472 = vadd.f32 %v467, %v471
    %v473 = vstv %s184
    %v474 = vmul.f32 %v381, %v473
    %v475 = vadd.f32 %v470, %v474
    %v476 = vmul.f32 %v382, %v473
    %v477 = vadd.f32 %v472, %v476
    %v478 = vstv %s192
    %v479 = vmul.f32 %v404, %v478
    %v480 = vadd.f32 %v475, %v479
    %v481 = vmul.f32 %v405, %v478
    %v482 = vadd.f32 %v477, %v481
    %v483 = vstv %s200
    %v484 = vmul.f32 %v427, %v483
    %v485 = vadd.f32 %v480, %v484
    %v486 = vmul.f32 %v428, %v483
    %v487 = vadd.f32 %v482, %v486
    %v488 = vstv %s208
    %v489 = vmul.f32 %v450, %v488
    %v490 = vadd.f32 %v485, %v489
    %v491 = vmul.f32 %v451, %v488
    %v492 = vadd.f32 %v487, %v491
    %v493 = vmax.f32 %v490, 0.0
    %v494 = vmax.f32 %v492, 0.0
    %v495 = vstv %s153
    %v496 = vmul.f32 %v289, %v495
    %v497 = vstv %s217
    %v498 = vadd.f32 %v496, %v497
    %v499 = vmul.f32 %v290, %v495
    %v500 = vadd.f32 %v499, %v497
    %v501 = vstv %s161
    %v502 = vmul.f32 %v312, %v501
    %v503 = vadd.f32 %v498, %v502
    %v504 = vmul.f32 %v313, %v501
    %v505 = vadd.f32 %v500, %v504
    %v506 = vstv %s169
    %v507 = vmul.f32 %v335, %v506
    %v508 = vadd.f32 %v503, %v507
    %v509 = vmul.f32 %v336, %v506
    %v510 = vadd.f32 %v505, %v509
    %v511 = vstv %s177
    %v512 = vmul.f32 %v358, %v511
    %v513 = vadd.f32 %v508, %v512
    %v514 = vmul.f32 %v359, %v511
    %v515 = vadd.f32 %v510, %v514
    %v516 = vstv %s185
    %v517 = vmul.f32 %v381, %v516
    %v518 = vadd.f32 %v513, %v517
    %v519 = vmul.f32 %v382, %v516
    %v520 = vadd.f32 %v515, %v519
    %v521 = vstv %s193
    %v522 = vmul.f32 %v404, %v521
    %v523 = vadd.f32 %v518, %v522
    %v524 = vmul.f32 %v405, %v521
    %v525 = vadd.f32 %v520, %v524
    %v526 = vstv %s201
    %v527 = vmul.f32 %v427, %v526
    %v528 = vadd.f32 %v523, %v527
    %v529 = vmul.f32 %v428, %v526
    %v530 = vadd.f32 %v525, %v529
    %v531 = vstv %s209
    %v532 = vmul.f32 %v450, %v531
    %v533 = vadd.f32 %v528, %v532
    %v534 = vmul.f32 %v451, %v531
    %v535 = vadd.f32 %v530, %v534
    %v536 = vmax.f32 %v533, 0.0
    %v537 = vmax.f32 %v535, 0.0
    %v538 = vstv %s154
    %v539 = vmul.f32 %v289, %v538
    %v540 = vstv %s218
    %v541 = vadd.f32 %v539, %v540
    %v542 = vmul.f32 %v290, %v538
    %v543 = vadd.f32 %v542, %v540
    %v544 = vstv %s162
    %v545 = vmul.f32 %v312, %v544
    %v546 = vadd.f32 %v541, %v545
    %v547 = vmul.f32 %v313, %v544
    %v548 = vadd.f32 %v543, %v547
    %v549 = vstv %s170
    %v550 = vmul.f32 %v335, %v549
    %v551 = vadd.f32 %v546, %v550
    %v552 = vmul.f32 %v336, %v549
    %v553 = vadd.f32 %v548, %v552
    %v554 = vstv %s178
    %v555 = vmul.f32 %v358, %v554
    %v556 = vadd.f32 %v551, %v555
    %v557 = vmul.f32 %v359, %v554
    %v558 = vadd.f32 %v553, %v557
    %v559 = vstv %s186
    %v560 = vmul.f32 %v381, %v559
    %v561 = vadd.f32 %v556, %v560
    %v562 = vmul.f32 %v382, %v559
    %v563 = vadd.f32 %v558, %v562
    %v564 = vstv %s194
    %v565 = vmul.f32 %v404, %v564
    %v566 = vadd.f32 %v561, %v565
    %v567 = vmul.f32 %v405, %v564
    %v568 = vadd.f32 %v563, %v567
    %v569 = vstv %s202
    %v570 = vmul.f32 %v427, %v569
    %v571 = vadd.f32 %v566, %v570
    %v572 = vmul.f32 %v428, %v569
    %v573 = vadd.f32 %v568, %v572
    %v574 = vstv %s210
    %v575 = vmul.f32 %v450, %v574
    %v576 = vadd.f32 %v571, %v575
    %v577 = vmul.f32 %v451, %v574
    %v578 = vadd.f32 %v573, %v577
    %v579 = vmax.f32 %v576, 0.0
    %v580 = vmax.f32 %v578, 0.0
    %v581 = vstv %s155
    %v582 = vmul.f32 %v289, %v581
    %v583 = vstv %s219
    %v584 = vadd.f32 %v582, %v583
    %v585 = vmul.f32 %v290, %v581
    %v586 = vadd.f32 %v585, %v583
    %v587 = vstv %s163
    %v588 = vmul.f32 %v312, %v587
    %v589 = vadd.f32 %v584, %v588
    %v590 = vmul.f32 %v313, %v587
    %v591 = vadd.f32 %v586, %v590
    %v592 = vstv %s171
    %v593 = vmul.f32 %v335, %v592
    %v594 = vadd.f32 %v589, %v593
    %v595 = vmul.f32 %v336, %v592
    %v596 = vadd.f32 %v591, %v595
    %v597 = vstv %s179
    %v598 = vmul.f32 %v358, %v597
    %v599 = vadd.f32 %v594, %v598
    %v600 = vmul.f32 %v359, %v597
    %v601 = vadd.f32 %v596, %v600
    %v602 = vstv %s187
    %v603 = vmul.f32 %v381, %v602
    %v604 = vadd.f32 %v599, %v603
    %v605 = vmul.f32 %v382, %v602
    %v606 = vadd.f32 %v601, %v605
    %v607 = vstv %s195
    %v608 = vmul.f32 %v404, %v607
    %v609 = vadd.f32 %v604, %v608
    %v610 = vmul.f32 %v405, %v607
    %v611 = vadd.f32 %v606, %v610
    %v612 = vstv %s203
    %v613 = vmul.f32 %v427, %v612
    %v614 = vadd.f32 %v609, %v613
    %v615 = vmul.f32 %v428, %v612
    %v616 = vadd.f32 %v611, %v615
    %v617 = vstv %s211
    %v618 = vmul.f32 %v450, %v617
    %v619 = vadd.f32 %v614, %v618
    %v620 = vmul.f32 %v451, %v617
    %v621 = vadd.f32 %v616, %v620
    %v622 = vmax.f32 %v619, 0.0
    %v623 = vmax.f32 %v621, 0.0
    %v624 = vstv %s156
    %v625 = vmul.f32 %v289, %v624
    %v626 = vstv %s220
    %v627 = vadd.f32 %v625, %v626
    %v628 = vmul.f32 %v290, %v624
    %v629 = vadd.f32 %v628, %v626
    %v630 = vstv %s164
    %v631 = vmul.f32 %v312, %v630
    %v632 = vadd.f32 %v627, %v631
    %v633 = vmul.f32 %v313, %v630
    %v634 = vadd.f32 %v629, %v633
    %v635 = vstv %s172
    %v636 = vmul.f32 %v335, %v635
    %v637 = vadd.f32 %v632, %v636
    %v638 = vmul.f32 %v336, %v635
    %v639 = vadd.f32 %v634, %v638
    %v640 = vstv %s180
    %v641 = vmul.f32 %v358, %v640
    %v642 = vadd.f32 %v637, %v641
    %v643 = vmul.f32 %v359, %v640
    %v644 = vadd.f32 %v639, %v643
    %v645 = vstv %s188
    %v646 = vmul.f32 %v381, %v645
    %v647 = vadd.f32 %v642, %v646
    %v648 = vmul.f32 %v382, %v645
    %v649 = vadd.f32 %v644, %v648
    %v650 = vstv %s196
    %v651 = vmul.f32 %v404, %v650
    %v652 = vadd.f32 %v647, %v651
    %v653 = vmul.f32 %v405, %v650
    %v654 = vadd.f32 %v649, %v653
    %v655 = vstv %s204
    %v656 = vmul.f32 %v427, %v655
    %v657 = vadd.f32 %v652, %v656
    %v658 = vmul.f32 %v428, %v655
    %v659 = vadd.f32 %v654, %v658
    %v660 = vstv %s212
    %v661 = vmul.f32 %v450, %v660
    %v662 = vadd.f32 %v657, %v661
    %v663 = vmul.f32 %v451, %v660
    %v664 = vadd.f32 %v659, %v663
    %v665 = vmax.f32 %v662, 0.0
    %v666 = vmax.f32 %v664, 0.0
    %v667 = vstv %s157
    %v668 = vmul.f32 %v289, %v667
    %v669 = vstv %s221
    %v670 = vadd.f32 %v668, %v669
    %v671 = vmul.f32 %v290, %v667
    %v672 = vadd.f32 %v671, %v669
    %v673 = vstv %s165
    %v674 = vmul.f32 %v312, %v673
    %v675 = vadd.f32 %v670, %v674
    %v676 = vmul.f32 %v313, %v673
    %v677 = vadd.f32 %v672, %v676
    %v678 = vstv %s173
    %v679 = vmul.f32 %v335, %v678
    %v680 = vadd.f32 %v675, %v679
    %v681 = vmul.f32 %v336, %v678
    %v682 = vadd.f32 %v677, %v681
    %v683 = vstv %s181
    %v684 = vmul.f32 %v358, %v683
    %v685 = vadd.f32 %v680, %v684
    %v686 = vmul.f32 %v359, %v683
    %v687 = vadd.f32 %v682, %v686
    %v688 = vstv %s189
    %v689 = vmul.f32 %v381, %v688
    %v690 = vadd.f32 %v685, %v689
    %v691 = vmul.f32 %v382, %v688
    %v692 = vadd.f32 %v687, %v691
    %v693 = vstv %s197
    %v694 = vmul.f32 %v404, %v693
    %v695 = vadd.f32 %v690, %v694
    %v696 = vmul.f32 %v405, %v693
    %v697 = vadd.f32 %v692, %v696
    %v698 = vstv %s205
    %v699 = vmul.f32 %v427, %v698
    %v700 = vadd.f32 %v695, %v699
    %v701 = vmul.f32 %v428, %v698
    %v702 = vadd.f32 %v697, %v701
    %v703 = vstv %s213
    %v704 = vmul.f32 %v450, %v703
    %v705 = vadd.f32 %v700, %v704
    %v706 = vmul.f32 %v451, %v703
    %v707 = vadd.f32 %v702, %v706
    %v708 = vmax.f32 %v705, 0.0
    %v709 = vmax.f32 %v707, 0.0
    %v710 = vstv %s158
    %v711 = vmul.f32 %v289, %v710
    %v712 = vstv %s222
    %v713 = vadd.f32 %v711, %v712
    %v714 = vmul.f32 %v290, %v710
    %v715 = vadd.f32 %v714, %v712
    %v716 = vstv %s166
    %v717 = vmul.f32 %v312, %v716
    %v718 = vadd.f32 %v713, %v717
    %v719 = vmul.f32 %v313, %v716
    %v720 = vadd.f32 %v715, %v719
    %v721 = vstv %s174
    %v722 = vmul.f32 %v335, %v721
    %v723 = vadd.f32 %v718, %v722
    %v724 = vmul.f32 %v336, %v721
    %v725 = vadd.f32 %v720, %v724
    %v726 = vstv %s182
    %v727 = vmul.f32 %v358, %v726
    %v728 = vadd.f32 %v723, %v727
    %v729 = vmul.f32 %v359, %v726
    %v730 = vadd.f32 %v725, %v729
    %v731 = vstv %s190
    %v732 = vmul.f32 %v381, %v731
    %v733 = vadd.f32 %v728, %v732
    %v734 = vmul.f32 %v382, %v731
    %v735 = vadd.f32 %v730, %v734
    %v736 = vstv %s198
    %v737 = vmul.f32 %v404, %v736
    %v738 = vadd.f32 %v733, %v737
    %v739 = vmul.f32 %v405, %v736
    %v740 = vadd.f32 %v735, %v739
    %v741 = vstv %s206
    %v742 = vmul.f32 %v427, %v741
    %v743 = vadd.f32 %v738, %v742
    %v744 = vmul.f32 %v428, %v741
    %v745 = vadd.f32 %v740, %v744
    %v746 = vstv %s214
    %v747 = vmul.f32 %v450, %v746
    %v748 = vadd.f32 %v743, %v747
    %v749 = vmul.f32 %v451, %v746
    %v750 = vadd.f32 %v745, %v749
    %v751 = vmax.f32 %v748, 0.0
    %v752 = vmax.f32 %v750, 0.0
    %v753 = vstv %s159
    %v754 = vmul.f32 %v289, %v753
    %v755 = vstv %s223
    %v756 = vadd.f32 %v754, %v755
    %v757 = vmul.f32 %v290, %v753
    %v758 = vadd.f32 %v757, %v755
    %v759 = vstv %s167
    %v760 = vmul.f32 %v312, %v759
    %v761 = vadd.f32 %v756, %v760
    %v762 = vmul.f32 %v313, %v759
    %v763 = vadd.f32 %v758, %v762
    %v764 = vstv %s175
    %v765 = vmul.f32 %v335, %v764
    %v766 = vadd.f32 %v761, %v765
    %v767 = vmul.f32 %v336, %v764
    %v768 = vadd.f32 %v763, %v767
    %v769 = vstv %s183
    %v770 = vmul.f32 %v358, %v769
    %v771 = vadd.f32 %v766, %v770
    %v772 = vmul.f32 %v359, %v769
    %v773 = vadd.f32 %v768, %v772
    %v774 = vstv %s191
    %v775 = vmul.f32 %v381, %v774
    %v776 = vadd.f32 %v771, %v775
    %v777 = vmul.f32 %v382, %v774
    %v778 = vadd.f32 %v773, %v777
    %v779 = vstv %s199
    %v780 = vmul.f32 %v404, %v779
    %v781 = vadd.f32 %v776, %v780
    %v782 = vmul.f32 %v405, %v779
    %v783 = vadd.f32 %v778, %v782
    %v784 = vstv %s207
    %v785 = vmul.f32 %v427, %v784
    %v786 = vadd.f32 %v781, %v785
    %v787 = vmul.f32 %v428, %v784
    %v788 = vadd.f32 %v783, %v787
    %v789 = vstv %s215
    %v790 = vmul.f32 %v450, %v789
    %v791 = vadd.f32 %v786, %v790
    %v792 = vmul.f32 %v451, %v789
    %v793 = vadd.f32 %v788, %v792
    %v794 = vmax.f32 %v791, 0.0
    %v795 = vmax.f32 %v793, 0.0
    %v796 = vstv %s224
    %v797 = vmul.f32 %v493, %v796
    %v798 = vstv %s256
    %v799 = vadd.f32 %v797, %v798
    %v800 = vmul.f32 %v494, %v796
    %v801 = vadd.f32 %v800, %v798
    %v802 = vstv %s228
    %v803 = vmul.f32 %v536, %v802
    %v804 = vadd.f32 %v799, %v803
    %v805 = vmul.f32 %v537, %v802
    %v806 = vadd.f32 %v801, %v805
    %v807 = vstv %s232
    %v808 = vmul.f32 %v579, %v807
    %v809 = vadd.f32 %v804, %v808
    %v810 = vmul.f32 %v580, %v807
    %v811 = vadd.f32 %v806, %v810
    %v812 = vstv %s236
    %v813 = vmul.f32 %v622, %v812
    %v814 = vadd.f32 %v809, %v813
    %v815 = vmul.f32 %v623, %v812
    %v816 = vadd.f32 %v811, %v815
    %v817 = vstv %s240
    %v818 = vmul.f32 %v665, %v817
    %v819 = vadd.f32 %v814, %v818
    %v820 = vmul.f32 %v666, %v817
    %v821 = vadd.f32 %v816, %v820
    %v822 = vstv %s244
    %v823 = vmul.f32 %v708, %v822
    %v824 = vadd.f32 %v819, %v823
    %v825 = vmul.f32 %v709, %v822
    %v826 = vadd.f32 %v821, %v825
    %v827 = vstv %s248
    %v828 = vmul.f32 %v751, %v827
    %v829 = vadd.f32 %v824, %v828
    %v830 = vmul.f32 %v752, %v827
    %v831 = vadd.f32 %v826, %v830
    %v832 = vstv %s252
    %v833 = vmul.f32 %v794, %v832
    %v834 = vadd.f32 %v829, %v833
    %v835 = vmul.f32 %v795, %v832
    %v836 = vadd.f32 %v831, %v835
    %v837 = vstv %s225
    %v838 = vmul.f32 %v493, %v837
    %v839 = vstv %s257
    %v840 = vadd.f32 %v838, %v839
    %v841 = vmul.f32 %v494, %v837
    %v842 = vadd.f32 %v841, %v839
    %v843 = vstv %s229
    %v844 = vmul.f32 %v536, %v843
    %v845 = vadd.f32 %v840, %v844
    %v846 = vmul.f32 %v537, %v843
    %v847 = vadd.f32 %v842, %v846
    %v848 = vstv %s233
    %v849 = vmul.f32 %v579, %v848
    %v850 = vadd.f32 %v845, %v849
    %v851 = vmul.f32 %v580, %v848
    %v852 = vadd.f32 %v847, %v851
    %v853 = vstv %s237
    %v854 = vmul.f32 %v622, %v853
    %v855 = vadd.f32 %v850, %v854
    %v856 = vmul.f32 %v623, %v853
    %v857 = vadd.f32 %v852, %v856
    %v858 = vstv %s241
    %v859 = vmul.f32 %v665, %v858
    %v860 = vadd.f32 %v855, %v859
    %v861 = vmul.f32 %v666, %v858
    %v862 = vadd.f32 %v857, %v861
    %v863 = vstv %s245
    %v864 = vmul.f32 %v708, %v863
    %v865 = vadd.f32 %v860, %v864
    %v866 = vmul.f32 %v709, %v863
    %v867 = vadd.f32 %v862, %v866
    %v868 = vstv %s249
    %v869 = vmul.f32 %v751, %v868
    %v870 = vadd.f32 %v865, %v869
    %v871 = vmul.f32 %v752, %v868
    %v872 = vadd.f32 %v867, %v871
    %v873 = vstv %s253
    %v874 = vmul.f32 %v794, %v873
    %v875 = vadd.f32 %v870, %v874
    %v876 = vmul.f32 %v795, %v873
    %v877 = vadd.f32 %v872, %v876
    %v878 = vstv %s226
    %v879 = vmul.f32 %v493, %v878
    %v880 = vstv %s258
    %v881 = vadd.f32 %v879, %v880
    %v882 = vmul.f32 %v494, %v878
    %v883 = vadd.f32 %v882, %v880
    %v884 = vstv %s230
    %v885 = vmul.f32 %v536, %v884
    %v886 = vadd.f32 %v881, %v885
    %v887 = vmul.f32 %v537, %v884
    %v888 = vadd.f32 %v883, %v887
    %v889 = vstv %s234
    %v890 = vmul.f32 %v579, %v889
    %v891 = vadd.f32 %v886, %v890
    %v892 = vmul.f32 %v580, %v889
    %v893 = vadd.f32 %v888, %v892
    %v894 = vstv %s238
    %v895 = vmul.f32 %v622, %v894
    %v896 = vadd.f32 %v891, %v895
    %v897 = vmul.f32 %v623, %v894
    %v898 = vadd.f32 %v893, %v897
    %v899 = vstv %s242
    %v900 = vmul.f32 %v665, %v899
    %v901 = vadd.f32 %v896, %v900
    %v902 = vmul.f32 %v666, %v899
    %v903 = vadd.f32 %v898, %v902
    %v904 = vstv %s246
    %v905 = vmul.f32 %v708, %v904
    %v906 = vadd.f32 %v901, %v905
    %v907 = vmul.f32 %v709, %v904
    %v908 = vadd.f32 %v903, %v907
    %v909 = vstv %s250
    %v910 = vmul.f32 %v751, %v909
    %v911 = vadd.f32 %v906, %v910
    %v912 = vmul.f32 %v752, %v909
    %v913 = vadd.f32 %v908, %v912
    %v914 = vstv %s254
    %v915 = vmul.f32 %v794, %v914
    %v916 = vadd.f32 %v911, %v915
    %v917 = vmul.f32 %v795, %v914
    %v918 = vadd.f32 %v913, %v917
    %v919 = vstv %s227
    %v920 = vmul.f32 %v493, %v919
    %v921 = vstv %s259
    %v922 = vadd.f32 %v920, %v921
    %v923 = vmul.f32 %v494, %v919
    %v924 = vadd.f32 %v923, %v921
    %v925 = vstv %s231
    %v926 = vmul.f32 %v536, %v925
    %v927 = vadd.f32 %v922, %v926
    %v928 = vmul.f32 %v537, %v925
    %v929 = vadd.f32 %v924, %v928
    %v930 = vstv %s235
    %v931 = vmul.f32 %v579, %v930
    %v932 = vadd.f32 %v927, %v931
    %v933 = vmul.f32 %v580, %v930
    %v934 = vadd.f32 %v929, %v933
    %v935 = vstv %s239
    %v936 = vmul.f32 %v622, %v935
    %v937 = vadd.f32 %v932, %v936
    %v938 = vmul.f32 %v623, %v935
    %v939 = vadd.f32 %v934, %v938
    %v940 = vstv %s243
    %v941 = vmul.f32 %v665, %v940
    %v942 = vadd.f32 %v937, %v941
    %v943 = vmul.f32 %v666, %v940
    %v944 = vadd.f32 %v939, %v943
    %v945 = vstv %s247
    %v946 = vmul.f32 %v708, %v945
    %v947 = vadd.f32 %v942, %v946
    %v948 = vmul.f32 %v709, %v945
    %v949 = vadd.f32 %v944, %v948
    %v950 = vstv %s251
    %v951 = vmul.f32 %v751, %v950
    %v952 = vadd.f32 %v947, %v951
    %v953 = vmul.f32 %v752, %v950
    %v954 = vadd.f32 %v949, %v953
    %v955 = vstv %s255
    %v956 = vmul.f32 %v794, %v955
    %v957 = vadd.f32 %v952, %v956
    %v958 = vmul.f32 %v795, %v955
    %v959 = vadd.f32 %v954, %v958
    %v960 = vsub.f32 %v834, %v836
    %v961 = vsub.f32 %v875, %v877
    %v962 = vsub.f32 %v916, %v918
    %v963 = vsub.f32 %v957, %v959
    %v964 = vmul.f32 %v834, %v875
    %v965 = vmul.f32 %v836, %v877
    %v966 = vsub.f32 %v964, %v965
    %v967 = vmul.f32 %v875, %v916
    %v968 = vmul.f32 %v877, %v918
    %v969 = vsub.f32 %v967, %v968
    %v970 = vmul.f32 %v916, %v957
    %v971 = vmul.f32 %v918, %v959
    %v972 = vsub.f32 %v970, %v971
    %v973 = vadd.f32 %v960, %v961
    %v974 = vsub.f32 %v960, %v961
    %v975 = vadd.f32 %v973, %v962
    %v976 = vsub.f32 %v973, %v962
    %v977 = vadd.f32 %v974, %v962
    %v978 = vsub.f32 %v974, %v962
    %v979 = vadd.f32 %v975, %v963
    %v980 = vsub.f32 %v975, %v963
    %v981 = vadd.f32 %v976, %v963
    %v982 = vsub.f32 %v976, %v963
    %v983 = vadd.f32 %v977, %v963
    %v984 = vsub.f32 %v977, %v963
    %v985 = vadd.f32 %v978, %v963
    %v986 = vsub.f32 %v978, %v963
    %v987 = vand.u32 2147483647, %v979
    %vm988 = vcmp.le.f32.partialorder %v987, 0.7853982
    %vm989 = vcmp.lt.s32.totalorder %v979, 0
    %v990 = vand.u32 %v979, 2139095040
    %v991 = vshrl.u32 %v990, 23
    %v992 = vsub.s32 %v991, 127
    %v993 = vand.u32 2147483647, %v979
    %v994 = vand.u32 %v993, 8388607
    %v995 = vor.u32 %v994, 8388608
    %v996 = vsub.s32 0, %v995
    %v997 = vadd.s32 %v992, 1
    %vm998 = vcmp.gt.s32.totalorder %v997, 0
    %v999 = vsel %vm998, %v997, 0
    %v1000 = vshrl.u32 %v999, 5
    %v1001 = vand.u32 %v999, 31
    %v1002 = vsub.s32 32, %v1001
    %v1003 = vshrl.u32 683565275, %v1002
    %v1004 = vshll.u32 683565275, %v1001
    %v1005 = vshrl.u32 2475754826, %v1002
    %v1006 = vor.u32 %v1004, %v1005
    %v1007 = vshll.u32 2475754826, %v1001
    %v1008 = vshrl.u32 2131351028, %v1002
    %v1009 = vor.u32 %v1007, %v1008
    %v1010 = vshll.u32 2131351028, %v1001
    %v1011 = vshrl.u32 2102212464, %v1002
    %v1012 = vor.u32 %v1010, %v1011
    %v1013 = vshll.u32 2102212464, %v1001
    %v1014 = vshrl.u32 920167782, %v1002
    %v1015 = vor.u32 %v1013, %v1014
    %v1016 = vshll.u32 920167782, %v1001
    %v1017 = vshrl.u32 1326507024, %v1002
    %v1018 = vor.u32 %v1016, %v1017
    %vm1019 = vcmp.lt.s32.totalorder %v1000, 1
    %vm1020 = vcmp.lt.s32.totalorder %v1000, 2
    %vm1021 = vcmp.lt.s32.totalorder %v1000, 3
    %vm1022 = vcmp.lt.s32.totalorder %v1000, 4
    %v1023 = vsel %vm1019, %v1003, %v1006
    %v1024 = vsel %vm1022, %v1012, 2102212464
    %v1025 = vsel %vm1021, %v1009, %v1024
    %v1026 = vsel %vm1020, %v1023, %v1025
    %v1027 = vsel %vm1019, %v1006, %v1009
    %v1028 = vsel %vm1022, %v1015, 920167782
    %v1029 = vsel %vm1021, %v1012, %v1028
    %v1030 = vsel %vm1020, %v1027, %v1029
    %v1031 = vsel %vm1019, %v1009, %v1012
    %v1032 = vsel %vm1022, %v1018, 1326507024
    %v1033 = vsel %vm1021, %v1015, %v1032
    %v1034 = vsel %vm1020, %v1031, %v1033
    %v1035 = vshll.u32 %v995, 8
    %v1036 = vmul.u32.u64.compose %v1035, %v1034
    %v1037 = vextract.low.u32 %v1036
    %v1038 = vextract.high.u32 %v1036
    %v1039 = vmul.u32.u64.compose %v1035, %v1030
    %v1040 = vextract.low.u32 %v1039
    %v1041 = vextract.high.u32 %v1039
    %v1042 = vmul.u32 %v1035, %v1026
    %v1043 = vadd.s32 %v1038, %v1040
    %vm1044 = vc.u32 %v1038, %v1040
    %v1045 = vadd.s32 %v1041, 1
    %v1046 = vsel %vm1044, %v1045, %v1041
    %v1047 = vadd.s32 %v1042, %v1046
    %v1048 = vadd.s32 %v1047, 536870912
    %v1049 = vshrl.u32 %v1048, 30
    %v1050 = vshll.u32 %v1049, 30
    %v1051 = vsub.s32 %v1047, %v1050
    %vm1052 = vcmp.lt.s32.totalorder %v1051, 0
    %v1053 = vsub.s32 0, %v1051
    %v1054 = vsel %vm1052, %v1053, %v1051
    %v1055 = vclz %v1054
    %v1056 = vsub.s32 %v1055, 2
    %vm1057 = vcmp.gt.s32.totalorder 0, %v1056
    %v1058 = vsel %vm1057, 0, %v1056
    %v1059 = vsub.s32 32, %v1058
    %v1060 = vshll.u32 %v1051, %v1058
    %v1061 = vshrl.u32 %v1043, %v1059
    %v1062 = vor.u32 %v1060, %v1061
    %v1063 = vsub.s32 4294967266, %v1058
    %v1064 = vadd.s32 %v1063, 127
    %v1065 = vshll.u32 %v1064, 23
    %v1066 = vor.u32 4788187, %v1065
    %v1067 = vand.u32 2147483647, %v1066
    %v1069 = vcvt.s32.f32 %v1062
    %v1070 = vmul.f32 %v1069, %v1067
    %v1071 = vxor.u32 %v1070, 2147483648
    %v1072 = vsel %vm989, %v1071, %v1070
    %v1073 = vsub.s32 4, %v1049
    %v1074 = vsel %vm989, %v1073, %v1049
    %v1075 = vsel %vm988, %v979, %v1072
    %v1076 = vsel %vm988, 0, %v1074
    %v1077 = vcosq.f32.pop %v1075
    %v1078 = vsinq.f32.pop %v1075
    %vm1079 = vweird.f32 %v979
    %v1080 = vand.u32 %v1076, 3
    %vm1081 = vcmp.lt.s32.totalorder %v1080, 2
    %vm1082 = vcmp.eq.s32.totalorder %v1080, 0
    %v1083 = vxor.u32 %v1078, 2147483648
    %v1084 = vsel %vm1082, %v1077, %v1083
    %vm1085 = vcmp.eq.s32.totalorder %v1080, 2
    %v1086 = vxor.u32 %v1077, 2147483648
    %v1087 = vsel %vm1085, %v1086, %v1078
    %v1088 = vsel %vm1081, %v1084, %v1087
    %v1089 = vsel %vm1079, nan, %v1088
    %v1090 = vand.u32 2147483647, %v980
    %vm1091 = vcmp.le.f32.partialorder %v1090, 0.7853982
    %vm1092 = vcmp.lt.s32.totalorder %v980, 0
    %v1093 = vand.u32 %v980, 2139095040
    %v1094 = vshrl.u32 %v1093, 23
    %v1095 = vsub.s32 %v1094, 127
    %v1096 = vand.u32 2147483647, %v980
    %v1097 = vand.u32 %v1096, 8388607
    %v1098 = vor.u32 %v1097, 8388608
    %v1099 = vsub.s32 0, %v1098
    %v1100 = vadd.s32 %v1095, 1
    %vm1101 = vcmp.gt.s32.totalorder %v1100, 0
    %v1102 = vsel %vm1101, %v1100, 0
    %v1103 = vshrl.u32 %v1102, 5
    %v1104 = vand.u32 %v1102, 31
    %v1105 = vsub.s32 32, %v1104
    %v1106 = vshrl.u32 683565275, %v1105
    %v1107 = vshll.u32 683565275, %v1104
    %v1108 = vshrl.u32 2475754826, %v1105
    %v1109 = vor.u32 %v1107, %v1108
    %v1110 = vshll.u32 2475754826, %v1104
    %v1111 = vshrl.u32 2131351028, %v1105
    %v1112 = vor.u32 %v1110, %v1111
    %v1113 = vshll.u32 2131351028, %v1104
    %v1114 = vshrl.u32 2102212464, %v1105
    %v1115 = vor.u32 %v1113, %v1114
    %v1116 = vshll.u32 2102212464, %v1104
    %v1117 = vshrl.u32 920167782, %v1105
    %v1118 = vor.u32 %v1116, %v1117
    %v1119 = vshll.u32 920167782, %v1104
    %v1120 = vshrl.u32 1326507024, %v1105
    %v1121 = vor.u32 %v1119, %v1120
    %vm1122 = vcmp.lt.s32.totalorder %v1103, 1
    %vm1123 = vcmp.lt.s32.totalorder %v1103, 2
    %vm1124 = vcmp.lt.s32.totalorder %v1103, 3
    %vm1125 = vcmp.lt.s32.totalorder %v1103, 4
    %v1126 = vsel %vm1122, %v1106, %v1109
    %v1127 = vsel %vm1125, %v1115, 2102212464
    %v1128 = vsel %vm1124, %v1112, %v1127
    %v1129 = vsel %vm1123, %v1126, %v1128
    %v1130 = vsel %vm1122, %v1109, %v1112
    %v1131 = vsel %vm1125, %v1118, 920167782
    %v1132 = vsel %vm1124, %v1115, %v1131
    %v1133 = vsel %vm1123, %v1130, %v1132
    %v1134 = vsel %vm1122, %v1112, %v1115
    %v1135 = vsel %vm1125, %v1121, 1326507024
    %v1136 = vsel %vm1124, %v1118, %v1135
    %v1137 = vsel %vm1123, %v1134, %v1136
    %v1138 = vshll.u32 %v1098, 8
    %v1139 = vmul.u32.u64.compose %v1138, %v1137
    %v1140 = vextract.low.u32 %v1139
    %v1141 = vextract.high.u32 %v1139
    %v1142 = vmul.u32.u64.compose %v1138, %v1133
    %v1143 = vextract.low.u32 %v1142
    %v1144 = vextract.high.u32 %v1142
    %v1145 = vmul.u32 %v1138, %v1129
    %v1146 = vadd.s32 %v1141, %v1143
    %vm1147 = vc.u32 %v1141, %v1143
    %v1148 = vadd.s32 %v1144, 1
    %v1149 = vsel %vm1147, %v1148, %v1144
    %v1150 = vadd.s32 %v1145, %v1149
    %v1151 = vadd.s32 %v1150, 536870912
    %v1152 = vshrl.u32 %v1151, 30
    %v1153 = vshll.u32 %v1152, 30
    %v1154 = vsub.s32 %v1150, %v1153
    %vm1155 = vcmp.lt.s32.totalorder %v1154, 0
    %v1156 = vsub.s32 0, %v1154
    %v1157 = vsel %vm1155, %v1156, %v1154
    %v1158 = vclz %v1157
    %v1159 = vsub.s32 %v1158, 2
    %vm1160 = vcmp.gt.s32.totalorder 0, %v1159
    %v1161 = vsel %vm1160, 0, %v1159
    %v1162 = vsub.s32 32, %v1161
    %v1163 = vshll.u32 %v1154, %v1161
    %v1164 = vshrl.u32 %v1146, %v1162
    %v1165 = vor.u32 %v1163, %v1164
    %v1166 = vsub.s32 4294967266, %v1161
    %v1167 = vadd.s32 %v1166, 127
    %v1168 = vshll.u32 %v1167, 23
    %v1169 = vor.u32 4788187, %v1168
    %v1170 = vand.u32 2147483647, %v1169
    %v1172 = vcvt.s32.f32 %v1165
    %v1173 = vmul.f32 %v1172, %v1170
    %v1174 = vxor.u32 %v1173, 2147483648
    %v1175 = vsel %vm1092, %v1174, %v1173
    %v1176 = vsub.s32 4, %v1152
    %v1177 = vsel %vm1092, %v1176, %v1152
    %v1178 = vsel %vm1091, %v980, %v1175
    %v1179 = vsel %vm1091, 0, %v1177
    %v1180 = vcosq.f32.pop %v1178
    %v1181 = vsinq.f32.pop %v1178
    %vm1182 = vweird.f32 %v980
    %v1183 = vand.u32 %v1179, 3
    %vm1184 = vcmp.lt.s32.totalorder %v1183, 2
    %vm1185 = vcmp.eq.s32.totalorder %v1183, 0
    %v1186 = vxor.u32 %v1181, 2147483648
    %v1187 = vsel %vm1185, %v1180, %v1186
    %vm1188 = vcmp.eq.s32.totalorder %v1183, 2
    %v1189 = vxor.u32 %v1180, 2147483648
    %v1190 = vsel %vm1188, %v1189, %v1181
    %v1191 = vsel %vm1184, %v1187, %v1190
    %v1192 = vsel %vm1182, nan, %v1191
    %v1193 = vand.u32 2147483647, %v981
    %vm1194 = vcmp.le.f32.partialorder %v1193, 0.7853982
    %vm1195 = vcmp.lt.s32.totalorder %v981, 0
    %v1196 = vand.u32 %v981, 2139095040
    %v1197 = vshrl.u32 %v1196, 23
    %v1198 = vsub.s32 %v1197, 127
    %v1199 = vand.u32 2147483647, %v981
    %v1200 = vand.u32 %v1199, 8388607
    %v1201 = vor.u32 %v1200, 8388608
    %v1202 = vsub.s32 0, %v1201
    %v1203 = vadd.s32 %v1198, 1
    %vm1204 = vcmp.gt.s32.totalorder %v1203, 0
    %v1205 = vsel %vm1204, %v1203, 0
    %v1206 = vshrl.u32 %v1205, 5
    %v1207 = vand.u32 %v1205, 31
    %v1208 = vsub.s32 32, %v1207
    %v1209 = vshrl.u32 683565275, %v1208
    %v1210 = vshll.u32 683565275, %v1207
    %v1211 = vshrl.u32 2475754826, %v1208
    %v1212 = vor.u32 %v1210, %v1211
    %v1213 = vshll.u32 2475754826, %v1207
    %v1214 = vshrl.u32 2131351028, %v1208
    %v1215 = vor.u32 %v1213, %v1214
    %v1216 = vshll.u32 2131351028, %v1207
    %v1217 = vshrl.u32 2102212464, %v1208
    %v1218 = vor.u32 %v1216, %v1217
    %v1219 = vshll.u32 2102212464, %v1207
    %v1220 = vshrl.u32 920167782, %v1208
    %v1221 = vor.u32 %v1219, %v1220
    %v1222 = vshll.u32 920167782, %v1207
    %v1223 = vshrl.u32 1326507024, %v1208
    %v1224 = vor.u32 %v1222, %v1223
    %vm1225 = vcmp.lt.s32.totalorder %v1206, 1
    %vm1226 = vcmp.lt.s32.totalorder %v1206, 2
    %vm1227 = vcmp.lt.s32.totalorder %v1206, 3
    %vm1228 = vcmp.lt.s32.totalorder %v1206, 4
    %v1229 = vsel %vm1225, %v1209, %v1212
    %v1230 = vsel %vm1228, %v1218, 2102212464
    %v1231 = vsel %vm1227, %v1215, %v1230
    %v1232 = vsel %vm1226, %v1229, %v1231
    %v1233 = vsel %vm1225, %v1212, %v1215
    %v1234 = vsel %vm1228, %v1221, 920167782
    %v1235 = vsel %vm1227, %v1218, %v1234
    %v1236 = vsel %vm1226, %v1233, %v1235
    %v1237 = vsel %vm1225, %v1215, %v1218
    %v1238 = vsel %vm1228, %v1224, 1326507024
    %v1239 = vsel %vm1227, %v1221, %v1238
    %v1240 = vsel %vm1226, %v1237, %v1239
    %v1241 = vshll.u32 %v1201, 8
    %v1242 = vmul.u32.u64.compose %v1241, %v1240
    %v1243 = vextract.low.u32 %v1242
    %v1244 = vextract.high.u32 %v1242
    %v1245 = vmul.u32.u64.compose %v1241, %v1236
    %v1246 = vextract.low.u32 %v1245
    %v1247 = vextract.high.u32 %v1245
    %v1248 = vmul.u32 %v1241, %v1232
    %v1249 = vadd.s32 %v1244, %v1246
    %vm1250 = vc.u32 %v1244, %v1246
    %v1251 = vadd.s32 %v1247, 1
    %v1252 = vsel %vm1250, %v1251, %v1247
    %v1253 = vadd.s32 %v1248, %v1252
    %v1254 = vadd.s32 %v1253, 536870912
    %v1255 = vshrl.u32 %v1254, 30
    %v1256 = vshll.u32 %v1255, 30
    %v1257 = vsub.s32 %v1253, %v1256
    %vm1258 = vcmp.lt.s32.totalorder %v1257, 0
    %v1259 = vsub.s32 0, %v1257
    %v1260 = vsel %vm1258, %v1259, %v1257
    %v1261 = vclz %v1260
    %v1262 = vsub.s32 %v1261, 2
    %vm1263 = vcmp.gt.s32.totalorder 0, %v1262
    %v1264 = vsel %vm1263, 0, %v1262
    %v1265 = vsub.s32 32, %v1264
    %v1266 = vshll.u32 %v1257, %v1264
    %v1267 = vshrl.u32 %v1249, %v1265
    %v1268 = vor.u32 %v1266, %v1267
    %v1269 = vsub.s32 4294967266, %v1264
    %v1270 = vadd.s32 %v1269, 127
    %v1271 = vshll.u32 %v1270, 23
    %v1272 = vor.u32 4788187, %v1271
    %v1273 = vand.u32 2147483647, %v1272
    %v1275 = vcvt.s32.f32 %v1268
    %v1276 = vmul.f32 %v1275, %v1273
    %v1277 = vxor.u32 %v1276, 2147483648
    %v1278 = vsel %vm1195, %v1277, %v1276
    %v1279 = vsub.s32 4, %v1255
    %v1280 = vsel %vm1195, %v1279, %v1255
    %v1281 = vsel %vm1194, %v981, %v1278
    %v1282 = vsel %vm1194, 0, %v1280
    %v1283 = vcosq.f32.pop %v1281
    %v1284 = vsinq.f32.pop %v1281
    %vm1285 = vweird.f32 %v981
    %v1286 = vand.u32 %v1282, 3
    %vm1287 = vcmp.lt.s32.totalorder %v1286, 2
    %vm1288 = vcmp.eq.s32.totalorder %v1286, 0
    %v1289 = vxor.u32 %v1284, 2147483648
    %v1290 = vsel %vm1288, %v1283, %v1289
    %vm1291 = vcmp.eq.s32.totalorder %v1286, 2
    %v1292 = vxor.u32 %v1283, 2147483648
    %v1293 = vsel %vm1291, %v1292, %v1284
    %v1294 = vsel %vm1287, %v1290, %v1293
    %v1295 = vsel %vm1285, nan, %v1294
    %v1296 = vand.u32 2147483647, %v982
    %vm1297 = vcmp.le.f32.partialorder %v1296, 0.7853982
    %vm1298 = vcmp.lt.s32.totalorder %v982, 0
    %v1299 = vand.u32 %v982, 2139095040
    %v1300 = vshrl.u32 %v1299, 23
    %v1301 = vsub.s32 %v1300, 127
    %v1302 = vand.u32 2147483647, %v982
    %v1303 = vand.u32 %v1302, 8388607
    %v1304 = vor.u32 %v1303, 8388608
    %v1305 = vsub.s32 0, %v1304
    %v1306 = vadd.s32 %v1301, 1
    %vm1307 = vcmp.gt.s32.totalorder %v1306, 0
    %v1308 = vsel %vm1307, %v1306, 0
    %v1309 = vshrl.u32 %v1308, 5
    %v1310 = vand.u32 %v1308, 31
    %v1311 = vsub.s32 32, %v1310
    %v1312 = vshrl.u32 683565275, %v1311
    %v1313 = vshll.u32 683565275, %v1310
    %v1314 = vshrl.u32 2475754826, %v1311
    %v1315 = vor.u32 %v1313, %v1314
    %v1316 = vshll.u32 2475754826, %v1310
    %v1317 = vshrl.u32 2131351028, %v1311
    %v1318 = vor.u32 %v1316, %v1317
    %v1319 = vshll.u32 2131351028, %v1310
    %v1320 = vshrl.u32 2102212464, %v1311
    %v1321 = vor.u32 %v1319, %v1320
    %v1322 = vshll.u32 2102212464, %v1310
    %v1323 = vshrl.u32 920167782, %v1311
    %v1324 = vor.u32 %v1322, %v1323
    %v1325 = vshll.u32 920167782, %v1310
    %v1326 = vshrl.u32 1326507024, %v1311
    %v1327 = vor.u32 %v1325, %v1326
    %vm1328 = vcmp.lt.s32.totalorder %v1309, 1
    %vm1329 = vcmp.lt.s32.totalorder %v1309, 2
    %vm1330 = vcmp.lt.s32.totalorder %v1309, 3
    %vm1331 = vcmp.lt.s32.totalorder %v1309, 4
    %v1332 = vsel %vm1328, %v1312, %v1315
    %v1333 = vsel %vm1331, %v1321, 2102212464
    %v1334 = vsel %vm1330, %v1318, %v1333
    %v1335 = vsel %vm1329, %v1332, %v1334
    %v1336 = vsel %vm1328, %v1315, %v1318
    %v1337 = vsel %vm1331, %v1324, 920167782
    %v1338 = vsel %vm1330, %v1321, %v1337
    %v1339 = vsel %vm1329, %v1336, %v1338
    %v1340 = vsel %vm1328, %v1318, %v1321
    %v1341 = vsel %vm1331, %v1327, 1326507024
    %v1342 = vsel %vm1330, %v1324, %v1341
    %v1343 = vsel %vm1329, %v1340, %v1342
    %v1344 = vshll.u32 %v1304, 8
    %v1345 = vmul.u32.u64.compose %v1344, %v1343
    %v1346 = vextract.low.u32 %v1345
    %v1347 = vextract.high.u32 %v1345
    %v1348 = vmul.u32.u64.compose %v1344, %v1339
    %v1349 = vextract.low.u32 %v1348
    %v1350 = vextract.high.u32 %v1348
    %v1351 = vmul.u32 %v1344, %v1335
    %v1352 = vadd.s32 %v1347, %v1349
    %vm1353 = vc.u32 %v1347, %v1349
    %v1354 = vadd.s32 %v1350, 1
    %v1355 = vsel %vm1353, %v1354, %v1350
    %v1356 = vadd.s32 %v1351, %v1355
    %v1357 = vadd.s32 %v1356, 536870912
    %v1358 = vshrl.u32 %v1357, 30
    %v1359 = vshll.u32 %v1358, 30
    %v1360 = vsub.s32 %v1356, %v1359
    %vm1361 = vcmp.lt.s32.totalorder %v1360, 0
    %v1362 = vsub.s32 0, %v1360
    %v1363 = vsel %vm1361, %v1362, %v1360
    %v1364 = vclz %v1363
    %v1365 = vsub.s32 %v1364, 2
    %vm1366 = vcmp.gt.s32.totalorder 0, %v1365
    %v1367 = vsel %vm1366, 0, %v1365
    %v1368 = vsub.s32 32, %v1367
    %v1369 = vshll.u32 %v1360, %v1367
    %v1370 = vshrl.u32 %v1352, %v1368
    %v1371 = vor.u32 %v1369, %v1370
    %v1372 = vsub.s32 4294967266, %v1367
    %v1373 = vadd.s32 %v1372, 127
    %v1374 = vshll.u32 %v1373, 23
    %v1375 = vor.u32 4788187, %v1374
    %v1376 = vand.u32 2147483647, %v1375
    %v1378 = vcvt.s32.f32 %v1371
    %v1379 = vmul.f32 %v1378, %v1376
    %v1380 = vxor.u32 %v1379, 2147483648
    %v1381 = vsel %vm1298, %v1380, %v1379
    %v1382 = vsub.s32 4, %v1358
    %v1383 = vsel %vm1298, %v1382, %v1358
    %v1384 = vsel %vm1297, %v982, %v1381
    %v1385 = vsel %vm1297, 0, %v1383
    %v1386 = vcosq.f32.pop %v1384
    %v1387 = vsinq.f32.pop %v1384
    %vm1388 = vweird.f32 %v982
    %v1389 = vand.u32 %v1385, 3
    %vm1390 = vcmp.lt.s32.totalorder %v1389, 2
    %vm1391 = vcmp.eq.s32.totalorder %v1389, 0
    %v1392 = vxor.u32 %v1387, 2147483648
    %v1393 = vsel %vm1391, %v1386, %v1392
    %vm1394 = vcmp.eq.s32.totalorder %v1389, 2
    %v1395 = vxor.u32 %v1386, 2147483648
    %v1396 = vsel %vm1394, %v1395, %v1387
    %v1397 = vsel %vm1390, %v1393, %v1396
    %v1398 = vsel %vm1388, nan, %v1397
    %v1399 = vand.u32 2147483647, %v983
    %vm1400 = vcmp.le.f32.partialorder %v1399, 0.7853982
    %vm1401 = vcmp.lt.s32.totalorder %v983, 0
    %v1402 = vand.u32 %v983, 2139095040
    %v1403 = vshrl.u32 %v1402, 23
    %v1404 = vsub.s32 %v1403, 127
    %v1405 = vand.u32 2147483647, %v983
    %v1406 = vand.u32 %v1405, 8388607
    %v1407 = vor.u32 %v1406, 8388608
    %v1408 = vsub.s32 0, %v1407
    %v1409 = vadd.s32 %v1404, 1
    %vm1410 = vcmp.gt.s32.totalorder %v1409, 0
    %v1411 = vsel %vm1410, %v1409, 0
    %v1412 = vshrl.u32 %v1411, 5
    %v1413 = vand.u32 %v1411, 31
    %v1414 = vsub.s32 32, %v1413
    %v1415 = vshrl.u32 683565275, %v1414
    %v1416 = vshll.u32 683565275, %v1413
    %v1417 = vshrl.u32 2475754826, %v1414
    %v1418 = vor.u32 %v1416, %v1417
    %v1419 = vshll.u32 2475754826, %v1413
    %v1420 = vshrl.u32 2131351028, %v1414
    %v1421 = vor.u32 %v1419, %v1420
    %v1422 = vshll.u32 2131351028, %v1413
    %v1423 = vshrl.u32 2102212464, %v1414
    %v1424 = vor.u32 %v1422, %v1423
    %v1425 = vshll.u32 2102212464, %v1413
    %v1426 = vshrl.u32 920167782, %v1414
    %v1427 = vor.u32 %v1425, %v1426
    %v1428 = vshll.u32 920167782, %v1413
    %v1429 = vshrl.u32 1326507024, %v1414
    %v1430 = vor.u32 %v1428, %v1429
    %vm1431 = vcmp.lt.s32.totalorder %v1412, 1
    %vm1432 = vcmp.lt.s32.totalorder %v1412, 2
    %vm1433 = vcmp.lt.s32.totalorder %v1412, 3
    %vm1434 = vcmp.lt.s32.totalorder %v1412, 4
    %v1435 = vsel %vm1431, %v1415, %v1418
    %v1436 = vsel %vm1434, %v1424, 2102212464
    %v1437 = vsel %vm1433, %v1421, %v1436
    %v1438 = vsel %vm1432, %v1435, %v1437
    %v1439 = vsel %vm1431, %v1418, %v1421
    %v1440 = vsel %vm1434, %v1427, 920167782
    %v1441 = vsel %vm1433, %v1424, %v1440
    %v1442 = vsel %vm1432, %v1439, %v1441
    %v1443 = vsel %vm1431, %v1421, %v1424
    %v1444 = vsel %vm1434, %v1430, 1326507024
    %v1445 = vsel %vm1433, %v1427, %v1444
    %v1446 = vsel %vm1432, %v1443, %v1445
    %v1447 = vshll.u32 %v1407, 8
    %v1448 = vmul.u32.u64.compose %v1447, %v1446
    %v1449 = vextract.low.u32 %v1448
    %v1450 = vextract.high.u32 %v1448
    %v1451 = vmul.u32.u64.compose %v1447, %v1442
    %v1452 = vextract.low.u32 %v1451
    %v1453 = vextract.high.u32 %v1451
    %v1454 = vmul.u32 %v1447, %v1438
    %v1455 = vadd.s32 %v1450, %v1452
    %vm1456 = vc.u32 %v1450, %v1452
    %v1457 = vadd.s32 %v1453, 1
    %v1458 = vsel %vm1456, %v1457, %v1453
    %v1459 = vadd.s32 %v1454, %v1458
    %v1460 = vadd.s32 %v1459, 536870912
    %v1461 = vshrl.u32 %v1460, 30
    %v1462 = vshll.u32 %v1461, 30
    %v1463 = vsub.s32 %v1459, %v1462
    %vm1464 = vcmp.lt.s32.totalorder %v1463, 0
    %v1465 = vsub.s32 0, %v1463
    %v1466 = vsel %vm1464, %v1465, %v1463
    %v1467 = vclz %v1466
    %v1468 = vsub.s32 %v1467, 2
    %vm1469 = vcmp.gt.s32.totalorder 0, %v1468
    %v1470 = vsel %vm1469, 0, %v1468
    %v1471 = vsub.s32 32, %v1470
    %v1472 = vshll.u32 %v1463, %v1470
    %v1473 = vshrl.u32 %v1455, %v1471
    %v1474 = vor.u32 %v1472, %v1473
    %v1475 = vsub.s32 4294967266, %v1470
    %v1476 = vadd.s32 %v1475, 127
    %v1477 = vshll.u32 %v1476, 23
    %v1478 = vor.u32 4788187, %v1477
    %v1479 = vand.u32 2147483647, %v1478
    %v1481 = vcvt.s32.f32 %v1474
    %v1482 = vmul.f32 %v1481, %v1479
    %v1483 = vxor.u32 %v1482, 2147483648
    %v1484 = vsel %vm1401, %v1483, %v1482
    %v1485 = vsub.s32 4, %v1461
    %v1486 = vsel %vm1401, %v1485, %v1461
    %v1487 = vsel %vm1400, %v983, %v1484
    %v1488 = vsel %vm1400, 0, %v1486
    %v1489 = vcosq.f32.pop %v1487
    %v1490 = vsinq.f32.pop %v1487
    %vm1491 = vweird.f32 %v983
    %v1492 = vand.u32 %v1488, 3
    %vm1493 = vcmp.lt.s32.totalorder %v1492, 2
    %vm1494 = vcmp.eq.s32.totalorder %v1492, 0
    %v1495 = vxor.u32 %v1490, 2147483648
    %v1496 = vsel %vm1494, %v1489, %v1495
    %vm1497 = vcmp.eq.s32.totalorder %v1492, 2
    %v1498 = vxor.u32 %v1489, 2147483648
    %v1499 = vsel %vm1497, %v1498, %v1490
    %v1500 = vsel %vm1493, %v1496, %v1499
    %v1501 = vsel %vm1491, nan, %v1500
    %v1502 = vand.u32 2147483647, %v984
    %vm1503 = vcmp.le.f32.partialorder %v1502, 0.7853982
    %vm1504 = vcmp.lt.s32.totalorder %v984, 0
    %v1505 = vand.u32 %v984, 2139095040
    %v1506 = vshrl.u32 %v1505, 23
    %v1507 = vsub.s32 %v1506, 127
    %v1508 = vand.u32 2147483647, %v984
    %v1509 = vand.u32 %v1508, 8388607
    %v1510 = vor.u32 %v1509, 8388608
    %v1511 = vsub.s32 0, %v1510
    %v1512 = vadd.s32 %v1507, 1
    %vm1513 = vcmp.gt.s32.totalorder %v1512, 0
    %v1514 = vsel %vm1513, %v1512, 0
    %v1515 = vshrl.u32 %v1514, 5
    %v1516 = vand.u32 %v1514, 31
    %v1517 = vsub.s32 32, %v1516
    %v1518 = vshrl.u32 683565275, %v1517
    %v1519 = vshll.u32 683565275, %v1516
    %v1520 = vshrl.u32 2475754826, %v1517
    %v1521 = vor.u32 %v1519, %v1520
    %v1522 = vshll.u32 2475754826, %v1516
    %v1523 = vshrl.u32 2131351028, %v1517
    %v1524 = vor.u32 %v1522, %v1523
    %v1525 = vshll.u32 2131351028, %v1516
    %v1526 = vshrl.u32 2102212464, %v1517
    %v1527 = vor.u32 %v1525, %v1526
    %v1528 = vshll.u32 2102212464, %v1516
    %v1529 = vshrl.u32 920167782, %v1517
    %v1530 = vor.u32 %v1528, %v1529
    %v1531 = vshll.u32 920167782, %v1516
    %v1532 = vshrl.u32 1326507024, %v1517
    %v1533 = vor.u32 %v1531, %v1532
    %vm1534 = vcmp.lt.s32.totalorder %v1515, 1
    %vm1535 = vcmp.lt.s32.totalorder %v1515, 2
    %vm1536 = vcmp.lt.s32.totalorder %v1515, 3
    %vm1537 = vcmp.lt.s32.totalorder %v1515, 4
    %v1538 = vsel %vm1534, %v1518, %v1521
    %v1539 = vsel %vm1537, %v1527, 2102212464
    %v1540 = vsel %vm1536, %v1524, %v1539
    %v1541 = vsel %vm1535, %v1538, %v1540
    %v1542 = vsel %vm1534, %v1521, %v1524
    %v1543 = vsel %vm1537, %v1530, 920167782
    %v1544 = vsel %vm1536, %v1527, %v1543
    %v1545 = vsel %vm1535, %v1542, %v1544
    %v1546 = vsel %vm1534, %v1524, %v1527
    %v1547 = vsel %vm1537, %v1533, 1326507024
    %v1548 = vsel %vm1536, %v1530, %v1547
    %v1549 = vsel %vm1535, %v1546, %v1548
    %v1550 = vshll.u32 %v1510, 8
    %v1551 = vmul.u32.u64.compose %v1550, %v1549
    %v1552 = vextract.low.u32 %v1551
    %v1553 = vextract.high.u32 %v1551
    %v1554 = vmul.u32.u64.compose %v1550, %v1545
    %v1555 = vextract.low.u32 %v1554
    %v1556 = vextract.high.u32 %v1554
    %v1557 = vmul.u32 %v1550, %v1541
    %v1558 = vadd.s32 %v1553, %v1555
    %vm1559 = vc.u32 %v1553, %v1555
    %v1560 = vadd.s32 %v1556, 1
    %v1561 = vsel %vm1559, %v1560, %v1556
    %v1562 = vadd.s32 %v1557, %v1561
    %v1563 = vadd.s32 %v1562, 536870912
    %v1564 = vshrl.u32 %v1563, 30
    %v1565 = vshll.u32 %v1564, 30
    %v1566 = vsub.s32 %v1562, %v1565
    %vm1567 = vcmp.lt.s32.totalorder %v1566, 0
    %v1568 = vsub.s32 0, %v1566
    %v1569 = vsel %vm1567, %v1568, %v1566
    %v1570 = vclz %v1569
    %v1571 = vsub.s32 %v1570, 2
    %vm1572 = vcmp.gt.s32.totalorder 0, %v1571
    %v1573 = vsel %vm1572, 0, %v1571
    %v1574 = vsub.s32 32, %v1573
    %v1575 = vshll.u32 %v1566, %v1573
    %v1576 = vshrl.u32 %v1558, %v1574
    %v1577 = vor.u32 %v1575, %v1576
    %v1578 = vsub.s32 4294967266, %v1573
    %v1579 = vadd.s32 %v1578, 127
    %v1580 = vshll.u32 %v1579, 23
    %v1581 = vor.u32 4788187, %v1580
    %v1582 = vand.u32 2147483647, %v1581
    %v1584 = vcvt.s32.f32 %v1577
    %v1585 = vmul.f32 %v1584, %v1582
    %v1586 = vxor.u32 %v1585, 2147483648
    %v1587 = vsel %vm1504, %v1586, %v1585
    %v1588 = vsub.s32 4, %v1564
    %v1589 = vsel %vm1504, %v1588, %v1564
    %v1590 = vsel %vm1503, %v984, %v1587
    %v1591 = vsel %vm1503, 0, %v1589
    %v1592 = vcosq.f32.pop %v1590
    %v1593 = vsinq.f32.pop %v1590
    %vm1594 = vweird.f32 %v984
    %v1595 = vand.u32 %v1591, 3
    %vm1596 = vcmp.lt.s32.totalorder %v1595, 2
    %vm1597 = vcmp.eq.s32.totalorder %v1595, 0
    %v1598 = vxor.u32 %v1593, 2147483648
    %v1599 = vsel %vm1597, %v1592, %v1598
    %vm1600 = vcmp.eq.s32.totalorder %v1595, 2
    %v1601 = vxor.u32 %v1592, 2147483648
    %v1602 = vsel %vm1600, %v1601, %v1593
    %v1603 = vsel %vm1596, %v1599, %v1602
    %v1604 = vsel %vm1594, nan, %v1603
    %v1605 = vand.u32 2147483647, %v985
    %vm1606 = vcmp.le.f32.partialorder %v1605, 0.7853982
    %vm1607 = vcmp.lt.s32.totalorder %v985, 0
    %v1608 = vand.u32 %v985, 2139095040
    %v1609 = vshrl.u32 %v1608, 23
    %v1610 = vsub.s32 %v1609, 127
    %v1611 = vand.u32 2147483647, %v985
    %v1612 = vand.u32 %v1611, 8388607
    %v1613 = vor.u32 %v1612, 8388608
    %v1614 = vsub.s32 0, %v1613
    %v1615 = vadd.s32 %v1610, 1
    %vm1616 = vcmp.gt.s32.totalorder %v1615, 0
    %v1617 = vsel %vm1616, %v1615, 0
    %v1618 = vshrl.u32 %v1617, 5
    %v1619 = vand.u32 %v1617, 31
    %v1620 = vsub.s32 32, %v1619
    %v1621 = vshrl.u32 683565275, %v1620
    %v1622 = vshll.u32 683565275, %v1619
    %v1623 = vshrl.u32 2475754826, %v1620
    %v1624 = vor.u32 %v1622, %v1623
    %v1625 = vshll.u32 2475754826, %v1619
    %v1626 = vshrl.u32 2131351028, %v1620
    %v1627 = vor.u32 %v1625, %v1626
    %v1628 = vshll.u32 2131351028, %v1619
    %v1629 = vshrl.u32 2102212464, %v1620
    %v1630 = vor.u32 %v1628, %v1629
    %v1631 = vshll.u32 2102212464, %v1619
    %v1632 = vshrl.u32 920167782, %v1620
    %v1633 = vor.u32 %v1631, %v1632
    %v1634 = vshll.u32 920167782, %v1619
    %v1635 = vshrl.u32 1326507024, %v1620
    %v1636 = vor.u32 %v1634, %v1635
    %vm1637 = vcmp.lt.s32.totalorder %v1618, 1
    %vm1638 = vcmp.lt.s32.totalorder %v1618, 2
    %vm1639 = vcmp.lt.s32.totalorder %v1618, 3
    %vm1640 = vcmp.lt.s32.totalorder %v1618, 4
    %v1641 = vsel %vm1637, %v1621, %v1624
    %v1642 = vsel %vm1640, %v1630, 2102212464
    %v1643 = vsel %vm1639, %v1627, %v1642
    %v1644 = vsel %vm1638, %v1641, %v1643
    %v1645 = vsel %vm1637, %v1624, %v1627
    %v1646 = vsel %vm1640, %v1633, 920167782
    %v1647 = vsel %vm1639, %v1630, %v1646
    %v1648 = vsel %vm1638, %v1645, %v1647
    %v1649 = vsel %vm1637, %v1627, %v1630
    %v1650 = vsel %vm1640, %v1636, 1326507024
    %v1651 = vsel %vm1639, %v1633, %v1650
    %v1652 = vsel %vm1638, %v1649, %v1651
    %v1653 = vshll.u32 %v1613, 8
    %v1654 = vmul.u32.u64.compose %v1653, %v1652
    %v1655 = vextract.low.u32 %v1654
    %v1656 = vextract.high.u32 %v1654
    %v1657 = vmul.u32.u64.compose %v1653, %v1648
    %v1658 = vextract.low.u32 %v1657
    %v1659 = vextract.high.u32 %v1657
    %v1660 = vmul.u32 %v1653, %v1644
    %v1661 = vadd.s32 %v1656, %v1658
    %vm1662 = vc.u32 %v1656, %v1658
    %v1663 = vadd.s32 %v1659, 1
    %v1664 = vsel %vm1662, %v1663, %v1659
    %v1665 = vadd.s32 %v1660, %v1664
    %v1666 = vadd.s32 %v1665, 536870912
    %v1667 = vshrl.u32 %v1666, 30
    %v1668 = vshll.u32 %v1667, 30
    %v1669 = vsub.s32 %v1665, %v1668
    %vm1670 = vcmp.lt.s32.totalorder %v1669, 0
    %v1671 = vsub.s32 0, %v1669
    %v1672 = vsel %vm1670, %v1671, %v1669
    %v1673 = vclz %v1672
    %v1674 = vsub.s32 %v1673, 2
    %vm1675 = vcmp.gt.s32.totalorder 0, %v1674
    %v1676 = vsel %vm1675, 0, %v1674
    %v1677 = vsub.s32 32, %v1676
    %v1678 = vshll.u32 %v1669, %v1676
    %v1679 = vshrl.u32 %v1661, %v1677
    %v1680 = vor.u32 %v1678, %v1679
    %v1681 = vsub.s32 4294967266, %v1676
    %v1682 = vadd.s32 %v1681, 127
    %v1683 = vshll.u32 %v1682, 23
    %v1684 = vor.u32 4788187, %v1683
    %v1685 = vand.u32 2147483647, %v1684
    %v1687 = vcvt.s32.f32 %v1680
    %v1688 = vmul.f32 %v1687, %v1685
    %v1689 = vxor.u32 %v1688, 2147483648
    %v1690 = vsel %vm1607, %v1689, %v1688
    %v1691 = vsub.s32 4, %v1667
    %v1692 = vsel %vm1607, %v1691, %v1667
    %v1693 = vsel %vm1606, %v985, %v1690
    %v1694 = vsel %vm1606, 0, %v1692
    %v1695 = vcosq.f32.pop %v1693
    %v1696 = vsinq.f32.pop %v1693
    %vm1697 = vweird.f32 %v985
    %v1698 = vand.u32 %v1694, 3
    %vm1699 = vcmp.lt.s32.totalorder %v1698, 2
    %vm1700 = vcmp.eq.s32.totalorder %v1698, 0
    %v1701 = vxor.u32 %v1696, 2147483648
    %v1702 = vsel %vm1700, %v1695, %v1701
    %vm1703 = vcmp.eq.s32.totalorder %v1698, 2
    %v1704 = vxor.u32 %v1695, 2147483648
    %v1705 = vsel %vm1703, %v1704, %v1696
    %v1706 = vsel %vm1699, %v1702, %v1705
    %v1707 = vsel %vm1697, nan, %v1706
    %v1708 = vand.u32 2147483647, %v986
    %vm1709 = vcmp.le.f32.partialorder %v1708, 0.7853982
    %vm1710 = vcmp.lt.s32.totalorder %v986, 0
    %v1711 = vand.u32 %v986, 2139095040
    %v1712 = vshrl.u32 %v1711, 23
    %v1713 = vsub.s32 %v1712, 127
    %v1714 = vand.u32 2147483647, %v986
    %v1715 = vand.u32 %v1714, 8388607
    %v1716 = vor.u32 %v1715, 8388608
    %v1717 = vsub.s32 0, %v1716
    %v1718 = vadd.s32 %v1713, 1
    %vm1719 = vcmp.gt.s32.totalorder %v1718, 0
    %v1720 = vsel %vm1719, %v1718, 0
    %v1721 = vshrl.u32 %v1720, 5
    %v1722 = vand.u32 %v1720, 31
    %v1723 = vsub.s32 32, %v1722
    %v1724 = vshrl.u32 683565275, %v1723
    %v1725 = vshll.u32 683565275, %v1722
    %v1726 = vshrl.u32 2475754826, %v1723
    %v1727 = vor.u32 %v1725, %v1726
    %v1728 = vshll.u32 2475754826, %v1722
    %v1729 = vshrl.u32 2131351028, %v1723
    %v1730 = vor.u32 %v1728, %v1729
    %v1731 = vshll.u32 2131351028, %v1722
    %v1732 = vshrl.u32 2102212464, %v1723
    %v1733 = vor.u32 %v1731, %v1732
    %v1734 = vshll.u32 2102212464, %v1722
    %v1735 = vshrl.u32 920167782, %v1723
    %v1736 = vor.u32 %v1734, %v1735
    %v1737 = vshll.u32 920167782, %v1722
    %v1738 = vshrl.u32 1326507024, %v1723
    %v1739 = vor.u32 %v1737, %v1738
    %vm1740 = vcmp.lt.s32.totalorder %v1721, 1
    %vm1741 = vcmp.lt.s32.totalorder %v1721, 2
    %vm1742 = vcmp.lt.s32.totalorder %v1721, 3
    %vm1743 = vcmp.lt.s32.totalorder %v1721, 4
    %v1744 = vsel %vm1740, %v1724, %v1727
    %v1745 = vsel %vm1743, %v1733, 2102212464
    %v1746 = vsel %vm1742, %v1730, %v1745
    %v1747 = vsel %vm1741, %v1744, %v1746
    %v1748 = vsel %vm1740, %v1727, %v1730
    %v1749 = vsel %vm1743, %v1736, 920167782
    %v1750 = vsel %vm1742, %v1733, %v1749
    %v1751 = vsel %vm1741, %v1748, %v1750
    %v1752 = vsel %vm1740, %v1730, %v1733
    %v1753 = vsel %vm1743, %v1739, 1326507024
    %v1754 = vsel %vm1742, %v1736, %v1753
    %v1755 = vsel %vm1741, %v1752, %v1754
    %v1756 = vshll.u32 %v1716, 8
    %v1757 = vmul.u32.u64.compose %v1756, %v1755
    %v1758 = vextract.low.u32 %v1757
    %v1759 = vextract.high.u32 %v1757
    %v1760 = vmul.u32.u64.compose %v1756, %v1751
    %v1761 = vextract.low.u32 %v1760
    %v1762 = vextract.high.u32 %v1760
    %v1763 = vmul.u32 %v1756, %v1747
    %v1764 = vadd.s32 %v1759, %v1761
    %vm1765 = vc.u32 %v1759, %v1761
    %v1766 = vadd.s32 %v1762, 1
    %v1767 = vsel %vm1765, %v1766, %v1762
    %v1768 = vadd.s32 %v1763, %v1767
    %v1769 = vadd.s32 %v1768, 536870912
    %v1770 = vshrl.u32 %v1769, 30
    %v1771 = vshll.u32 %v1770, 30
    %v1772 = vsub.s32 %v1768, %v1771
    %vm1773 = vcmp.lt.s32.totalorder %v1772, 0
    %v1774 = vsub.s32 0, %v1772
    %v1775 = vsel %vm1773, %v1774, %v1772
    %v1776 = vclz %v1775
    %v1777 = vsub.s32 %v1776, 2
    %vm1778 = vcmp.gt.s32.totalorder 0, %v1777
    %v1779 = vsel %vm1778, 0, %v1777
    %v1780 = vsub.s32 32, %v1779
    %v1781 = vshll.u32 %v1772, %v1779
    %v1782 = vshrl.u32 %v1764, %v1780
    %v1783 = vor.u32 %v1781, %v1782
    %v1784 = vsub.s32 4294967266, %v1779
    %v1785 = vadd.s32 %v1784, 127
    %v1786 = vshll.u32 %v1785, 23
    %v1787 = vor.u32 4788187, %v1786
    %v1788 = vand.u32 2147483647, %v1787
    %v1790 = vcvt.s32.f32 %v1783
    %v1791 = vmul.f32 %v1790, %v1788
    %v1792 = vxor.u32 %v1791, 2147483648
    %v1793 = vsel %vm1710, %v1792, %v1791
    %v1794 = vsub.s32 4, %v1770
    %v1795 = vsel %vm1710, %v1794, %v1770
    %v1796 = vsel %vm1709, %v986, %v1793
    %v1797 = vsel %vm1709, 0, %v1795
    %v1798 = vcosq.f32.pop %v1796
    %v1799 = vsinq.f32.pop %v1796
    %vm1800 = vweird.f32 %v986
    %v1801 = vand.u32 %v1797, 3
    %vm1802 = vcmp.lt.s32.totalorder %v1801, 2
    %vm1803 = vcmp.eq.s32.totalorder %v1801, 0
    %v1804 = vxor.u32 %v1799, 2147483648
    %v1805 = vsel %vm1803, %v1798, %v1804
    %vm1806 = vcmp.eq.s32.totalorder %v1801, 2
    %v1807 = vxor.u32 %v1798, 2147483648
    %v1808 = vsel %vm1806, %v1807, %v1799
    %v1809 = vsel %vm1802, %v1805, %v1808
    %v1810 = vsel %vm1800, nan, %v1809
    %v1811 = vadd.f32 %v966, %v969
    %v1812 = vsub.f32 %v966, %v969
    %v1813 = vadd.f32 %v1811, %v972
    %v1814 = vsub.f32 %v1811, %v972
    %v1815 = vadd.f32 %v1812, %v972
    %v1816 = vsub.f32 %v1812, %v972
    %v1817 = vand.u32 2147483647, %v1813
    %vm1818 = vcmp.le.f32.partialorder %v1817, 0.7853982
    %vm1819 = vcmp.lt.s32.totalorder %v1813, 0
    %v1820 = vand.u32 %v1813, 2139095040
    %v1821 = vshrl.u32 %v1820, 23
    %v1822 = vsub.s32 %v1821, 127
    %v1823 = vand.u32 2147483647, %v1813
    %v1824 = vand.u32 %v1823, 8388607
    %v1825 = vor.u32 %v1824, 8388608
    %v1826 = vsub.s32 0, %v1825
    %v1827 = vadd.s32 %v1822, 1
    %vm1828 = vcmp.gt.s32.totalorder %v1827, 0
    %v1829 = vsel %vm1828, %v1827, 0
    %v1830 = vshrl.u32 %v1829, 5
    %v1831 = vand.u32 %v1829, 31
    %v1832 = vsub.s32 32, %v1831
    %v1833 = vshrl.u32 683565275, %v1832
    %v1834 = vshll.u32 683565275, %v1831
    %v1835 = vshrl.u32 2475754826, %v1832
    %v1836 = vor.u32 %v1834, %v1835
    %v1837 = vshll.u32 2475754826, %v1831
    %v1838 = vshrl.u32 2131351028, %v1832
    %v1839 = vor.u32 %v1837, %v1838
    %v1840 = vshll.u32 2131351028, %v1831
    %v1841 = vshrl.u32 2102212464, %v1832
    %v1842 = vor.u32 %v1840, %v1841
    %v1843 = vshll.u32 2102212464, %v1831
    %v1844 = vshrl.u32 920167782, %v1832
    %v1845 = vor.u32 %v1843, %v1844
    %v1846 = vshll.u32 920167782, %v1831
    %v1847 = vshrl.u32 1326507024, %v1832
    %v1848 = vor.u32 %v1846, %v1847
    %vm1849 = vcmp.lt.s32.totalorder %v1830, 1
    %vm1850 = vcmp.lt.s32.totalorder %v1830, 2
    %vm1851 = vcmp.lt.s32.totalorder %v1830, 3
    %vm1852 = vcmp.lt.s32.totalorder %v1830, 4
    %v1853 = vsel %vm1849, %v1833, %v1836
    %v1854 = vsel %vm1852, %v1842, 2102212464
    %v1855 = vsel %vm1851, %v1839, %v1854
    %v1856 = vsel %vm1850, %v1853, %v1855
    %v1857 = vsel %vm1849, %v1836, %v1839
    %v1858 = vsel %vm1852, %v1845, 920167782
    %v1859 = vsel %vm1851, %v1842, %v1858
    %v1860 = vsel %vm1850, %v1857, %v1859
    %v1861 = vsel %vm1849, %v1839, %v1842
    %v1862 = vsel %vm1852, %v1848, 1326507024
    %v1863 = vsel %vm1851, %v1845, %v1862
    %v1864 = vsel %vm1850, %v1861, %v1863
    %v1865 = vshll.u32 %v1825, 8
    %v1866 = vmul.u32.u64.compose %v1865, %v1864
    %v1867 = vextract.low.u32 %v1866
    %v1868 = vextract.high.u32 %v1866
    %v1869 = vmul.u32.u64.compose %v1865, %v1860
    %v1870 = vextract.low.u32 %v1869
    %v1871 = vextract.high.u32 %v1869
    %v1872 = vmul.u32 %v1865, %v1856
    %v1873 = vadd.s32 %v1868, %v1870
    %vm1874 = vc.u32 %v1868, %v1870
    %v1875 = vadd.s32 %v1871, 1
    %v1876 = vsel %vm1874, %v1875, %v1871
    %v1877 = vadd.s32 %v1872, %v1876
    %v1878 = vadd.s32 %v1877, 536870912
    %v1879 = vshrl.u32 %v1878, 30
    %v1880 = vshll.u32 %v1879, 30
    %v1881 = vsub.s32 %v1877, %v1880
    %vm1882 = vcmp.lt.s32.totalorder %v1881, 0
    %v1883 = vsub.s32 0, %v1881
    %v1884 = vsel %vm1882, %v1883, %v1881
    %v1885 = vclz %v1884
    %v1886 = vsub.s32 %v1885, 2
    %vm1887 = vcmp.gt.s32.totalorder 0, %v1886
    %v1888 = vsel %vm1887, 0, %v1886
    %v1889 = vsub.s32 32, %v1888
    %v1890 = vshll.u32 %v1881, %v1888
    %v1891 = vshrl.u32 %v1873, %v1889
    %v1892 = vor.u32 %v1890, %v1891
    %v1893 = vsub.s32 4294967266, %v1888
    %v1894 = vadd.s32 %v1893, 127
    %v1895 = vshll.u32 %v1894, 23
    %v1896 = vor.u32 4788187, %v1895
    %v1897 = vand.u32 2147483647, %v1896
    %v1899 = vcvt.s32.f32 %v1892
    %v1900 = vmul.f32 %v1899, %v1897
    %v1901 = vxor.u32 %v1900, 2147483648
    %v1902 = vsel %vm1819, %v1901, %v1900
    %v1903 = vsub.s32 4, %v1879
    %v1904 = vsel %vm1819, %v1903, %v1879
    %v1905 = vsel %vm1818, %v1813, %v1902
    %v1906 = vsel %vm1818, 0, %v1904
    %v1907 = vcosq.f32.pop %v1905
    %v1908 = vsinq.f32.pop %v1905
    %vm1909 = vweird.f32 %v1813
    %v1910 = vand.u32 %v1906, 3
    %vm1911 = vcmp.lt.s32.totalorder %v1910, 2
    %vm1912 = vcmp.eq.s32.totalorder %v1910, 0
    %v1913 = vxor.u32 %v1908, 2147483648
    %v1914 = vsel %vm1912, %v1907, %v1913
    %vm1915 = vcmp.eq.s32.totalorder %v1910, 2
    %v1916 = vxor.u32 %v1907, 2147483648
    %v1917 = vsel %vm1915, %v1916, %v1908
    %v1918 = vsel %vm1911, %v1914, %v1917
    %v1919 = vsel %vm1909, nan, %v1918
    %v1920 = vand.u32 2147483647, %v1814
    %vm1921 = vcmp.le.f32.partialorder %v1920, 0.7853982
    %vm1922 = vcmp.lt.s32.totalorder %v1814, 0
    %v1923 = vand.u32 %v1814, 2139095040
    %v1924 = vshrl.u32 %v1923, 23
    %v1925 = vsub.s32 %v1924, 127
    %v1926 = vand.u32 2147483647, %v1814
    %v1927 = vand.u32 %v1926, 8388607
    %v1928 = vor.u32 %v1927, 8388608
    %v1929 = vsub.s32 0, %v1928
    %v1930 = vadd.s32 %v1925, 1
    %vm1931 = vcmp.gt.s32.totalorder %v1930, 0
    %v1932 = vsel %vm1931, %v1930, 0
    %v1933 = vshrl.u32 %v1932, 5
    %v1934 = vand.u32 %v1932, 31
    %v1935 = vsub.s32 32, %v1934
    %v1936 = vshrl.u32 683565275, %v1935
    %v1937 = vshll.u32 683565275, %v1934
    %v1938 = vshrl.u32 2475754826, %v1935
    %v1939 = vor.u32 %v1937, %v1938
    %v1940 = vshll.u32 2475754826, %v1934
    %v1941 = vshrl.u32 2131351028, %v1935
    %v1942 = vor.u32 %v1940, %v1941
    %v1943 = vshll.u32 2131351028, %v1934
    %v1944 = vshrl.u32 2102212464, %v1935
    %v1945 = vor.u32 %v1943, %v1944
    %v1946 = vshll.u32 2102212464, %v1934
    %v1947 = vshrl.u32 920167782, %v1935
    %v1948 = vor.u32 %v1946, %v1947
    %v1949 = vshll.u32 920167782, %v1934
    %v1950 = vshrl.u32 1326507024, %v1935
    %v1951 = vor.u32 %v1949, %v1950
    %vm1952 = vcmp.lt.s32.totalorder %v1933, 1
    %vm1953 = vcmp.lt.s32.totalorder %v1933, 2
    %vm1954 = vcmp.lt.s32.totalorder %v1933, 3
    %vm1955 = vcmp.lt.s32.totalorder %v1933, 4
    %v1956 = vsel %vm1952, %v1936, %v1939
    %v1957 = vsel %vm1955, %v1945, 2102212464
    %v1958 = vsel %vm1954, %v1942, %v1957
    %v1959 = vsel %vm1953, %v1956, %v1958
    %v1960 = vsel %vm1952, %v1939, %v1942
    %v1961 = vsel %vm1955, %v1948, 920167782
    %v1962 = vsel %vm1954, %v1945, %v1961
    %v1963 = vsel %vm1953, %v1960, %v1962
    %v1964 = vsel %vm1952, %v1942, %v1945
    %v1965 = vsel %vm1955, %v1951, 1326507024
    %v1966 = vsel %vm1954, %v1948, %v1965
    %v1967 = vsel %vm1953, %v1964, %v1966
    %v1968 = vshll.u32 %v1928, 8
    %v1969 = vmul.u32.u64.compose %v1968, %v1967
    %v1970 = vextract.low.u32 %v1969
    %v1971 = vextract.high.u32 %v1969
    %v1972 = vmul.u32.u64.compose %v1968, %v1963
    %v1973 = vextract.low.u32 %v1972
    %v1974 = vextract.high.u32 %v1972
    %v1975 = vmul.u32 %v1968, %v1959
    %v1976 = vadd.s32 %v1971, %v1973
    %vm1977 = vc.u32 %v1971, %v1973
    %v1978 = vadd.s32 %v1974, 1
    %v1979 = vsel %vm1977, %v1978, %v1974
    %v1980 = vadd.s32 %v1975, %v1979
    %v1981 = vadd.s32 %v1980, 536870912
    %v1982 = vshrl.u32 %v1981, 30
    %v1983 = vshll.u32 %v1982, 30
    %v1984 = vsub.s32 %v1980, %v1983
    %vm1985 = vcmp.lt.s32.totalorder %v1984, 0
    %v1986 = vsub.s32 0, %v1984
    %v1987 = vsel %vm1985, %v1986, %v1984
    %v1988 = vclz %v1987
    %v1989 = vsub.s32 %v1988, 2
    %vm1990 = vcmp.gt.s32.totalorder 0, %v1989
    %v1991 = vsel %vm1990, 0, %v1989
    %v1992 = vsub.s32 32, %v1991
    %v1993 = vshll.u32 %v1984, %v1991
    %v1994 = vshrl.u32 %v1976, %v1992
    %v1995 = vor.u32 %v1993, %v1994
    %v1996 = vsub.s32 4294967266, %v1991
    %v1997 = vadd.s32 %v1996, 127
    %v1998 = vshll.u32 %v1997, 23
    %v1999 = vor.u32 4788187, %v1998
    %v2000 = vand.u32 2147483647, %v1999
    %v2002 = vcvt.s32.f32 %v1995
    %v2003 = vmul.f32 %v2002, %v2000
    %v2004 = vxor.u32 %v2003, 2147483648
    %v2005 = vsel %vm1922, %v2004, %v2003
    %v2006 = vsub.s32 4, %v1982
    %v2007 = vsel %vm1922, %v2006, %v1982
    %v2008 = vsel %vm1921, %v1814, %v2005
    %v2009 = vsel %vm1921, 0, %v2007
    %v2010 = vcosq.f32.pop %v2008
    %v2011 = vsinq.f32.pop %v2008
    %vm2012 = vweird.f32 %v1814
    %v2013 = vand.u32 %v2009, 3
    %vm2014 = vcmp.lt.s32.totalorder %v2013, 2
    %vm2015 = vcmp.eq.s32.totalorder %v2013, 0
    %v2016 = vxor.u32 %v2011, 2147483648
    %v2017 = vsel %vm2015, %v2010, %v2016
    %vm2018 = vcmp.eq.s32.totalorder %v2013, 2
    %v2019 = vxor.u32 %v2010, 2147483648
    %v2020 = vsel %vm2018, %v2019, %v2011
    %v2021 = vsel %vm2014, %v2017, %v2020
    %v2022 = vsel %vm2012, nan, %v2021
    %v2023 = vand.u32 2147483647, %v1815
    %vm2024 = vcmp.le.f32.partialorder %v2023, 0.7853982
    %vm2025 = vcmp.lt.s32.totalorder %v1815, 0
    %v2026 = vand.u32 %v1815, 2139095040
    %v2027 = vshrl.u32 %v2026, 23
    %v2028 = vsub.s32 %v2027, 127
    %v2029 = vand.u32 2147483647, %v1815
    %v2030 = vand.u32 %v2029, 8388607
    %v2031 = vor.u32 %v2030, 8388608
    %v2032 = vsub.s32 0, %v2031
    %v2033 = vadd.s32 %v2028, 1
    %vm2034 = vcmp.gt.s32.totalorder %v2033, 0
    %v2035 = vsel %vm2034, %v2033, 0
    %v2036 = vshrl.u32 %v2035, 5
    %v2037 = vand.u32 %v2035, 31
    %v2038 = vsub.s32 32, %v2037
    %v2039 = vshrl.u32 683565275, %v2038
    %v2040 = vshll.u32 683565275, %v2037
    %v2041 = vshrl.u32 2475754826, %v2038
    %v2042 = vor.u32 %v2040, %v2041
    %v2043 = vshll.u32 2475754826, %v2037
    %v2044 = vshrl.u32 2131351028, %v2038
    %v2045 = vor.u32 %v2043, %v2044
    %v2046 = vshll.u32 2131351028, %v2037
    %v2047 = vshrl.u32 2102212464, %v2038
    %v2048 = vor.u32 %v2046, %v2047
    %v2049 = vshll.u32 2102212464, %v2037
    %v2050 = vshrl.u32 920167782, %v2038
    %v2051 = vor.u32 %v2049, %v2050
    %v2052 = vshll.u32 920167782, %v2037
    %v2053 = vshrl.u32 1326507024, %v2038
    %v2054 = vor.u32 %v2052, %v2053
    %vm2055 = vcmp.lt.s32.totalorder %v2036, 1
    %vm2056 = vcmp.lt.s32.totalorder %v2036, 2
    %vm2057 = vcmp.lt.s32.totalorder %v2036, 3
    %vm2058 = vcmp.lt.s32.totalorder %v2036, 4
    %v2059 = vsel %vm2055, %v2039, %v2042
    %v2060 = vsel %vm2058, %v2048, 2102212464
    %v2061 = vsel %vm2057, %v2045, %v2060
    %v2062 = vsel %vm2056, %v2059, %v2061
    %v2063 = vsel %vm2055, %v2042, %v2045
    %v2064 = vsel %vm2058, %v2051, 920167782
    %v2065 = vsel %vm2057, %v2048, %v2064
    %v2066 = vsel %vm2056, %v2063, %v2065
    %v2067 = vsel %vm2055, %v2045, %v2048
    %v2068 = vsel %vm2058, %v2054, 1326507024
    %v2069 = vsel %vm2057, %v2051, %v2068
    %v2070 = vsel %vm2056, %v2067, %v2069
    %v2071 = vshll.u32 %v2031, 8
    %v2072 = vmul.u32.u64.compose %v2071, %v2070
    %v2073 = vextract.low.u32 %v2072
    %v2074 = vextract.high.u32 %v2072
    %v2075 = vmul.u32.u64.compose %v2071, %v2066
    %v2076 = vextract.low.u32 %v2075
    %v2077 = vextract.high.u32 %v2075
    %v2078 = vmul.u32 %v2071, %v2062
    %v2079 = vadd.s32 %v2074, %v2076
    %vm2080 = vc.u32 %v2074, %v2076
    %v2081 = vadd.s32 %v2077, 1
    %v2082 = vsel %vm2080, %v2081, %v2077
    %v2083 = vadd.s32 %v2078, %v2082
    %v2084 = vadd.s32 %v2083, 536870912
    %v2085 = vshrl.u32 %v2084, 30
    %v2086 = vshll.u32 %v2085, 30
    %v2087 = vsub.s32 %v2083, %v2086
    %vm2088 = vcmp.lt.s32.totalorder %v2087, 0
    %v2089 = vsub.s32 0, %v2087
    %v2090 = vsel %vm2088, %v2089, %v2087
    %v2091 = vclz %v2090
    %v2092 = vsub.s32 %v2091, 2
    %vm2093 = vcmp.gt.s32.totalorder 0, %v2092
    %v2094 = vsel %vm2093, 0, %v2092
    %v2095 = vsub.s32 32, %v2094
    %v2096 = vshll.u32 %v2087, %v2094
    %v2097 = vshrl.u32 %v2079, %v2095
    %v2098 = vor.u32 %v2096, %v2097
    %v2099 = vsub.s32 4294967266, %v2094
    %v2100 = vadd.s32 %v2099, 127
    %v2101 = vshll.u32 %v2100, 23
    %v2102 = vor.u32 4788187, %v2101
    %v2103 = vand.u32 2147483647, %v2102
    %v2105 = vcvt.s32.f32 %v2098
    %v2106 = vmul.f32 %v2105, %v2103
    %v2107 = vxor.u32 %v2106, 2147483648
    %v2108 = vsel %vm2025, %v2107, %v2106
    %v2109 = vsub.s32 4, %v2085
    %v2110 = vsel %vm2025, %v2109, %v2085
    %v2111 = vsel %vm2024, %v1815, %v2108
    %v2112 = vsel %vm2024, 0, %v2110
    %v2113 = vcosq.f32.pop %v2111
    %v2114 = vsinq.f32.pop %v2111
    %vm2115 = vweird.f32 %v1815
    %v2116 = vand.u32 %v2112, 3
    %vm2117 = vcmp.lt.s32.totalorder %v2116, 2
    %vm2118 = vcmp.eq.s32.totalorder %v2116, 0
    %v2119 = vxor.u32 %v2114, 2147483648
    %v2120 = vsel %vm2118, %v2113, %v2119
    %vm2121 = vcmp.eq.s32.totalorder %v2116, 2
    %v2122 = vxor.u32 %v2113, 2147483648
    %v2123 = vsel %vm2121, %v2122, %v2114
    %v2124 = vsel %vm2117, %v2120, %v2123
    %v2125 = vsel %vm2115, nan, %v2124
    %v2126 = vand.u32 2147483647, %v1816
    %vm2127 = vcmp.le.f32.partialorder %v2126, 0.7853982
    %vm2128 = vcmp.lt.s32.totalorder %v1816, 0
    %v2129 = vand.u32 %v1816, 2139095040
    %v2130 = vshrl.u32 %v2129, 23
    %v2131 = vsub.s32 %v2130, 127
    %v2132 = vand.u32 2147483647, %v1816
    %v2133 = vand.u32 %v2132, 8388607
    %v2134 = vor.u32 %v2133, 8388608
    %v2135 = vsub.s32 0, %v2134
    %v2136 = vadd.s32 %v2131, 1
    %vm2137 = vcmp.gt.s32.totalorder %v2136, 0
    %v2138 = vsel %vm2137, %v2136, 0
    %v2139 = vshrl.u32 %v2138, 5
    %v2140 = vand.u32 %v2138, 31
    %v2141 = vsub.s32 32, %v2140
    %v2142 = vshrl.u32 683565275, %v2141
    %v2143 = vshll.u32 683565275, %v2140
    %v2144 = vshrl.u32 2475754826, %v2141
    %v2145 = vor.u32 %v2143, %v2144
    %v2146 = vshll.u32 2475754826, %v2140
    %v2147 = vshrl.u32 2131351028, %v2141
    %v2148 = vor.u32 %v2146, %v2147
    %v2149 = vshll.u32 2131351028, %v2140
    %v2150 = vshrl.u32 2102212464, %v2141
    %v2151 = vor.u32 %v2149, %v2150
    %v2152 = vshll.u32 2102212464, %v2140
    %v2153 = vshrl.u32 920167782, %v2141
    %v2154 = vor.u32 %v2152, %v2153
    %v2155 = vshll.u32 920167782, %v2140
    %v2156 = vshrl.u32 1326507024, %v2141
    %v2157 = vor.u32 %v2155, %v2156
    %vm2158 = vcmp.lt.s32.totalorder %v2139, 1
    %vm2159 = vcmp.lt.s32.totalorder %v2139, 2
    %vm2160 = vcmp.lt.s32.totalorder %v2139, 3
    %vm2161 = vcmp.lt.s32.totalorder %v2139, 4
    %v2162 = vsel %vm2158, %v2142, %v2145
    %v2163 = vsel %vm2161, %v2151, 2102212464
    %v2164 = vsel %vm2160, %v2148, %v2163
    %v2165 = vsel %vm2159, %v2162, %v2164
    %v2166 = vsel %vm2158, %v2145, %v2148
    %v2167 = vsel %vm2161, %v2154, 920167782
    %v2168 = vsel %vm2160, %v2151, %v2167
    %v2169 = vsel %vm2159, %v2166, %v2168
    %v2170 = vsel %vm2158, %v2148, %v2151
    %v2171 = vsel %vm2161, %v2157, 1326507024
    %v2172 = vsel %vm2160, %v2154, %v2171
    %v2173 = vsel %vm2159, %v2170, %v2172
    %v2174 = vshll.u32 %v2134, 8
    %v2175 = vmul.u32.u64.compose %v2174, %v2173
    %v2176 = vextract.low.u32 %v2175
    %v2177 = vextract.high.u32 %v2175
    %v2178 = vmul.u32.u64.compose %v2174, %v2169
    %v2179 = vextract.low.u32 %v2178
    %v2180 = vextract.high.u32 %v2178
    %v2181 = vmul.u32 %v2174, %v2165
    %v2182 = vadd.s32 %v2177, %v2179
    %vm2183 = vc.u32 %v2177, %v2179
    %v2184 = vadd.s32 %v2180, 1
    %v2185 = vsel %vm2183, %v2184, %v2180
    %v2186 = vadd.s32 %v2181, %v2185
    %v2187 = vadd.s32 %v2186, 536870912
    %v2188 = vshrl.u32 %v2187, 30
    %v2189 = vshll.u32 %v2188, 30
    %v2190 = vsub.s32 %v2186, %v2189
    %vm2191 = vcmp.lt.s32.totalorder %v2190, 0
    %v2192 = vsub.s32 0, %v2190
    %v2193 = vsel %vm2191, %v2192, %v2190
    %v2194 = vclz %v2193
    %v2195 = vsub.s32 %v2194, 2
    %vm2196 = vcmp.gt.s32.totalorder 0, %v2195
    %v2197 = vsel %vm2196, 0, %v2195
    %v2198 = vsub.s32 32, %v2197
    %v2199 = vshll.u32 %v2190, %v2197
    %v2200 = vshrl.u32 %v2182, %v2198
    %v2201 = vor.u32 %v2199, %v2200
    %v2202 = vsub.s32 4294967266, %v2197
    %v2203 = vadd.s32 %v2202, 127
    %v2204 = vshll.u32 %v2203, 23
    %v2205 = vor.u32 4788187, %v2204
    %v2206 = vand.u32 2147483647, %v2205
    %v2208 = vcvt.s32.f32 %v2201
    %v2209 = vmul.f32 %v2208, %v2206
    %v2210 = vxor.u32 %v2209, 2147483648
    %v2211 = vsel %vm2128, %v2210, %v2209
    %v2212 = vsub.s32 4, %v2188
    %v2213 = vsel %vm2128, %v2212, %v2188
    %v2214 = vsel %vm2127, %v1816, %v2211
    %v2215 = vsel %vm2127, 0, %v2213
    %v2216 = vcosq.f32.pop %v2214
    %v2217 = vsinq.f32.pop %v2214
    %vm2218 = vweird.f32 %v1816
    %v2219 = vand.u32 %v2215, 3
    %vm2220 = vcmp.lt.s32.totalorder %v2219, 2
    %vm2221 = vcmp.eq.s32.totalorder %v2219, 0
    %v2222 = vxor.u32 %v2217, 2147483648
    %v2223 = vsel %vm2221, %v2216, %v2222
    %vm2224 = vcmp.eq.s32.totalorder %v2219, 2
    %v2225 = vxor.u32 %v2216, 2147483648
    %v2226 = vsel %vm2224, %v2225, %v2217
    %v2227 = vsel %vm2220, %v2223, %v2226
    %v2228 = vsel %vm2218, nan, %v2227
    %v2229 = vand.u32 2147483647, %v1813
    %vm2230 = vcmp.le.f32.partialorder %v2229, 0.7853982
    %vm2231 = vcmp.lt.s32.totalorder %v1813, 0
    %v2232 = vand.u32 %v1813, 2139095040
    %v2233 = vshrl.u32 %v2232, 23
    %v2234 = vsub.s32 %v2233, 127
    %v2235 = vand.u32 2147483647, %v1813
    %v2236 = vand.u32 %v2235, 8388607
    %v2237 = vor.u32 %v2236, 8388608
    %v2238 = vsub.s32 0, %v2237
    %v2239 = vadd.s32 %v2234, 1
    %vm2240 = vcmp.gt.s32.totalorder %v2239, 0
    %v2241 = vsel %vm2240, %v2239, 0
    %v2242 = vshrl.u32 %v2241, 5
    %v2243 = vand.u32 %v2241, 31
    %v2244 = vsub.s32 32, %v2243
    %v2245 = vshrl.u32 683565275, %v2244
    %v2246 = vshll.u32 683565275, %v2243
    %v2247 = vshrl.u32 2475754826, %v2244
    %v2248 = vor.u32 %v2246, %v2247
    %v2249 = vshll.u32 2475754826, %v2243
    %v2250 = vshrl.u32 2131351028, %v2244
    %v2251 = vor.u32 %v2249, %v2250
    %v2252 = vshll.u32 2131351028, %v2243
    %v2253 = vshrl.u32 2102212464, %v2244
    %v2254 = vor.u32 %v2252, %v2253
    %v2255 = vshll.u32 2102212464, %v2243
    %v2256 = vshrl.u32 920167782, %v2244
    %v2257 = vor.u32 %v2255, %v2256
    %v2258 = vshll.u32 920167782, %v2243
    %v2259 = vshrl.u32 1326507024, %v2244
    %v2260 = vor.u32 %v2258, %v2259
    %vm2261 = vcmp.lt.s32.totalorder %v2242, 1
    %vm2262 = vcmp.lt.s32.totalorder %v2242, 2
    %vm2263 = vcmp.lt.s32.totalorder %v2242, 3
    %vm2264 = vcmp.lt.s32.totalorder %v2242, 4
    %v2265 = vsel %vm2261, %v2245, %v2248
    %v2266 = vsel %vm2264, %v2254, 2102212464
    %v2267 = vsel %vm2263, %v2251, %v2266
    %v2268 = vsel %vm2262, %v2265, %v2267
    %v2269 = vsel %vm2261, %v2248, %v2251
    %v2270 = vsel %vm2264, %v2257, 920167782
    %v2271 = vsel %vm2263, %v2254, %v2270
    %v2272 = vsel %vm2262, %v2269, %v2271
    %v2273 = vsel %vm2261, %v2251, %v2254
    %v2274 = vsel %vm2264, %v2260, 1326507024
    %v2275 = vsel %vm2263, %v2257, %v2274
    %v2276 = vsel %vm2262, %v2273, %v2275
    %v2277 = vshll.u32 %v2237, 8
    %v2278 = vmul.u32.u64.compose %v2277, %v2276
    %v2279 = vextract.low.u32 %v2278
    %v2280 = vextract.high.u32 %v2278
    %v2281 = vmul.u32.u64.compose %v2277, %v2272
    %v2282 = vextract.low.u32 %v2281
    %v2283 = vextract.high.u32 %v2281
    %v2284 = vmul.u32 %v2277, %v2268
    %v2285 = vadd.s32 %v2280, %v2282
    %vm2286 = vc.u32 %v2280, %v2282
    %v2287 = vadd.s32 %v2283, 1
    %v2288 = vsel %vm2286, %v2287, %v2283
    %v2289 = vadd.s32 %v2284, %v2288
    %v2290 = vadd.s32 %v2289, 536870912
    %v2291 = vshrl.u32 %v2290, 30
    %v2292 = vshll.u32 %v2291, 30
    %v2293 = vsub.s32 %v2289, %v2292
    %vm2294 = vcmp.lt.s32.totalorder %v2293, 0
    %v2295 = vsub.s32 0, %v2293
    %v2296 = vsel %vm2294, %v2295, %v2293
    %v2297 = vclz %v2296
    %v2298 = vsub.s32 %v2297, 2
    %vm2299 = vcmp.gt.s32.totalorder 0, %v2298
    %v2300 = vsel %vm2299, 0, %v2298
    %v2301 = vsub.s32 32, %v2300
    %v2302 = vshll.u32 %v2293, %v2300
    %v2303 = vshrl.u32 %v2285, %v2301
    %v2304 = vor.u32 %v2302, %v2303
    %v2305 = vsub.s32 4294967266, %v2300
    %v2306 = vadd.s32 %v2305, 127
    %v2307 = vshll.u32 %v2306, 23
    %v2308 = vor.u32 4788187, %v2307
    %v2309 = vand.u32 2147483647, %v2308
    %v2311 = vcvt.s32.f32 %v2304
    %v2312 = vmul.f32 %v2311, %v2309
    %v2313 = vxor.u32 %v2312, 2147483648
    %v2314 = vsel %vm2231, %v2313, %v2312
    %v2315 = vsub.s32 4, %v2291
    %v2316 = vsel %vm2231, %v2315, %v2291
    %v2317 = vsel %vm2230, %v1813, %v2314
    %v2318 = vsel %vm2230, 0, %v2316
    %v2319 = vcosq.f32.pop %v2317
    %v2320 = vsinq.f32.pop %v2317
    %vm2321 = vweird.f32 %v1813
    %v2322 = vadd.s32 %v2318, 3
    %v2323 = vand.u32 %v2322, 3
    %vm2324 = vcmp.lt.s32.totalorder %v2323, 2
    %vm2325 = vcmp.eq.s32.totalorder %v2323, 0
    %v2326 = vxor.u32 %v2320, 2147483648
    %v2327 = vsel %vm2325, %v2319, %v2326
    %vm2328 = vcmp.eq.s32.totalorder %v2323, 2
    %v2329 = vxor.u32 %v2319, 2147483648
    %v2330 = vsel %vm2328, %v2329, %v2320
    %v2331 = vsel %vm2324, %v2327, %v2330
    %v2332 = vsel %vm2321, nan, %v2331
    %v2333 = vand.u32 2147483647, %v1814
    %vm2334 = vcmp.le.f32.partialorder %v2333, 0.7853982
    %vm2335 = vcmp.lt.s32.totalorder %v1814, 0
    %v2336 = vand.u32 %v1814, 2139095040
    %v2337 = vshrl.u32 %v2336, 23
    %v2338 = vsub.s32 %v2337, 127
    %v2339 = vand.u32 2147483647, %v1814
    %v2340 = vand.u32 %v2339, 8388607
    %v2341 = vor.u32 %v2340, 8388608
    %v2342 = vsub.s32 0, %v2341
    %v2343 = vadd.s32 %v2338, 1
    %vm2344 = vcmp.gt.s32.totalorder %v2343, 0
    %v2345 = vsel %vm2344, %v2343, 0
    %v2346 = vshrl.u32 %v2345, 5
    %v2347 = vand.u32 %v2345, 31
    %v2348 = vsub.s32 32, %v2347
    %v2349 = vshrl.u32 683565275, %v2348
    %v2350 = vshll.u32 683565275, %v2347
    %v2351 = vshrl.u32 2475754826, %v2348
    %v2352 = vor.u32 %v2350, %v2351
    %v2353 = vshll.u32 2475754826, %v2347
    %v2354 = vshrl.u32 2131351028, %v2348
    %v2355 = vor.u32 %v2353, %v2354
    %v2356 = vshll.u32 2131351028, %v2347
    %v2357 = vshrl.u32 2102212464, %v2348
    %v2358 = vor.u32 %v2356, %v2357
    %v2359 = vshll.u32 2102212464, %v2347
    %v2360 = vshrl.u32 920167782, %v2348
    %v2361 = vor.u32 %v2359, %v2360
    %v2362 = vshll.u32 920167782, %v2347
    %v2363 = vshrl.u32 1326507024, %v2348
    %v2364 = vor.u32 %v2362, %v2363
    %vm2365 = vcmp.lt.s32.totalorder %v2346, 1
    %vm2366 = vcmp.lt.s32.totalorder %v2346, 2
    %vm2367 = vcmp.lt.s32.totalorder %v2346, 3
    %vm2368 = vcmp.lt.s32.totalorder %v2346, 4
    %v2369 = vsel %vm2365, %v2349, %v2352
    %v2370 = vsel %vm2368, %v2358, 2102212464
    %v2371 = vsel %vm2367, %v2355, %v2370
    %v2372 = vsel %vm2366, %v2369, %v2371
    %v2373 = vsel %vm2365, %v2352, %v2355
    %v2374 = vsel %vm2368, %v2361, 920167782
    %v2375 = vsel %vm2367, %v2358, %v2374
    %v2376 = vsel %vm2366, %v2373, %v2375
    %v2377 = vsel %vm2365, %v2355, %v2358
    %v2378 = vsel %vm2368, %v2364, 1326507024
    %v2379 = vsel %vm2367, %v2361, %v2378
    %v2380 = vsel %vm2366, %v2377, %v2379
    %v2381 = vshll.u32 %v2341, 8
    %v2382 = vmul.u32.u64.compose %v2381, %v2380
    %v2383 = vextract.low.u32 %v2382
    %v2384 = vextract.high.u32 %v2382
    %v2385 = vmul.u32.u64.compose %v2381, %v2376
    %v2386 = vextract.low.u32 %v2385
    %v2387 = vextract.high.u32 %v2385
    %v2388 = vmul.u32 %v2381, %v2372
    %v2389 = vadd.s32 %v2384, %v2386
    %vm2390 = vc.u32 %v2384, %v2386
    %v2391 = vadd.s32 %v2387, 1
    %v2392 = vsel %vm2390, %v2391, %v2387
    %v2393 = vadd.s32 %v2388, %v2392
    %v2394 = vadd.s32 %v2393, 536870912
    %v2395 = vshrl.u32 %v2394, 30
    %v2396 = vshll.u32 %v2395, 30
    %v2397 = vsub.s32 %v2393, %v2396
    %vm2398 = vcmp.lt.s32.totalorder %v2397, 0
    %v2399 = vsub.s32 0, %v2397
    %v2400 = vsel %vm2398, %v2399, %v2397
    %v2401 = vclz %v2400
    %v2402 = vsub.s32 %v2401, 2
    %vm2403 = vcmp.gt.s32.totalorder 0, %v2402
    %v2404 = vsel %vm2403, 0, %v2402
    %v2405 = vsub.s32 32, %v2404
    %v2406 = vshll.u32 %v2397, %v2404
    %v2407 = vshrl.u32 %v2389, %v2405
    %v2408 = vor.u32 %v2406, %v2407
    %v2409 = vsub.s32 4294967266, %v2404
    %v2410 = vadd.s32 %v2409, 127
    %v2411 = vshll.u32 %v2410, 23
    %v2412 = vor.u32 4788187, %v2411
    %v2413 = vand.u32 2147483647, %v2412
    %v2415 = vcvt.s32.f32 %v2408
    %v2416 = vmul.f32 %v2415, %v2413
    %v2417 = vxor.u32 %v2416, 2147483648
    %v2418 = vsel %vm2335, %v2417, %v2416
    %v2419 = vsub.s32 4, %v2395
    %v2420 = vsel %vm2335, %v2419, %v2395
    %v2421 = vsel %vm2334, %v1814, %v2418
    %v2422 = vsel %vm2334, 0, %v2420
    %v2423 = vcosq.f32.pop %v2421
    %v2424 = vsinq.f32.pop %v2421
    %vm2425 = vweird.f32 %v1814
    %v2426 = vadd.s32 %v2422, 3
    %v2427 = vand.u32 %v2426, 3
    %vm2428 = vcmp.lt.s32.totalorder %v2427, 2
    %vm2429 = vcmp.eq.s32.totalorder %v2427, 0
    %v2430 = vxor.u32 %v2424, 2147483648
    %v2431 = vsel %vm2429, %v2423, %v2430
    %vm2432 = vcmp.eq.s32.totalorder %v2427, 2
    %v2433 = vxor.u32 %v2423, 2147483648
    %v2434 = vsel %vm2432, %v2433, %v2424
    %v2435 = vsel %vm2428, %v2431, %v2434
    %v2436 = vsel %vm2425, nan, %v2435
    %v2437 = vand.u32 2147483647, %v1815
    %vm2438 = vcmp.le.f32.partialorder %v2437, 0.7853982
    %vm2439 = vcmp.lt.s32.totalorder %v1815, 0
    %v2440 = vand.u32 %v1815, 2139095040
    %v2441 = vshrl.u32 %v2440, 23
    %v2442 = vsub.s32 %v2441, 127
    %v2443 = vand.u32 2147483647, %v1815
    %v2444 = vand.u32 %v2443, 8388607
    %v2445 = vor.u32 %v2444, 8388608
    %v2446 = vsub.s32 0, %v2445
    %v2447 = vadd.s32 %v2442, 1
    %vm2448 = vcmp.gt.s32.totalorder %v2447, 0
    %v2449 = vsel %vm2448, %v2447, 0
    %v2450 = vshrl.u32 %v2449, 5
    %v2451 = vand.u32 %v2449, 31
    %v2452 = vsub.s32 32, %v2451
    %v2453 = vshrl.u32 683565275, %v2452
    %v2454 = vshll.u32 683565275, %v2451
    %v2455 = vshrl.u32 2475754826, %v2452
    %v2456 = vor.u32 %v2454, %v2455
    %v2457 = vshll.u32 2475754826, %v2451
    %v2458 = vshrl.u32 2131351028, %v2452
    %v2459 = vor.u32 %v2457, %v2458
    %v2460 = vshll.u32 2131351028, %v2451
    %v2461 = vshrl.u32 2102212464, %v2452
    %v2462 = vor.u32 %v2460, %v2461
    %v2463 = vshll.u32 2102212464, %v2451
    %v2464 = vshrl.u32 920167782, %v2452
    %v2465 = vor.u32 %v2463, %v2464
    %v2466 = vshll.u32 920167782, %v2451
    %v2467 = vshrl.u32 1326507024, %v2452
    %v2468 = vor.u32 %v2466, %v2467
    %vm2469 = vcmp.lt.s32.totalorder %v2450, 1
    %vm2470 = vcmp.lt.s32.totalorder %v2450, 2
    %vm2471 = vcmp.lt.s32.totalorder %v2450, 3
    %vm2472 = vcmp.lt.s32.totalorder %v2450, 4
    %v2473 = vsel %vm2469, %v2453, %v2456
    %v2474 = vsel %vm2472, %v2462, 2102212464
    %v2475 = vsel %vm2471, %v2459, %v2474
    %v2476 = vsel %vm2470, %v2473, %v2475
    %v2477 = vsel %vm2469, %v2456, %v2459
    %v2478 = vsel %vm2472, %v2465, 920167782
    %v2479 = vsel %vm2471, %v2462, %v2478
    %v2480 = vsel %vm2470, %v2477, %v2479
    %v2481 = vsel %vm2469, %v2459, %v2462
    %v2482 = vsel %vm2472, %v2468, 1326507024
    %v2483 = vsel %vm2471, %v2465, %v2482
    %v2484 = vsel %vm2470, %v2481, %v2483
    %v2485 = vshll.u32 %v2445, 8
    %v2486 = vmul.u32.u64.compose %v2485, %v2484
    %v2487 = vextract.low.u32 %v2486
    %v2488 = vextract.high.u32 %v2486
    %v2489 = vmul.u32.u64.compose %v2485, %v2480
    %v2490 = vextract.low.u32 %v2489
    %v2491 = vextract.high.u32 %v2489
    %v2492 = vmul.u32 %v2485, %v2476
    %v2493 = vadd.s32 %v2488, %v2490
    %vm2494 = vc.u32 %v2488, %v2490
    %v2495 = vadd.s32 %v2491, 1
    %v2496 = vsel %vm2494, %v2495, %v2491
    %v2497 = vadd.s32 %v2492, %v2496
    %v2498 = vadd.s32 %v2497, 536870912
    %v2499 = vshrl.u32 %v2498, 30
    %v2500 = vshll.u32 %v2499, 30
    %v2501 = vsub.s32 %v2497, %v2500
    %vm2502 = vcmp.lt.s32.totalorder %v2501, 0
    %v2503 = vsub.s32 0, %v2501
    %v2504 = vsel %vm2502, %v2503, %v2501
    %v2505 = vclz %v2504
    %v2506 = vsub.s32 %v2505, 2
    %vm2507 = vcmp.gt.s32.totalorder 0, %v2506
    %v2508 = vsel %vm2507, 0, %v2506
    %v2509 = vsub.s32 32, %v2508
    %v2510 = vshll.u32 %v2501, %v2508
    %v2511 = vshrl.u32 %v2493, %v2509
    %v2512 = vor.u32 %v2510, %v2511
    %v2513 = vsub.s32 4294967266, %v2508
    %v2514 = vadd.s32 %v2513, 127
    %v2515 = vshll.u32 %v2514, 23
    %v2516 = vor.u32 4788187, %v2515
    %v2517 = vand.u32 2147483647, %v2516
    %v2519 = vcvt.s32.f32 %v2512
    %v2520 = vmul.f32 %v2519, %v2517
    %v2521 = vxor.u32 %v2520, 2147483648
    %v2522 = vsel %vm2439, %v2521, %v2520
    %v2523 = vsub.s32 4, %v2499
    %v2524 = vsel %vm2439, %v2523, %v2499
    %v2525 = vsel %vm2438, %v1815, %v2522
    %v2526 = vsel %vm2438, 0, %v2524
    %v2527 = vcosq.f32.pop %v2525
    %v2528 = vsinq.f32.pop %v2525
    %vm2529 = vweird.f32 %v1815
    %v2530 = vadd.s32 %v2526, 3
    %v2531 = vand.u32 %v2530, 3
    %vm2532 = vcmp.lt.s32.totalorder %v2531, 2
    %vm2533 = vcmp.eq.s32.totalorder %v2531, 0
    %v2534 = vxor.u32 %v2528, 2147483648
    %v2535 = vsel %vm2533, %v2527, %v2534
    %vm2536 = vcmp.eq.s32.totalorder %v2531, 2
    %v2537 = vxor.u32 %v2527, 2147483648
    %v2538 = vsel %vm2536, %v2537, %v2528
    %v2539 = vsel %vm2532, %v2535, %v2538
    %v2540 = vsel %vm2529, nan, %v2539
    %v2541 = vand.u32 2147483647, %v1816
    %vm2542 = vcmp.le.f32.partialorder %v2541, 0.7853982
    %vm2543 = vcmp.lt.s32.totalorder %v1816, 0
    %v2544 = vand.u32 %v1816, 2139095040
    %v2545 = vshrl.u32 %v2544, 23
    %v2546 = vsub.s32 %v2545, 127
    %v2547 = vand.u32 2147483647, %v1816
    %v2548 = vand.u32 %v2547, 8388607
    %v2549 = vor.u32 %v2548, 8388608
    %v2550 = vsub.s32 0, %v2549
    %v2551 = vadd.s32 %v2546, 1
    %vm2552 = vcmp.gt.s32.totalorder %v2551, 0
    %v2553 = vsel %vm2552, %v2551, 0
    %v2554 = vshrl.u32 %v2553, 5
    %v2555 = vand.u32 %v2553, 31
    %v2556 = vsub.s32 32, %v2555
    %v2557 = vshrl.u32 683565275, %v2556
    %v2558 = vshll.u32 683565275, %v2555
    %v2559 = vshrl.u32 2475754826, %v2556
    %v2560 = vor.u32 %v2558, %v2559
    %v2561 = vshll.u32 2475754826, %v2555
    %v2562 = vshrl.u32 2131351028, %v2556
    %v2563 = vor.u32 %v2561, %v2562
    %v2564 = vshll.u32 2131351028, %v2555
    %v2565 = vshrl.u32 2102212464, %v2556
    %v2566 = vor.u32 %v2564, %v2565
    %v2567 = vshll.u32 2102212464, %v2555
    %v2568 = vshrl.u32 920167782, %v2556
    %v2569 = vor.u32 %v2567, %v2568
    %v2570 = vshll.u32 920167782, %v2555
    %v2571 = vshrl.u32 1326507024, %v2556
    %v2572 = vor.u32 %v2570, %v2571
    %vm2573 = vcmp.lt.s32.totalorder %v2554, 1
    %vm2574 = vcmp.lt.s32.totalorder %v2554, 2
    %vm2575 = vcmp.lt.s32.totalorder %v2554, 3
    %vm2576 = vcmp.lt.s32.totalorder %v2554, 4
    %v2577 = vsel %vm2573, %v2557, %v2560
    %v2578 = vsel %vm2576, %v2566, 2102212464
    %v2579 = vsel %vm2575, %v2563, %v2578
    %v2580 = vsel %vm2574, %v2577, %v2579
    %v2581 = vsel %vm2573, %v2560, %v2563
    %v2582 = vsel %vm2576, %v2569, 920167782
    %v2583 = vsel %vm2575, %v2566, %v2582
    %v2584 = vsel %vm2574, %v2581, %v2583
    %v2585 = vsel %vm2573, %v2563, %v2566
    %v2586 = vsel %vm2576, %v2572, 1326507024
    %v2587 = vsel %vm2575, %v2569, %v2586
    %v2588 = vsel %vm2574, %v2585, %v2587
    %v2589 = vshll.u32 %v2549, 8
    %v2590 = vmul.u32.u64.compose %v2589, %v2588
    %v2591 = vextract.low.u32 %v2590
    %v2592 = vextract.high.u32 %v2590
    %v2593 = vmul.u32.u64.compose %v2589, %v2584
    %v2594 = vextract.low.u32 %v2593
    %v2595 = vextract.high.u32 %v2593
    %v2596 = vmul.u32 %v2589, %v2580
    %v2597 = vadd.s32 %v2592, %v2594
    %vm2598 = vc.u32 %v2592, %v2594
    %v2599 = vadd.s32 %v2595, 1
    %v2600 = vsel %vm2598, %v2599, %v2595
    %v2601 = vadd.s32 %v2596, %v2600
    %v2602 = vadd.s32 %v2601, 536870912
    %v2603 = vshrl.u32 %v2602, 30
    %v2604 = vshll.u32 %v2603, 30
    %v2605 = vsub.s32 %v2601, %v2604
    %vm2606 = vcmp.lt.s32.totalorder %v2605, 0
    %v2607 = vsub.s32 0, %v2605
    %v2608 = vsel %vm2606, %v2607, %v2605
    %v2609 = vclz %v2608
    %v2610 = vsub.s32 %v2609, 2
    %vm2611 = vcmp.gt.s32.totalorder 0, %v2610
    %v2612 = vsel %vm2611, 0, %v2610
    %v2613 = vsub.s32 32, %v2612
    %v2614 = vshll.u32 %v2605, %v2612
    %v2615 = vshrl.u32 %v2597, %v2613
    %v2616 = vor.u32 %v2614, %v2615
    %v2617 = vsub.s32 4294967266, %v2612
    %v2618 = vadd.s32 %v2617, 127
    %v2619 = vshll.u32 %v2618, 23
    %v2620 = vor.u32 4788187, %v2619
    %v2621 = vand.u32 2147483647, %v2620
    %v2623 = vcvt.s32.f32 %v2616
    %v2624 = vmul.f32 %v2623, %v2621
    %v2625 = vxor.u32 %v2624, 2147483648
    %v2626 = vsel %vm2543, %v2625, %v2624
    %v2627 = vsub.s32 4, %v2603
    %v2628 = vsel %vm2543, %v2627, %v2603
    %v2629 = vsel %vm2542, %v1816, %v2626
    %v2630 = vsel %vm2542, 0, %v2628
    %v2631 = vcosq.f32.pop %v2629
    %v2632 = vsinq.f32.pop %v2629
    %vm2633 = vweird.f32 %v1816
    %v2634 = vadd.s32 %v2630, 3
    %v2635 = vand.u32 %v2634, 3
    %vm2636 = vcmp.lt.s32.totalorder %v2635, 2
    %vm2637 = vcmp.eq.s32.totalorder %v2635, 0
    %v2638 = vxor.u32 %v2632, 2147483648
    %v2639 = vsel %vm2637, %v2631, %v2638
    %vm2640 = vcmp.eq.s32.totalorder %v2635, 2
    %v2641 = vxor.u32 %v2631, 2147483648
    %v2642 = vsel %vm2640, %v2641, %v2632
    %v2643 = vsel %vm2636, %v2639, %v2642
    %v2644 = vsel %vm2633, nan, %v2643
    %v2645 = vadd.f32 %v1089, %v1604
    %v2646 = vmul.f32 %v1919, %v2645
    %v2647 = vsub.f32 %v1089, %v1604
    %v2648 = vmul.f32 %v2332, %v2647
    %v2649 = vadd.f32 %v1192, %v1501
    %v2650 = vmul.f32 %v2022, %v2649
    %v2651 = vsub.f32 %v1192, %v1501
    %v2652 = vmul.f32 %v2436, %v2651
    %v2653 = vadd.f32 %v2646, %v2650
    %v2654 = vadd.f32 %v2648, %v2652
    %v2655 = vadd.f32 %v1398, %v1707
    %v2656 = vmul.f32 %v2125, %v2655
    %v2657 = vsub.f32 %v1398, %v1707
    %v2658 = vmul.f32 %v2540, %v2657
    %v2659 = vadd.f32 %v2653, %v2656
    %v2660 = vadd.f32 %v2654, %v2658
    %v2661 = vadd.f32 %v1295, %v1810
    %v2662 = vmul.f32 %v2228, %v2661
    %v2663 = vsub.f32 %v1295, %v1810
    %v2664 = vmul.f32 %v2644, %v2663
    %v2665 = vadd.f32 %v2659, %v2662
    %v2666 = vadd.f32 %v2660, %v2664
    %v2667 = vmul.f32 %v2665, %v2665
    %v2668 = vmul.f32 %v2666, %v2666
    %v2669 = vadd.f32 %v2667, %v2668
    %v2670 = vmul.f32 %v2669, 0.015625
    %2671 = vst [vmem:[#allocation15] sm:$0xff] %v2670
    // Predicated region
    $region58: #{tpu_custom_call.1} parent=1 // pred_check
      _
    $region59: #{tpu_custom_call.1} parent=1 // pred_check_branch
      %2673 = sbr.rel (0) target = $region61
    $region60: #{tpu_custom_call.1} parent=1 // pred_region
      %s2675 = ssub.s32 128, 128
      %2676 = vsyncadd [#allocation4], %s2675
      %s2678 = sshll.u32 [#allocation15], 4
      %s2679 = int_to_ptr.vmem [resolvable:$true] %s2678
      %2681 = dma.vmem_to_hbm [thread:$0]  %s2679, 128, %s7, [#allocation4]
    $region61: #{tpu_custom_call.1} parent=1 // pred_fallthru
      _
    // Predicated region
    $region62: #{tpu_custom_call.1} parent=1 // pred_check
      _
    $region63: #{tpu_custom_call.1} parent=1 // pred_check_branch
      %2683 = sbr.rel (0) target = $region65
    $region64: #{tpu_custom_call.1} parent=1 // pred_region
      %2684 = dma.done [#allocation4], 128
    $region65: #{tpu_custom_call.1} parent=1 // pred_fallthru
      _
    %2685 = vsyncpa [#allocation3], 1
    %2686 = vsyncpa [#allocation4], 1
    %2687 = vsyncpa [#allocation5], 1
    %2688 = vsyncpa [#allocation8], 1
    %2689 = vsyncpa [#allocation11], 1
    %2690 = vsyncpa [#allocation14], 1

</llo_original>
